<compile_context>
chip_gen: v5e
topology: v5e:2x2
jax: 0.10.0
libtpu: 0.0.40
codegen_flags: <defaults>
</compile_context>

<pallas_src>
import functools

import numpy as np
import jax
import jax.numpy as jnp
from jax.experimental import pallas as pl
from jax.experimental.pallas import tpu as pltpu


C_IN, C_D1, C_DEEP, C_SHAL, NUM_DEFECTS = 4, 16, 32, 16, 3

# conv2 scratch layout: the deep conv1 activation is stored at an aligned
# (sublane, lane) offset inside a zeroed VMEM scratch; the 1-pixel zero halo
# of the "same" padding lives in the surrounding (already-zero) scratch area.
_R0 = 8      # sublane offset of interior row y=0
_L0 = 128    # lane offset of interior column x=0 (channel 0)


def _round_up(x, m):
    return -(-x // m) * m


# ------------------------- banded conv weights ------------------------------

def _band_conv_weight(w_hwio, width):
    """3x3 stride-1 pad-1 conv as 3 row-shifted matmuls.

    Returns big[dy, (x+dx)*Cin + ci, x*Cout + co] = w[dy, dx, ci, co], so for
    each vertical tap dy:  padded_row_slab[dy:dy+H] @ big[dy]  performs the
    dx/ci contraction of nn.Conv2d(k=3, stride=1, padding=1) exactly.
    """
    kh, kw, cin, cout = w_hwio.shape
    big = np.zeros((kh, (width + 2) * cin, width * cout), np.float32)
    for dy in range(kh):
        for dx in range(kw):
            for x in range(width):
                big[dy,
                    (x + dx) * cin:(x + dx + 1) * cin,
                    x * cout:(x + 1) * cout] = w_hwio[dy, dx]
    return big


def pack_params(params, width):
    """One-time (offline) repack of the module weights for the fused kernel."""
    assert C_D1 <= _L0

    def hwio(w_flat, cin):
        return np.asarray(w_flat, np.float32).reshape(3, 3, cin, -1)

    # deep conv1 and shallow conv1 share the same input -> merge into one
    # matmul; outputs live side by side on the lane axis: [deep | shallow].
    w1 = np.concatenate(
        [_band_conv_weight(hwio(params["deep_w1"], C_IN), width),
         _band_conv_weight(hwio(params["shal_w1"], C_IN), width)], axis=-1)
    b1 = np.concatenate(
        [np.tile(np.asarray(params["deep_b1"], np.float32), width),
         np.tile(np.asarray(params["shal_b1"], np.float32), width)])

    # deep conv2: band embedded at the scratch lane offset so the kernel reads
    # full, lane-aligned scratch rows (zero rows/halo contribute nothing).
    band2 = _band_conv_weight(hwio(params["deep_w2"], C_D1), width)
    kw2 = (width + 2) * C_D1
    scr_cols = _round_up(_L0 - C_D1 + kw2, 128)
    w2 = np.zeros((3, scr_cols, width * C_DEEP), np.float32)
    w2[:, _L0 - C_D1:_L0 - C_D1 + kw2, :] = band2
    b2 = np.tile(np.asarray(params["deep_b2"], np.float32), width)

    # 0/1 pooling matrices: pooled[c] = sum_x colsum[x*C + c]   (runs on MXU).
    ps = np.tile(np.eye(C_SHAL, dtype=np.float32), (width, 1))
    pd = np.tile(np.eye(C_DEEP, dtype=np.float32), (width, 1))

    head_w = np.asarray(params["head_w"], np.float32)
    return {
        "w1": jnp.asarray(w1, jnp.bfloat16),
        "b1": jnp.asarray(b1.reshape(1, -1)),
        "w2": jnp.asarray(w2, jnp.bfloat16),
        "b2": jnp.asarray(b2.reshape(1, -1)),
        "ps": jnp.asarray(ps),
        "pd": jnp.asarray(pd),
        "whd": jnp.asarray(head_w[:C_DEEP]),
        "whs": jnp.asarray(head_w[C_DEEP:]),
        "bh": jnp.asarray(np.asarray(params["head_b"],
                                     np.float32).reshape(1, -1)),
    }


# ------------------------------ fused kernel --------------------------------

def _fused_forward_kernel(xp_ref, w1_ref, b1_ref, w2_ref, b2_ref,
                          ps_ref, pd_ref, whd_ref, whs_ref, bh_ref,
                          o_ref, pad_ref, *, h, w, c_d1, normalize_head):
    f32, bf16 = jnp.float32, jnp.bfloat16
    inv_hw = 1.0 / (h * w)

    # ---- conv1 (deep || shallow merged) : 3 row-shifted MXU matmuls --------
    acc1 = jnp.zeros((h, w1_ref.shape[-1]), f32)
    for dy in range(3):
        patch = xp_ref[dy:dy + h, :].astype(bf16)            # [h, (w+2)*Cin]
        acc1 = acc1 + jnp.dot(patch, w1_ref[dy],
                              preferred_element_type=f32)
    y1 = jnp.maximum(acc1 + b1_ref[...], 0.0)                # [h, w*(Cd1+Cs)]
    y1_deep = y1[:, :w * c_d1]                               # [h, w*Cd1]
    y1_shal = y1[:, w * c_d1:]                               # [h, w*Cs]

    # ---- shallow branch: fused global average pool (MXU reduction) ---------
    col_s = jnp.sum(y1_shal, axis=0, keepdims=True)          # [1, w*Cs]
    x_s = jnp.dot(col_s, ps_ref[...],
                  preferred_element_type=f32) * inv_hw       # [1, Cs]

    # ---- deep conv2 on a zero-padded VMEM scratch ---------------------------
    pad_ref[...] = jnp.zeros_like(pad_ref)
    pad_ref[_R0:_R0 + h, _L0:_L0 + w * c_d1] = y1_deep       # aligned store
    acc2 = jnp.zeros((h, w2_ref.shape[-1]), f32)
    for dy in range(3):
        patch = pad_ref[_R0 - 1 + dy:_R0 - 1 + dy + h, :].astype(bf16)
        acc2 = acc2 + jnp.dot(patch, w2_ref[dy],
                              preferred_element_type=f32)
    y2 = jnp.maximum(acc2 + b2_ref[...], 0.0)                # [h, w*Cdeep]

    # ---- deep branch: fused global average pool -----------------------------
    col_d = jnp.sum(y2, axis=0, keepdims=True)               # [1, w*Cdeep]
    x_d = jnp.dot(col_d, pd_ref[...],
                  preferred_element_type=f32) * inv_hw       # [1, Cdeep]

    # ---- normalize_head + concat + SeparatedHead (fused) --------------------
    # Dropout inside SimpleLinearHead is identity at inference time.
    if normalize_head:
        x_d = x_d / jnp.mean(jnp.abs(x_d), axis=-1, keepdims=True)
        x_s = x_s / jnp.mean(jnp.abs(x_s), axis=-1, keepdims=True)
    o_ref[...] = (jnp.dot(x_d, whd_ref[...], preferred_element_type=f32)
                  + jnp.dot(x_s, whs_ref[...], preferred_element_type=f32)
                  + bh_ref[...])


# ------------------------------- wrapper ------------------------------------

def deep_shallow_forward(packed, x_nchw, normalize_head=True):
    B, cin, H, W = x_nchw.shape
    x = jnp.transpose(x_nchw, (0, 2, 3, 1))                  # NCHW -> NHWC once
    xp = jnp.pad(x, ((0, 0), (1, 1), (1, 1), (0, 0)))
    xp2d = xp.reshape(B, H + 2, (W + 2) * cin)               # padded row slabs

    assert packed["w1"].shape[1] == (W + 2) * cin, "packed for different size"
    scr_cols = packed["w2"].shape[1]
    scr_rows = _round_up(_R0 + H + 1, 8)

    kernel = functools.partial(_fused_forward_kernel, h=H, w=W, c_d1=C_D1,
                               normalize_head=normalize_head)
    c3 = lambda b: (0, 0, 0)
    c2 = lambda b: (0, 0)

    out = pl.pallas_call(
        kernel,
        out_shape=jax.ShapeDtypeStruct((B, 1, NUM_DEFECTS), jnp.float32),
        grid=(B,),
        in_specs=[
            pl.BlockSpec((None, H + 2, (W + 2) * cin), lambda b: (b, 0, 0)),
            pl.BlockSpec(packed["w1"].shape, c3),
            pl.BlockSpec(packed["b1"].shape, c2),
            pl.BlockSpec(packed["w2"].shape, c3),
            pl.BlockSpec(packed["b2"].shape, c2),
            pl.BlockSpec(packed["ps"].shape, c2),
            pl.BlockSpec(packed["pd"].shape, c2),
            pl.BlockSpec(packed["whd"].shape, c2),
            pl.BlockSpec(packed["whs"].shape, c2),
            pl.BlockSpec(packed["bh"].shape, c2),
        ],
        out_specs=pl.BlockSpec((None, 1, NUM_DEFECTS), lambda b: (b, 0, 0)),
        scratch_shapes=[pltpu.VMEM((scr_rows, scr_cols), jnp.float32)],
        compiler_params=pltpu.CompilerParams(
            dimension_semantics=("parallel",),          # shards batch on v7x TCs
            vmem_limit_bytes=32 * 1024 * 1024),
    )(xp2d, packed["w1"], packed["b1"], packed["w2"], packed["b2"],
      packed["ps"], packed["pd"], packed["whd"], packed["whs"], packed["bh"])
    return out.reshape(B, NUM_DEFECTS)


# ------------------------ params & pure-JAX reference -----------------------

def init_params(key):
    ks = jax.random.split(key, 8)

    def winit(k, shape, fan_in):
        return jax.random.normal(k, shape, jnp.float32) / jnp.sqrt(fan_in)

    # TODO(synk): the real shufflenet/resnet backbones are external modules and
    # were not provided; deterministic stand-in conv backbones are used.
    return {
        "deep_w1": winit(ks[0], (9 * C_IN, C_D1), 9 * C_IN),
        "deep_b1": 0.01 * jax.random.normal(ks[1], (C_D1,), jnp.float32),
        "deep_w2": winit(ks[2], (9 * C_D1, C_DEEP), 9 * C_D1),
        "deep_b2": 0.01 * jax.random.normal(ks[3], (C_DEEP,), jnp.float32),
        "shal_w1": winit(ks[4], (9 * C_IN, C_SHAL), 9 * C_IN),
        "shal_b1": 0.01 * jax.random.normal(ks[5], (C_SHAL,), jnp.float32),
        # SeparatedHead of NUM_DEFECTS x SimpleLinearHead(C_DEEP+C_SHAL, 1),
        # stacked into a single [C_DEEP+C_SHAL, NUM_DEFECTS] matrix.
        "head_w": winit(ks[6], (C_DEEP + C_SHAL, NUM_DEFECTS), C_DEEP + C_SHAL),
        "head_b": 0.01 * jax.random.normal(ks[7], (NUM_DEFECTS,), jnp.float32),
    }


def reference_forward(params, x_nchw, normalize_head=True):
    x = jnp.transpose(x_nchw, (0, 2, 3, 1))

    def conv(xin, w_flat, b):
        C = xin.shape[-1]
        w = w_flat.reshape(3, 3, C, -1)
        y = jax.lax.conv_general_dilated(
            xin, w, (1, 1), ((1, 1), (1, 1)),
            dimension_numbers=("NHWC", "HWIO", "NHWC"))
        return jax.nn.relu(y + b)

    h = conv(x, params["deep_w1"], params["deep_b1"])
    h = conv(h, params["deep_w2"], params["deep_b2"])
    x_d = jnp.mean(h, axis=(1, 2))
    g = conv(x, params["shal_w1"], params["shal_b1"])
    x_s = jnp.mean(g, axis=(1, 2))
    if normalize_head:
        x_d = x_d / jnp.mean(jnp.abs(x_d), axis=-1, keepdims=True)
        x_s = x_s / jnp.mean(jnp.abs(x_s), axis=-1, keepdims=True)
    feat = jnp.concatenate([x_d, x_s], axis=-1)
    return feat @ params["head_w"] + params["head_b"]


# ---------------------------------- main ------------------------------------

if __name__ == "__main__":
    key = jax.random.PRNGKey(0)
    k_x, k_p = jax.random.split(key)
    x = jax.random.normal(k_x, (2, C_IN, 16, 16), jnp.float32)  # NCHW like torch
    params = init_params(k_p)
    packed = pack_params(params, width=16)          # one-time weight repack

    fwd = jax.jit(functools.partial(deep_shallow_forward, normalize_head=True))
    out = jax.block_until_ready(fwd(packed, x))

    ref = jax.block_until_ready(reference_forward(params, x, normalize_head=True))
    assert out.shape == (2, NUM_DEFECTS), out.shape
    # bf16 MXU operands -> slightly looser tolerance than pure-f32 version.
    assert jnp.allclose(out, ref, rtol=3e-2, atol=3e-2), (out, ref)

    print("KERNEL_OK")
</pallas_src>

<mosaic_0001>
module attributes {stable_mosaic.version = 11 : i64} {
  func.func @_fused_forward_kernel(%arg0: i32, %arg1: memref<1x18x72xf32, #tpu.memory_space<vmem>>, %arg2: memref<3x72x512xbf16, #tpu.memory_space<vmem>>, %arg3: memref<1x512xf32, #tpu.memory_space<vmem>>, %arg4: memref<3x512x512xbf16, #tpu.memory_space<vmem>>, %arg5: memref<1x512xf32, #tpu.memory_space<vmem>>, %arg6: memref<256x16xf32, #tpu.memory_space<vmem>>, %arg7: memref<512x32xf32, #tpu.memory_space<vmem>>, %arg8: memref<32x3xf32, #tpu.memory_space<vmem>>, %arg9: memref<16x3xf32, #tpu.memory_space<vmem>>, %arg10: memref<1x3xf32, #tpu.memory_space<vmem>>, %arg11: memref<1x1x3xf32, #tpu.memory_space<vmem>>, %arg12: memref<32x512xf32, #tpu.memory_space<vmem>>) attributes {dimension_semantics = [#tpu.dimension_semantics<parallel>], iteration_bounds = array<i64: 2>, scalar_prefetch = 0 : i64, scratch_operands = 1 : i64, tpu.core_type = #tpu.core_type<tc>, window_params = [{transform_indices = @transform_0, window_bounds = array<i64: 1, 18, 72>}, {pipeline_mode = #tpu.pipeline_mode<synchronous>, transform_indices = @transform_1, window_bounds = array<i64: 3, 72, 512>}, {pipeline_mode = #tpu.pipeline_mode<synchronous>, transform_indices = @transform_2, window_bounds = array<i64: 1, 512>}, {pipeline_mode = #tpu.pipeline_mode<synchronous>, transform_indices = @transform_3, window_bounds = array<i64: 3, 512, 512>}, {pipeline_mode = #tpu.pipeline_mode<synchronous>, transform_indices = @transform_4, window_bounds = array<i64: 1, 512>}, {pipeline_mode = #tpu.pipeline_mode<synchronous>, transform_indices = @transform_5, window_bounds = array<i64: 256, 16>}, {pipeline_mode = #tpu.pipeline_mode<synchronous>, transform_indices = @transform_6, window_bounds = array<i64: 512, 32>}, {pipeline_mode = #tpu.pipeline_mode<synchronous>, transform_indices = @transform_7, window_bounds = array<i64: 32, 3>}, {pipeline_mode = #tpu.pipeline_mode<synchronous>, transform_indices = @transform_8, window_bounds = array<i64: 16, 3>}, {pipeline_mode = #tpu.pipeline_mode<synchronous>, transform_indices = @transform_9, window_bounds = array<i64: 1, 3>}, {transform_indices = @transform_10, window_bounds = array<i64: 1, 1, 3>}]} {
    %cst = arith.constant 0.000000e+00 : f32
    %0 = vector.broadcast %cst : f32 to vector<16x512xf32>
    %c0 = arith.constant 0 : index
    %c0_0 = arith.constant 0 : index
    %c0_1 = arith.constant 0 : index
    %1 = vector.load %arg1[%c0, %c0_0, %c0_1] : memref<1x18x72xf32, #tpu.memory_space<vmem>>, vector<1x16x72xf32>
    %2 = vector.shape_cast %1 : vector<1x16x72xf32> to vector<16x72xf32>
    %3 = arith.truncf %2 : vector<16x72xf32> to vector<16x72xbf16>
    %c0_2 = arith.constant 0 : index
    %c0_3 = arith.constant 0 : index
    %c0_4 = arith.constant 0 : index
    %4 = vector.load %arg2[%c0_2, %c0_3, %c0_4] : memref<3x72x512xbf16, #tpu.memory_space<vmem>>, vector<1x72x512xbf16>
    %5 = vector.shape_cast %4 : vector<1x72x512xbf16> to vector<72x512xbf16>
    %cst_5 = arith.constant dense<0.000000e+00> : vector<16x512xf32>
    %6 = tpu.matmul %3, %5, %cst_5 {dimension_numbers = #tpu.dot_dimension_numbers<[1], [0], [0], [1], [0, 0, 1, 1], [], []>} : vector<16x72xbf16>, vector<72x512xbf16>, vector<16x512xf32> -> vector<16x512xf32>
    %7 = arith.addf %0, %6 : vector<16x512xf32>
    %c0_6 = arith.constant 0 : index
    %c1 = arith.constant 1 : index
    %c0_7 = arith.constant 0 : index
    %8 = vector.load %arg1[%c0_6, %c1, %c0_7] : memref<1x18x72xf32, #tpu.memory_space<vmem>>, vector<1x16x72xf32>
    %9 = vector.shape_cast %8 : vector<1x16x72xf32> to vector<16x72xf32>
    %10 = arith.truncf %9 : vector<16x72xf32> to vector<16x72xbf16>
    %c1_8 = arith.constant 1 : index
    %c0_9 = arith.constant 0 : index
    %c0_10 = arith.constant 0 : index
    %11 = vector.load %arg2[%c1_8, %c0_9, %c0_10] : memref<3x72x512xbf16, #tpu.memory_space<vmem>>, vector<1x72x512xbf16>
    %12 = vector.shape_cast %11 : vector<1x72x512xbf16> to vector<72x512xbf16>
    %cst_11 = arith.constant dense<0.000000e+00> : vector<16x512xf32>
    %13 = tpu.matmul %10, %12, %cst_11 {dimension_numbers = #tpu.dot_dimension_numbers<[1], [0], [0], [1], [0, 0, 1, 1], [], []>} : vector<16x72xbf16>, vector<72x512xbf16>, vector<16x512xf32> -> vector<16x512xf32>
    %14 = arith.addf %7, %13 : vector<16x512xf32>
    %c0_12 = arith.constant 0 : index
    %c2 = arith.constant 2 : index
    %c0_13 = arith.constant 0 : index
    %15 = vector.load %arg1[%c0_12, %c2, %c0_13] : memref<1x18x72xf32, #tpu.memory_space<vmem>>, vector<1x16x72xf32>
    %16 = vector.shape_cast %15 : vector<1x16x72xf32> to vector<16x72xf32>
    %17 = arith.truncf %16 : vector<16x72xf32> to vector<16x72xbf16>
    %c2_14 = arith.constant 2 : index
    %c0_15 = arith.constant 0 : index
    %c0_16 = arith.constant 0 : index
    %18 = vector.load %arg2[%c2_14, %c0_15, %c0_16] : memref<3x72x512xbf16, #tpu.memory_space<vmem>>, vector<1x72x512xbf16>
    %19 = vector.shape_cast %18 : vector<1x72x512xbf16> to vector<72x512xbf16>
    %cst_17 = arith.constant dense<0.000000e+00> : vector<16x512xf32>
    %20 = tpu.matmul %17, %19, %cst_17 {dimension_numbers = #tpu.dot_dimension_numbers<[1], [0], [0], [1], [0, 0, 1, 1], [], []>} : vector<16x72xbf16>, vector<72x512xbf16>, vector<16x512xf32> -> vector<16x512xf32>
    %21 = arith.addf %14, %20 : vector<16x512xf32>
    %c0_18 = arith.constant 0 : index
    %c0_19 = arith.constant 0 : index
    %22 = vector.load %arg3[%c0_18, %c0_19] : memref<1x512xf32, #tpu.memory_space<vmem>>, vector<1x512xf32>
    %23 = vector.broadcast %22 : vector<1x512xf32> to vector<16x512xf32>
    %24 = arith.addf %21, %23 : vector<16x512xf32>
    %cst_20 = arith.constant 0.000000e+00 : f32
    %25 = vector.broadcast %cst_20 : f32 to vector<16x512xf32>
    %26 = arith.maximumf %24, %25 : vector<16x512xf32>
    %27 = vector.extract_strided_slice %26 {offsets = [0, 0], sizes = [16, 256], strides = [1, 1]} : vector<16x512xf32> to vector<16x256xf32>
    %28 = vector.extract_strided_slice %26 {offsets = [0, 256], sizes = [16, 256], strides = [1, 1]} : vector<16x512xf32> to vector<16x256xf32>
    %cst_21 = arith.constant dense<0.000000e+00> : vector<256xf32>
    %29 = vector.multi_reduction <add>, %28, %cst_21 [0] : vector<16x256xf32> to vector<256xf32>
    %30 = vector.shape_cast %29 : vector<256xf32> to vector<1x256xf32>
    %c0_22 = arith.constant 0 : index
    %c0_23 = arith.constant 0 : index
    %31 = vector.load %arg6[%c0_22, %c0_23] : memref<256x16xf32, #tpu.memory_space<vmem>>, vector<256x16xf32>
    %cst_24 = arith.constant dense<0.000000e+00> : vector<1x16xf32>
    %32 = tpu.matmul %30, %31, %cst_24 {dimension_numbers = #tpu.dot_dimension_numbers<[1], [0], [0], [1], [0, 0, 1, 1], [], []>} : vector<1x256xf32>, vector<256x16xf32>, vector<1x16xf32> -> vector<1x16xf32>
    %cst_25 = arith.constant 3.906250e-03 : f32
    %33 = vector.broadcast %cst_25 : f32 to vector<1x16xf32>
    %34 = arith.mulf %32, %33 : vector<1x16xf32>
    %cst_26 = arith.constant 0.000000e+00 : f32
    %35 = vector.broadcast %cst_26 : f32 to vector<32x512xf32>
    %c0_27 = arith.constant 0 : index
    %c0_28 = arith.constant 0 : index
    %36 = vector.load %arg12[%c0_27, %c0_28] : memref<32x512xf32, #tpu.memory_space<vmem>>, vector<32x512xf32>
    tpu.vector_store %arg12[%c0_27, %c0_28], %35 {strides = array<i32>} : memref<32x512xf32, #tpu.memory_space<vmem>>, vector<32x512xf32>,
    %c8 = arith.constant 8 : index
    %c128 = arith.constant 128 : index
    %37 = vector.load %arg12[%c8, %c128] : memref<32x512xf32, #tpu.memory_space<vmem>>, vector<16x256xf32>
    tpu.vector_store %arg12[%c8, %c128], %27 {strides = array<i32>} : memref<32x512xf32, #tpu.memory_space<vmem>>, vector<16x256xf32>,
    %cst_29 = arith.constant 0.000000e+00 : f32
    %38 = vector.broadcast %cst_29 : f32 to vector<16x512xf32>
    %c7 = arith.constant 7 : index
    %c0_30 = arith.constant 0 : index
    %39 = vector.load %arg12[%c7, %c0_30] : memref<32x512xf32, #tpu.memory_space<vmem>>, vector<16x512xf32>
    %40 = arith.truncf %39 : vector<16x512xf32> to vector<16x512xbf16>
    %c0_31 = arith.constant 0 : index
    %c0_32 = arith.constant 0 : index
    %c0_33 = arith.constant 0 : index
    %41 = vector.load %arg4[%c0_31, %c0_32, %c0_33] : memref<3x512x512xbf16, #tpu.memory_space<vmem>>, vector<1x512x512xbf16>
    %42 = vector.shape_cast %41 : vector<1x512x512xbf16> to vector<512x512xbf16>
    %cst_34 = arith.constant dense<0.000000e+00> : vector<16x512xf32>
    %43 = tpu.matmul %40, %42, %cst_34 {dimension_numbers = #tpu.dot_dimension_numbers<[1], [0], [0], [1], [0, 0, 1, 1], [], []>} : vector<16x512xbf16>, vector<512x512xbf16>, vector<16x512xf32> -> vector<16x512xf32>
    %44 = arith.addf %38, %43 : vector<16x512xf32>
    %c8_35 = arith.constant 8 : index
    %c0_36 = arith.constant 0 : index
    %45 = vector.load %arg12[%c8_35, %c0_36] : memref<32x512xf32, #tpu.memory_space<vmem>>, vector<16x512xf32>
    %46 = arith.truncf %45 : vector<16x512xf32> to vector<16x512xbf16>
    %c1_37 = arith.constant 1 : index
    %c0_38 = arith.constant 0 : index
    %c0_39 = arith.constant 0 : index
    %47 = vector.load %arg4[%c1_37, %c0_38, %c0_39] : memref<3x512x512xbf16, #tpu.memory_space<vmem>>, vector<1x512x512xbf16>
    %48 = vector.shape_cast %47 : vector<1x512x512xbf16> to vector<512x512xbf16>
    %cst_40 = arith.constant dense<0.000000e+00> : vector<16x512xf32>
    %49 = tpu.matmul %46, %48, %cst_40 {dimension_numbers = #tpu.dot_dimension_numbers<[1], [0], [0], [1], [0, 0, 1, 1], [], []>} : vector<16x512xbf16>, vector<512x512xbf16>, vector<16x512xf32> -> vector<16x512xf32>
    %50 = arith.addf %44, %49 : vector<16x512xf32>
    %c9 = arith.constant 9 : index
    %c0_41 = arith.constant 0 : index
    %51 = vector.load %arg12[%c9, %c0_41] : memref<32x512xf32, #tpu.memory_space<vmem>>, vector<16x512xf32>
    %52 = arith.truncf %51 : vector<16x512xf32> to vector<16x512xbf16>
    %c2_42 = arith.constant 2 : index
    %c0_43 = arith.constant 0 : index
    %c0_44 = arith.constant 0 : index
    %53 = vector.load %arg4[%c2_42, %c0_43, %c0_44] : memref<3x512x512xbf16, #tpu.memory_space<vmem>>, vector<1x512x512xbf16>
    %54 = vector.shape_cast %53 : vector<1x512x512xbf16> to vector<512x512xbf16>
    %cst_45 = arith.constant dense<0.000000e+00> : vector<16x512xf32>
    %55 = tpu.matmul %52, %54, %cst_45 {dimension_numbers = #tpu.dot_dimension_numbers<[1], [0], [0], [1], [0, 0, 1, 1], [], []>} : vector<16x512xbf16>, vector<512x512xbf16>, vector<16x512xf32> -> vector<16x512xf32>
    %56 = arith.addf %50, %55 : vector<16x512xf32>
    %c0_46 = arith.constant 0 : index
    %c0_47 = arith.constant 0 : index
    %57 = vector.load %arg5[%c0_46, %c0_47] : memref<1x512xf32, #tpu.memory_space<vmem>>, vector<1x512xf32>
    %58 = vector.broadcast %57 : vector<1x512xf32> to vector<16x512xf32>
    %59 = arith.addf %56, %58 : vector<16x512xf32>
    %cst_48 = arith.constant 0.000000e+00 : f32
    %60 = vector.broadcast %cst_48 : f32 to vector<16x512xf32>
    %61 = arith.maximumf %59, %60 : vector<16x512xf32>
    %cst_49 = arith.constant dense<0.000000e+00> : vector<512xf32>
    %62 = vector.multi_reduction <add>, %61, %cst_49 [0] : vector<16x512xf32> to vector<512xf32>
    %63 = vector.shape_cast %62 : vector<512xf32> to vector<1x512xf32>
    %c0_50 = arith.constant 0 : index
    %c0_51 = arith.constant 0 : index
    %64 = vector.load %arg7[%c0_50, %c0_51] : memref<512x32xf32, #tpu.memory_space<vmem>>, vector<512x32xf32>
    %cst_52 = arith.constant dense<0.000000e+00> : vector<1x32xf32>
    %65 = tpu.matmul %63, %64, %cst_52 {dimension_numbers = #tpu.dot_dimension_numbers<[1], [0], [0], [1], [0, 0, 1, 1], [], []>} : vector<1x512xf32>, vector<512x32xf32>, vector<1x32xf32> -> vector<1x32xf32>
    %cst_53 = arith.constant 3.906250e-03 : f32
    %66 = vector.broadcast %cst_53 : f32 to vector<1x32xf32>
    %67 = arith.mulf %65, %66 : vector<1x32xf32>
    %68 = math.absf %67 : vector<1x32xf32>
    %cst_54 = arith.constant dense<0.000000e+00> : vector<1xf32>
    %69 = vector.multi_reduction <add>, %68, %cst_54 [1] : vector<1x32xf32> to vector<1xf32>
    %70 = vector.shape_cast %69 : vector<1xf32> to vector<1x1xf32>
    %cst_55 = arith.constant 3.200000e+01 : f32
    %71 = vector.broadcast %cst_55 : f32 to vector<1x1xf32>
    %72 = arith.divf %70, %71 : vector<1x1xf32>
    %73 = vector.broadcast %72 : vector<1x1xf32> to vector<1x32xf32>
    %74 = arith.divf %67, %73 : vector<1x32xf32>
    %75 = math.absf %34 : vector<1x16xf32>
    %cst_56 = arith.constant dense<0.000000e+00> : vector<1xf32>
    %76 = vector.multi_reduction <add>, %75, %cst_56 [1] : vector<1x16xf32> to vector<1xf32>
    %77 = vector.shape_cast %76 : vector<1xf32> to vector<1x1xf32>
    %cst_57 = arith.constant 1.600000e+01 : f32
    %78 = vector.broadcast %cst_57 : f32 to vector<1x1xf32>
    %79 = arith.divf %77, %78 : vector<1x1xf32>
    %80 = vector.broadcast %79 : vector<1x1xf32> to vector<1x16xf32>
    %81 = arith.divf %34, %80 : vector<1x16xf32>
    %c0_58 = arith.constant 0 : index
    %c0_59 = arith.constant 0 : index
    %82 = vector.load %arg8[%c0_58, %c0_59] : memref<32x3xf32, #tpu.memory_space<vmem>>, vector<32x3xf32>
    %cst_60 = arith.constant dense<0.000000e+00> : vector<1x3xf32>
    %83 = tpu.matmul %74, %82, %cst_60 {dimension_numbers = #tpu.dot_dimension_numbers<[1], [0], [0], [1], [0, 0, 1, 1], [], []>} : vector<1x32xf32>, vector<32x3xf32>, vector<1x3xf32> -> vector<1x3xf32>
    %c0_61 = arith.constant 0 : index
    %c0_62 = arith.constant 0 : index
    %84 = vector.load %arg9[%c0_61, %c0_62] : memref<16x3xf32, #tpu.memory_space<vmem>>, vector<16x3xf32>
    %cst_63 = arith.constant dense<0.000000e+00> : vector<1x3xf32>
    %85 = tpu.matmul %81, %84, %cst_63 {dimension_numbers = #tpu.dot_dimension_numbers<[1], [0], [0], [1], [0, 0, 1, 1], [], []>} : vector<1x16xf32>, vector<16x3xf32>, vector<1x3xf32> -> vector<1x3xf32>
    %86 = arith.addf %83, %85 : vector<1x3xf32>
    %c0_64 = arith.constant 0 : index
    %c0_65 = arith.constant 0 : index
    %87 = vector.load %arg10[%c0_64, %c0_65] : memref<1x3xf32, #tpu.memory_space<vmem>>, vector<1x3xf32>
    %88 = arith.addf %86, %87 : vector<1x3xf32>
    %c0_66 = arith.constant 0 : index
    %c0_67 = arith.constant 0 : index
    %c0_68 = arith.constant 0 : index
    %89 = vector.load %arg11[%c0_66, %c0_67, %c0_68] : memref<1x1x3xf32, #tpu.memory_space<vmem>>, vector<1x1x3xf32>
    %90 = vector.shape_cast %89 : vector<1x1x3xf32> to vector<1x3xf32>
    %91 = vector.shape_cast %88 : vector<1x3xf32> to vector<1x1x3xf32>
    tpu.vector_store %arg11[%c0_66, %c0_67, %c0_68], %91 {strides = array<i32>} : memref<1x1x3xf32, #tpu.memory_space<vmem>>, vector<1x1x3xf32>,
    return
  }
  func.func @transform_0(%arg0: i32) -> (i32, i32, i32) {
    %c0_i32 = arith.constant 0 : i32
    %c0_i32_0 = arith.constant 0 : i32
    %c0_i32_1 = arith.constant 0 : i32
    return %arg0, %c0_i32, %c0_i32_0 : i32, i32, i32
  }
  func.func @transform_1(%arg0: i32) -> (i32, i32, i32) {
    %c0_i32 = arith.constant 0 : i32
    %c0_i32_0 = arith.constant 0 : i32
    %c0_i32_1 = arith.constant 0 : i32
    %c0_i32_2 = arith.constant 0 : i32
    return %c0_i32, %c0_i32_0, %c0_i32_1 : i32, i32, i32
  }
  func.func @transform_2(%arg0: i32) -> (i32, i32) {
    %c0_i32 = arith.constant 0 : i32
    %c0_i32_0 = arith.constant 0 : i32
    %c0_i32_1 = arith.constant 0 : i32
    return %c0_i32, %c0_i32_0 : i32, i32
  }
  func.func @transform_3(%arg0: i32) -> (i32, i32, i32) {
    %c0_i32 = arith.constant 0 : i32
    %c0_i32_0 = arith.constant 0 : i32
    %c0_i32_1 = arith.constant 0 : i32
    %c0_i32_2 = arith.constant 0 : i32
    return %c0_i32, %c0_i32_0, %c0_i32_1 : i32, i32, i32
  }
  func.func @transform_4(%arg0: i32) -> (i32, i32) {
    %c0_i32 = arith.constant 0 : i32
    %c0_i32_0 = arith.constant 0 : i32
    %c0_i32_1 = arith.constant 0 : i32
    return %c0_i32, %c0_i32_0 : i32, i32
  }
  func.func @transform_5(%arg0: i32) -> (i32, i32) {
    %c0_i32 = arith.constant 0 : i32
    %c0_i32_0 = arith.constant 0 : i32
    %c0_i32_1 = arith.constant 0 : i32
    return %c0_i32, %c0_i32_0 : i32, i32
  }
  func.func @transform_6(%arg0: i32) -> (i32, i32) {
    %c0_i32 = arith.constant 0 : i32
    %c0_i32_0 = arith.constant 0 : i32
    %c0_i32_1 = arith.constant 0 : i32
    return %c0_i32, %c0_i32_0 : i32, i32
  }
  func.func @transform_7(%arg0: i32) -> (i32, i32) {
    %c0_i32 = arith.constant 0 : i32
    %c0_i32_0 = arith.constant 0 : i32
    %c0_i32_1 = arith.constant 0 : i32
    return %c0_i32, %c0_i32_0 : i32, i32
  }
  func.func @transform_8(%arg0: i32) -> (i32, i32) {
    %c0_i32 = arith.constant 0 : i32
    %c0_i32_0 = arith.constant 0 : i32
    %c0_i32_1 = arith.constant 0 : i32
    return %c0_i32, %c0_i32_0 : i32, i32
  }
  func.func @transform_9(%arg0: i32) -> (i32, i32) {
    %c0_i32 = arith.constant 0 : i32
    %c0_i32_0 = arith.constant 0 : i32
    %c0_i32_1 = arith.constant 0 : i32
    return %c0_i32, %c0_i32_0 : i32, i32
  }
  func.func @transform_10(%arg0: i32) -> (i32, i32, i32) {
    %c0_i32 = arith.constant 0 : i32
    %c0_i32_0 = arith.constant 0 : i32
    %c0_i32_1 = arith.constant 0 : i32
    return %arg0, %c0_i32, %c0_i32_0 : i32, i32, i32
  }
}

</mosaic_0001>

<llo_original>
// kernel: deep_shallow_forward.1
$region0: #{deep_shallow_forward.1}
  #allocation0 [shape = 'u32[]', space=smem, size = 0x4, offset = 0x4, fixed_abs, tag = 'smem constant byte address 0x4 - core index']
  #allocation1 [shape = 'u32[72,128]{1,0:T(1,128)}', space=vmem, size = 0x9000, scoped, tag = 'internal scratch']
  #allocation2 [shape = 'f32[32,512]{1,0:T(8,128)}', space=vmem, size = 0x10000, scoped, tag = 'scratch operand']
  %s0 = inlined_call_operand.vmem [shape: f32[2,18,72], index: 0, kind: input, shape index: {}]
  %s1 = inlined_call_operand.hbm [shape: bf16[3,72,512], index: 1, kind: input, shape index: {}]
  %s2 = inlined_call_operand.hbm [shape: f32[1,512], index: 2, kind: input, shape index: {}]
  %s3 = inlined_call_operand.hbm [shape: bf16[3,512,512], index: 3, kind: input, shape index: {}]
  %s4 = inlined_call_operand.hbm [shape: f32[1,512], index: 4, kind: input, shape index: {}]
  %s5 = inlined_call_operand.vmem [shape: f32[256,16], index: 5, kind: input, shape index: {}]
  %s6 = inlined_call_operand.vmem [shape: f32[512,32], index: 6, kind: input, shape index: {}]
  %s7 = inlined_call_operand.vmem [shape: f32[32,3], index: 7, kind: input, shape index: {}]
  %s8 = inlined_call_operand.vmem [shape: f32[16,3], index: 8, kind: input, shape index: {}]
  %s9 = inlined_call_operand.hbm [shape: f32[1,3], index: 9, kind: input, shape index: {}]
  %s10 = inlined_call_operand.hbm [shape: f32[2,1,3], index: 10, kind: output, shape index: {}]
  %s11 = sld [smem:[#allocation0]]
  $region93: #{deep_shallow_forward.1} parent=0
    _
  %s13 = ssub.s32 1, %s11
  %s14 = scalar_select 0, %s13, %s11
  $region1: #{deep_shallow_forward.1} parent=0
    #allocation3 [shape = 'u8[221184]{0}', space=vmem, size = 0x36000, scoped, tag = 'input window, operand 1, single buffered']
    #allocation4 [shape = 's32[2]{0}', space=sflag, size = 0x8, scoped, tag = 'scoped memory for deep_shallow_forward.1']
    #allocation5 [shape = 's32[2]{0}', space=sflag, size = 0x8, scoped, tag = 'scoped memory for deep_shallow_forward.1']
    #allocation6 [shape = 'u8[2048]{0}', space=vmem, size = 0x800, scoped, tag = 'input window, operand 2, single buffered']
    #allocation7 [shape = 's32[1]{0}', space=sflag, size = 0x4, scoped, tag = 'scoped memory for deep_shallow_forward.1']
    #allocation8 [shape = 'u8[1572864]{0}', space=vmem, size = 0x180000, scoped, tag = 'input window, operand 3, single buffered']
    #allocation9 [shape = 'u8[2048]{0}', space=vmem, size = 0x800, scoped, tag = 'input window, operand 4, single buffered']
    #allocation10 [shape = 's32[1]{0}', space=sflag, size = 0x4, scoped, tag = 'scoped memory for deep_shallow_forward.1']
    #allocation11 [shape = 'u8[512]{0}', space=vmem, size = 0x400, scoped, tag = 'input window, operand 9, single buffered']
    #allocation12 [shape = 'u8[1024]{0}', space=vmem, size = 0x400, scoped, tag = 'output window, operand 0']
    %15 = vsyncpa [#allocation4], 0
    %16 = vsyncpa [#allocation7], 0
    %17 = vsyncpa [#allocation10], 0
    %18 = vsyncpa [#allocation5], 0
    %s19 = scalar_lea.sflag [#allocation5], 1
    %20 = vsyncpa %s19, 0
    loop: start=0, step=1, limit=4
    $region2: #{deep_shallow_forward.1} parent=1 // loop_pre_header
      _
    $region3: #{deep_shallow_forward.1} parent=1 // loop_header
      %s22 = sphi 0, %s26
      %p23 = scmp.ge.s32.totalorder %s22, 4
      %s32 = sphi 0, %s34
      %s35 = sphi 0, %s32
      %s36 = sphi 0, %s35
      %s52 = sphi 0, %s36
      %s56 = sphi 0, %s56
      %s58 = sphi 0, %s56
      %s59 = sphi 0, %s58
      %s73 = sphi 0, %s59
      %s77 = sphi 0, %s77
      %s79 = sphi 0, %s77
      %s80 = sphi 0, %s79
      %s94 = sphi 0, %s80
      %s98 = sphi 0, %s98
      %s100 = sphi 0, %s98
      %s101 = sphi 0, %s100
      %s115 = sphi 0, %s101
      %s119 = sphi 0, %s119
      %s121 = sphi 0, %s119
      %s122 = sphi 0, %s121
      %s136 = sphi 0, %s122
      %s140 = sphi 0, %s140
      %s142 = sphi 0, %s140
      %s143 = sphi 0, %s142
      %s157 = sphi 0, %s143
      %s161 = sphi 0, %s161
      %s163 = sphi 0, %s161
      %s164 = sphi 0, %s163
      %s178 = sphi 0, %s164
      %s182 = sphi 0, %s182
      %s184 = sphi 0, %s182
      %s185 = sphi 0, %s184
      %s199 = sphi 0, %s185
      %s203 = sphi 0, %s203
      %s205 = sphi 0, %s203
      %s206 = sphi 0, %s205
      %s220 = sphi 0, %s206
      %s224 = sphi 0, %s224
      %s226 = sphi 0, %s224
      %s227 = sphi 0, %s226
      %s241 = sphi 0, %s227
      %s247 = sphi 0, %s249
      %s250 = sphi 0, %s247
      %s251 = sphi 0, %s250
      %s267 = sphi 0, %s251
    $region4: #{deep_shallow_forward.1} parent=1 // loop_header_branch
      %25 = sbr.rel (%p23) target = $region8
    $region5: #{deep_shallow_forward.1} parent=1 // loop_body
      %s27 = ssub.s32 %s22, 1
      %s28 = ssub.s32 %s22, 2
      %s29 = sadd.s32 %s22, 1
      %s30 = ssub.s32 %s22, %s29
      %p31 = scmp.eq.s32.totalorder %s30, 0
      %s33 = sadd.s32 %s32, 1
      %s34 = scalar_select %p31, %s32, %s33
      %p37 = pneg %p31
      %p38 = scmp.eq.s32.totalorder %s22, 1
      %p39 = por %p37, %p38
      %p40 = scmp.ne.s32.totalorder %s32, %s35
      %p41 = scmp.eq.s32.totalorder %s22, 0
      %p42 = por %p40, %p41
      %p43 = scmp.ne.s32.totalorder %s32, %s35
      %p44 = scmp.eq.s32.totalorder %s27, 1
      %p45 = por %p43, %p44
      %p46 = scmp.ne.s32.totalorder %s35, %s36
      %p47 = scmp.eq.s32.totalorder %s27, 0
      %p48 = por %p46, %p47
      %p49 = scmp.ne.s32.totalorder %s35, %s36
      %p50 = scmp.eq.s32.totalorder %s28, 1
      %p51 = por %p49, %p50
      %p53 = scmp.ne.s32.totalorder %s36, %s52
      %p54 = scmp.eq.s32.totalorder %s28, 0
      %p55 = por %p53, %p54
      %s57 = sadd.s32 %s56, 1
      %p60 = scmp.eq.s32.totalorder %s22, 1
      %p61 = scmp.ne.s32.totalorder %s56, %s58
      %p62 = scmp.eq.s32.totalorder %s22, 0
      %p63 = por %p61, %p62
      %p64 = scmp.ne.s32.totalorder %s56, %s58
      %p65 = scmp.eq.s32.totalorder %s27, 1
      %p66 = por %p64, %p65
      %p67 = scmp.ne.s32.totalorder %s58, %s59
      %p68 = scmp.eq.s32.totalorder %s27, 0
      %p69 = por %p67, %p68
      %p70 = scmp.ne.s32.totalorder %s58, %s59
      %p71 = scmp.eq.s32.totalorder %s28, 1
      %p72 = por %p70, %p71
      %p74 = scmp.ne.s32.totalorder %s59, %s73
      %p75 = scmp.eq.s32.totalorder %s28, 0
      %p76 = por %p74, %p75
      %s78 = sadd.s32 %s77, 1
      %p81 = scmp.eq.s32.totalorder %s22, 1
      %p82 = scmp.ne.s32.totalorder %s77, %s79
      %p83 = scmp.eq.s32.totalorder %s22, 0
      %p84 = por %p82, %p83
      %p85 = scmp.ne.s32.totalorder %s77, %s79
      %p86 = scmp.eq.s32.totalorder %s27, 1
      %p87 = por %p85, %p86
      %p88 = scmp.ne.s32.totalorder %s79, %s80
      %p89 = scmp.eq.s32.totalorder %s27, 0
      %p90 = por %p88, %p89
      %p91 = scmp.ne.s32.totalorder %s79, %s80
      %p92 = scmp.eq.s32.totalorder %s28, 1
      %p93 = por %p91, %p92
      %p95 = scmp.ne.s32.totalorder %s80, %s94
      %p96 = scmp.eq.s32.totalorder %s28, 0
      %p97 = por %p95, %p96
      %s99 = sadd.s32 %s98, 1
      %p102 = scmp.eq.s32.totalorder %s22, 1
      %p103 = scmp.ne.s32.totalorder %s98, %s100
      %p104 = scmp.eq.s32.totalorder %s22, 0
      %p105 = por %p103, %p104
      %p106 = scmp.ne.s32.totalorder %s98, %s100
      %p107 = scmp.eq.s32.totalorder %s27, 1
      %p108 = por %p106, %p107
      %p109 = scmp.ne.s32.totalorder %s100, %s101
      %p110 = scmp.eq.s32.totalorder %s27, 0
      %p111 = por %p109, %p110
      %p112 = scmp.ne.s32.totalorder %s100, %s101
      %p113 = scmp.eq.s32.totalorder %s28, 1
      %p114 = por %p112, %p113
      %p116 = scmp.ne.s32.totalorder %s101, %s115
      %p117 = scmp.eq.s32.totalorder %s28, 0
      %p118 = por %p116, %p117
      %s120 = sadd.s32 %s119, 1
      %p123 = scmp.eq.s32.totalorder %s22, 1
      %p124 = scmp.ne.s32.totalorder %s119, %s121
      %p125 = scmp.eq.s32.totalorder %s22, 0
      %p126 = por %p124, %p125
      %p127 = scmp.ne.s32.totalorder %s119, %s121
      %p128 = scmp.eq.s32.totalorder %s27, 1
      %p129 = por %p127, %p128
      %p130 = scmp.ne.s32.totalorder %s121, %s122
      %p131 = scmp.eq.s32.totalorder %s27, 0
      %p132 = por %p130, %p131
      %p133 = scmp.ne.s32.totalorder %s121, %s122
      %p134 = scmp.eq.s32.totalorder %s28, 1
      %p135 = por %p133, %p134
      %p137 = scmp.ne.s32.totalorder %s122, %s136
      %p138 = scmp.eq.s32.totalorder %s28, 0
      %p139 = por %p137, %p138
      %s141 = sadd.s32 %s140, 1
      %p144 = scmp.eq.s32.totalorder %s22, 1
      %p145 = scmp.ne.s32.totalorder %s140, %s142
      %p146 = scmp.eq.s32.totalorder %s22, 0
      %p147 = por %p145, %p146
      %p148 = scmp.ne.s32.totalorder %s140, %s142
      %p149 = scmp.eq.s32.totalorder %s27, 1
      %p150 = por %p148, %p149
      %p151 = scmp.ne.s32.totalorder %s142, %s143
      %p152 = scmp.eq.s32.totalorder %s27, 0
      %p153 = por %p151, %p152
      %p154 = scmp.ne.s32.totalorder %s142, %s143
      %p155 = scmp.eq.s32.totalorder %s28, 1
      %p156 = por %p154, %p155
      %p158 = scmp.ne.s32.totalorder %s143, %s157
      %p159 = scmp.eq.s32.totalorder %s28, 0
      %p160 = por %p158, %p159
      %s162 = sadd.s32 %s161, 1
      %p165 = scmp.eq.s32.totalorder %s22, 1
      %p166 = scmp.ne.s32.totalorder %s161, %s163
      %p167 = scmp.eq.s32.totalorder %s22, 0
      %p168 = por %p166, %p167
      %p169 = scmp.ne.s32.totalorder %s161, %s163
      %p170 = scmp.eq.s32.totalorder %s27, 1
      %p171 = por %p169, %p170
      %p172 = scmp.ne.s32.totalorder %s163, %s164
      %p173 = scmp.eq.s32.totalorder %s27, 0
      %p174 = por %p172, %p173
      %p175 = scmp.ne.s32.totalorder %s163, %s164
      %p176 = scmp.eq.s32.totalorder %s28, 1
      %p177 = por %p175, %p176
      %p179 = scmp.ne.s32.totalorder %s164, %s178
      %p180 = scmp.eq.s32.totalorder %s28, 0
      %p181 = por %p179, %p180
      %s183 = sadd.s32 %s182, 1
      %p186 = scmp.eq.s32.totalorder %s22, 1
      %p187 = scmp.ne.s32.totalorder %s182, %s184
      %p188 = scmp.eq.s32.totalorder %s22, 0
      %p189 = por %p187, %p188
      %p190 = scmp.ne.s32.totalorder %s182, %s184
      %p191 = scmp.eq.s32.totalorder %s27, 1
      %p192 = por %p190, %p191
      %p193 = scmp.ne.s32.totalorder %s184, %s185
      %p194 = scmp.eq.s32.totalorder %s27, 0
      %p195 = por %p193, %p194
      %p196 = scmp.ne.s32.totalorder %s184, %s185
      %p197 = scmp.eq.s32.totalorder %s28, 1
      %p198 = por %p196, %p197
      %p200 = scmp.ne.s32.totalorder %s185, %s199
      %p201 = scmp.eq.s32.totalorder %s28, 0
      %p202 = por %p200, %p201
      %s204 = sadd.s32 %s203, 1
      %p207 = scmp.eq.s32.totalorder %s22, 1
      %p208 = scmp.ne.s32.totalorder %s203, %s205
      %p209 = scmp.eq.s32.totalorder %s22, 0
      %p210 = por %p208, %p209
      %p211 = scmp.ne.s32.totalorder %s203, %s205
      %p212 = scmp.eq.s32.totalorder %s27, 1
      %p213 = por %p211, %p212
      %p214 = scmp.ne.s32.totalorder %s205, %s206
      %p215 = scmp.eq.s32.totalorder %s27, 0
      %p216 = por %p214, %p215
      %p217 = scmp.ne.s32.totalorder %s205, %s206
      %p218 = scmp.eq.s32.totalorder %s28, 1
      %p219 = por %p217, %p218
      %p221 = scmp.ne.s32.totalorder %s206, %s220
      %p222 = scmp.eq.s32.totalorder %s28, 0
      %p223 = por %p221, %p222
      %s225 = sadd.s32 %s224, 1
      %p228 = scmp.eq.s32.totalorder %s22, 1
      %p229 = scmp.ne.s32.totalorder %s224, %s226
      %p230 = scmp.eq.s32.totalorder %s22, 0
      %p231 = por %p229, %p230
      %p232 = scmp.ne.s32.totalorder %s224, %s226
      %p233 = scmp.eq.s32.totalorder %s27, 1
      %p234 = por %p232, %p233
      %p235 = scmp.ne.s32.totalorder %s226, %s227
      %p236 = scmp.eq.s32.totalorder %s27, 0
      %p237 = por %p235, %p236
      %p238 = scmp.ne.s32.totalorder %s226, %s227
      %p239 = scmp.eq.s32.totalorder %s28, 1
      %p240 = por %p238, %p239
      %p242 = scmp.ne.s32.totalorder %s227, %s241
      %p243 = scmp.eq.s32.totalorder %s28, 0
      %p244 = por %p242, %p243
      %s245 = ssub.s32 %s22, %s29
      %p246 = scmp.eq.s32.totalorder %s245, 0
      %s248 = sadd.s32 %s247, 1
      %s249 = scalar_select %p246, %s247, %s248
      %p252 = pneg %p246
      %p253 = scmp.eq.s32.totalorder %s22, 1
      %p254 = por %p252, %p253
      %p255 = scmp.ne.s32.totalorder %s247, %s250
      %p256 = scmp.eq.s32.totalorder %s22, 0
      %p257 = por %p255, %p256
      %p258 = scmp.ne.s32.totalorder %s247, %s250
      %p259 = scmp.eq.s32.totalorder %s27, 1
      %p260 = por %p258, %p259
      %p261 = scmp.ne.s32.totalorder %s250, %s251
      %p262 = scmp.eq.s32.totalorder %s27, 0
      %p263 = por %p261, %p262
      %p264 = scmp.ne.s32.totalorder %s250, %s251
      %p265 = scmp.eq.s32.totalorder %s28, 1
      %p266 = por %p264, %p265
      %p268 = scmp.ne.s32.totalorder %s251, %s267
      %p269 = scmp.eq.s32.totalorder %s28, 0
      %p270 = por %p268, %p269
      %p271 = scmp.le.s32.totalorder 1, %s22
      %p272 = scmp.lt.s32.totalorder %s22, 3
      %p273 = pnand %p271, %p272
      %p274 = pneg %p273
      // Predicated region
      $region9: #{deep_shallow_forward.1} parent=5 // pred_check
        _
      $region10: #{deep_shallow_forward.1} parent=5 // pred_check_branch
        %276 = sbr.rel (%p273) target = $region12
      $region11: #{deep_shallow_forward.1} parent=5 // pred_region
        %s277 = ssub.s32 %s22, 1
        // Predicated region
        $region13: #{deep_shallow_forward.1} parent=11 // pred_check
          %p278 = pneg %p69
        $region14: #{deep_shallow_forward.1} parent=11 // pred_check_branch
          %280 = sbr.rel (%p278) target = $region16
        $region15: #{deep_shallow_forward.1} parent=11 // pred_region
          %282 = vsyncadd [#allocation4], 0
          %s283 = sshll.u32 %s1, 4
          %s284 = int_to_ptr.hbm [resolvable:$true] %s283
          %s285 = sshll.u32 [#allocation3], 4
          %s286 = int_to_ptr.vmem [resolvable:$true] %s285
          %291 = dma.hbm_to_vmem [thread:$0]  %s284, 6912, %s286, [#allocation4], 256, 256, 16
        $region16: #{deep_shallow_forward.1} parent=11 // pred_fallthru
          _
        // Predicated region
        $region17: #{deep_shallow_forward.1} parent=11 // pred_check
          %p292 = pneg %p90
        $region18: #{deep_shallow_forward.1} parent=11 // pred_check_branch
          %294 = sbr.rel (%p292) target = $region20
        $region19: #{deep_shallow_forward.1} parent=11 // pred_region
          %296 = vsyncadd [#allocation7], 0
          %s298 = sshll.u32 %s2, 4
          %s299 = int_to_ptr.hbm [resolvable:$true] %s298
          %s300 = sshll.u32 [#allocation6], 4
          %s301 = int_to_ptr.vmem [resolvable:$true] %s300
          %303 = dma.hbm_to_vmem [thread:$0]  %s299, 64, %s301, [#allocation7]
        $region20: #{deep_shallow_forward.1} parent=11 // pred_fallthru
          _
        // Predicated region
        $region21: #{deep_shallow_forward.1} parent=11 // pred_check
          %p304 = pneg %p111
        $region22: #{deep_shallow_forward.1} parent=11 // pred_check_branch
          %306 = sbr.rel (%p304) target = $region24
        $region23: #{deep_shallow_forward.1} parent=11 // pred_region
          %308 = vsyncadd [#allocation7], 0
          %s309 = sshll.u32 %s3, 4
          %s310 = int_to_ptr.hbm [resolvable:$true] %s309
          %s311 = sshll.u32 [#allocation8], 4
          %s312 = int_to_ptr.vmem [resolvable:$true] %s311
          %317 = dma.hbm_to_vmem [thread:$0]  %s310, 49152, %s312, [#allocation7], 256, 256, 16
        $region24: #{deep_shallow_forward.1} parent=11 // pred_fallthru
          _
        // Predicated region
        $region25: #{deep_shallow_forward.1} parent=11 // pred_check
          %p318 = pneg %p132
        $region26: #{deep_shallow_forward.1} parent=11 // pred_check_branch
          %320 = sbr.rel (%p318) target = $region28
        $region27: #{deep_shallow_forward.1} parent=11 // pred_region
          %322 = vsyncadd [#allocation10], 0
          %s324 = sshll.u32 %s4, 4
          %s325 = int_to_ptr.hbm [resolvable:$true] %s324
          %s326 = sshll.u32 [#allocation9], 4
          %s327 = int_to_ptr.vmem [resolvable:$true] %s326
          %329 = dma.hbm_to_vmem [thread:$0]  %s325, 64, %s327, [#allocation10]
        $region28: #{deep_shallow_forward.1} parent=11 // pred_fallthru
          _
        // Predicated region
        $region29: #{deep_shallow_forward.1} parent=11 // pred_check
          %p330 = pneg %p153
        $region30: #{deep_shallow_forward.1} parent=11 // pred_check_branch
          %332 = sbr.rel (%p330) target = $region32
        $region31: #{deep_shallow_forward.1} parent=11 // pred_region
          _
        $region32: #{deep_shallow_forward.1} parent=11 // pred_fallthru
          _
        // Predicated region
        $region33: #{deep_shallow_forward.1} parent=11 // pred_check
          %p333 = pneg %p174
        $region34: #{deep_shallow_forward.1} parent=11 // pred_check_branch
          %335 = sbr.rel (%p333) target = $region36
        $region35: #{deep_shallow_forward.1} parent=11 // pred_region
          _
        $region36: #{deep_shallow_forward.1} parent=11 // pred_fallthru
          _
        // Predicated region
        $region37: #{deep_shallow_forward.1} parent=11 // pred_check
          %p336 = pneg %p195
        $region38: #{deep_shallow_forward.1} parent=11 // pred_check_branch
          %338 = sbr.rel (%p336) target = $region40
        $region39: #{deep_shallow_forward.1} parent=11 // pred_region
          _
        $region40: #{deep_shallow_forward.1} parent=11 // pred_fallthru
          _
        // Predicated region
        $region41: #{deep_shallow_forward.1} parent=11 // pred_check
          %p339 = pneg %p216
        $region42: #{deep_shallow_forward.1} parent=11 // pred_check_branch
          %341 = sbr.rel (%p339) target = $region44
        $region43: #{deep_shallow_forward.1} parent=11 // pred_region
          _
        $region44: #{deep_shallow_forward.1} parent=11 // pred_fallthru
          _
        // Predicated region
        $region45: #{deep_shallow_forward.1} parent=11 // pred_check
          %p342 = pneg %p237
        $region46: #{deep_shallow_forward.1} parent=11 // pred_check_branch
          %344 = sbr.rel (%p342) target = $region48
        $region47: #{deep_shallow_forward.1} parent=11 // pred_region
          %346 = vsyncadd [#allocation10], 0
          %s348 = sshll.u32 %s9, 4
          %s349 = int_to_ptr.hbm [resolvable:$true] %s348
          %s350 = sshll.u32 [#allocation11], 4
          %s351 = int_to_ptr.vmem [resolvable:$true] %s350
          %353 = dma.hbm_to_vmem [thread:$0]  %s349, 16, %s351, [#allocation10]
        $region48: #{deep_shallow_forward.1} parent=11 // pred_fallthru
          _
      $region12: #{deep_shallow_forward.1} parent=5 // pred_fallthru
        _
      %p354 = scmp.lt.s32.totalorder %s22, 2
      // Predicated region
      $region49: #{deep_shallow_forward.1} parent=5 // pred_check
        %p355 = pneg %p354
      $region50: #{deep_shallow_forward.1} parent=5 // pred_check_branch
        %357 = sbr.rel (%p355) target = $region52
      $region51: #{deep_shallow_forward.1} parent=5 // pred_region
        // Predicated region
        $region53: #{deep_shallow_forward.1} parent=51 // pred_check
          %p358 = pneg %p42
        $region54: #{deep_shallow_forward.1} parent=51 // pred_check_branch
          %360 = sbr.rel (%p358) target = $region56
        $region55: #{deep_shallow_forward.1} parent=51 // pred_region
          %p361 = scmp.lt.s32.totalorder %s22, 1
          %s362 = scalar_select %p361, %s22, 1
          %s363 = smul.addr %s362, 3
          %s364 = smul.addr %s363, 8
          %s365 = scalar_lea.vmem %s0, %s364
        $region56: #{deep_shallow_forward.1} parent=51 // pred_fallthru
          _
      $region52: #{deep_shallow_forward.1} parent=5 // pred_fallthru
        _
      %p366 = scmp.le.s32.totalorder 1, %s22
      %p367 = scmp.lt.s32.totalorder %s22, 3
      %p368 = pnand %p366, %p367
      %p369 = pneg %p368
      // Predicated region
      $region57: #{deep_shallow_forward.1} parent=5 // pred_check
        _
      $region58: #{deep_shallow_forward.1} parent=5 // pred_check_branch
        %371 = sbr.rel (%p368) target = $region60
      $region59: #{deep_shallow_forward.1} parent=5 // pred_region
        %s372 = ssub.s32 %s22, 1
        // Predicated region
        $region61: #{deep_shallow_forward.1} parent=59 // pred_check
          %p373 = pneg %p69
        $region62: #{deep_shallow_forward.1} parent=59 // pred_check_branch
          %375 = sbr.rel (%p373) target = $region64
        $region63: #{deep_shallow_forward.1} parent=59 // pred_region
          %377 = dma.done [#allocation4], 6912
        $region64: #{deep_shallow_forward.1} parent=59 // pred_fallthru
          _
        // Predicated region
        $region65: #{deep_shallow_forward.1} parent=59 // pred_check
          %p378 = pneg %p90
        $region66: #{deep_shallow_forward.1} parent=59 // pred_check_branch
          %380 = sbr.rel (%p378) target = $region68
        $region67: #{deep_shallow_forward.1} parent=59 // pred_region
          %382 = dma.done [#allocation7], 64
        $region68: #{deep_shallow_forward.1} parent=59 // pred_fallthru
          _
        // Predicated region
        $region69: #{deep_shallow_forward.1} parent=59 // pred_check
          %p383 = pneg %p111
        $region70: #{deep_shallow_forward.1} parent=59 // pred_check_branch
          %385 = sbr.rel (%p383) target = $region72
        $region71: #{deep_shallow_forward.1} parent=59 // pred_region
          %387 = dma.done [#allocation7], 49152
        $region72: #{deep_shallow_forward.1} parent=59 // pred_fallthru
          _
        // Predicated region
        $region73: #{deep_shallow_forward.1} parent=59 // pred_check
          %p388 = pneg %p132
        $region74: #{deep_shallow_forward.1} parent=59 // pred_check_branch
          %390 = sbr.rel (%p388) target = $region76
        $region75: #{deep_shallow_forward.1} parent=59 // pred_region
          %392 = dma.done [#allocation10], 64
        $region76: #{deep_shallow_forward.1} parent=59 // pred_fallthru
          _
        // Predicated region
        $region77: #{deep_shallow_forward.1} parent=59 // pred_check
          %p393 = pneg %p237
        $region78: #{deep_shallow_forward.1} parent=59 // pred_check_branch
          %395 = sbr.rel (%p393) target = $region80
        $region79: #{deep_shallow_forward.1} parent=59 // pred_region
          %397 = dma.done [#allocation10], 16
        $region80: #{deep_shallow_forward.1} parent=59 // pred_fallthru
          _
        %p398 = scmp.lt.s32.totalorder %s27, 1
        %s399 = scalar_select %p398, %s27, 1
        %s400 = smul.addr %s399, 3
        %s401 = smul.addr %s400, 8
        %s402 = scalar_lea.vmem %s0, %s401
        %p403 = pneg %p48
        %p404 = pneg %p45
        %p405 = pneg %p69
        %p406 = pneg %p66
        %p407 = pneg %p90
        %p408 = pneg %p87
        %p409 = pneg %p111
        %p410 = pneg %p108
        %p411 = pneg %p132
        %p412 = pneg %p129
        %p413 = pneg %p153
        %p414 = pneg %p150
        %p415 = pneg %p174
        %p416 = pneg %p171
        %p417 = pneg %p195
        %p418 = pneg %p192
        %p419 = pneg %p216
        %p420 = pneg %p213
        %p421 = pneg %p237
        %p422 = pneg %p234
        %p423 = pneg %p263
        %p424 = pneg %p260
        %s425 = sand.u32 %s250, 1
        %s426 = scalar_lea.sflag [#allocation5], %s425
        %s427 = sand.u32 %s250, 1
        %s428 = scalar_lea.vmem [#allocation12], %s427
        %p429 = scmp.lt.s32.totalorder %s27, 1
        %s430 = scalar_select %p429, %s27, 1
        %s431 = smul.addr %s430, 3
        %s432 = smul.addr %s431, 8
        %s433 = scalar_lea.vmem %s0, %s432
        %v435 = vld [vmem:[%s433] sm:$0xff]
        %v436 = vld [vmem:[%s433 + $0x8] sm:$0xff]
        %v437 = vpack.c.bf16 %v436, %v435
        %v438 = vld [vmem:[#allocation3] sm:$0xff]
        %v439 = vld [vmem:[#allocation3 + $0x8] sm:$0xff]
        %v440 = vld [vmem:[#allocation3 + $0x10] sm:$0xff]
        %v441 = vld [vmem:[#allocation3 + $0x18] sm:$0xff]
        %v442 = vld [vmem:[#allocation3 + $0x20] sm:$0xff]
        %v443 = vld [vmem:[#allocation3 + $0x28] sm:$0xff]
        %v444 = vld [vmem:[#allocation3 + $0x30] sm:$0xff]
        %v445 = vld [vmem:[#allocation3 + $0x38] sm:$0xff]
        %v446 = vld [vmem:[#allocation3 + $0x40] sm:$0xff]
        %v447 = vld [vmem:[#allocation3 + $0x48] sm:$0xff]
        %v448 = vld [vmem:[#allocation3 + $0x50] sm:$0xff]
        %v449 = vld [vmem:[#allocation3 + $0x58] sm:$0xff]
        %v450 = vld [vmem:[#allocation3 + $0x60] sm:$0xff]
        %v451 = vld [vmem:[#allocation3 + $0x68] sm:$0xff]
        %v452 = vld [vmem:[#allocation3 + $0x70] sm:$0xff]
        %v453 = vld [vmem:[#allocation3 + $0x78] sm:$0xff]
        %v454 = vld [vmem:[#allocation3 + $0x80] sm:$0xff]
        %v455 = vld [vmem:[#allocation3 + $0x88] sm:$0xff]
        %v456 = vld [vmem:[%s433 + $0x1] sm:$0xff]
        %v457 = vld [vmem:[%s433 + $0x9] sm:$0xff]
        %v458 = vpack.c.bf16 %v457, %v456
        %s459 = scalar_lea.vmem [#allocation3], 144
        %v460 = vld [vmem:[%s459] sm:$0xff]
        %v461 = vld [vmem:[%s459 + $0x8] sm:$0xff]
        %v462 = vld [vmem:[%s459 + $0x10] sm:$0xff]
        %v463 = vld [vmem:[%s459 + $0x18] sm:$0xff]
        %v464 = vld [vmem:[%s459 + $0x20] sm:$0xff]
        %v465 = vld [vmem:[%s459 + $0x28] sm:$0xff]
        %v466 = vld [vmem:[%s459 + $0x30] sm:$0xff]
        %v467 = vld [vmem:[%s459 + $0x38] sm:$0xff]
        %v468 = vld [vmem:[%s459 + $0x40] sm:$0xff]
        %v469 = vld [vmem:[%s459 + $0x48] sm:$0xff]
        %v470 = vld [vmem:[%s459 + $0x50] sm:$0xff]
        %v471 = vld [vmem:[%s459 + $0x58] sm:$0xff]
        %v472 = vld [vmem:[%s459 + $0x60] sm:$0xff]
        %v473 = vld [vmem:[%s459 + $0x68] sm:$0xff]
        %v474 = vld [vmem:[%s459 + $0x70] sm:$0xff]
        %v475 = vld [vmem:[%s459 + $0x78] sm:$0xff]
        %v476 = vld [vmem:[%s459 + $0x80] sm:$0xff]
        %v477 = vld [vmem:[%s459 + $0x88] sm:$0xff]
        %v496 = vunpack.c.l.b16 %v460
        %v497 = vunpack.c.h.b16 %v460
        %v498 = vunpack.c.l.b16 %v461
        %v499 = vunpack.c.h.b16 %v461
        %v500 = vunpack.c.l.b16 %v462
        %v501 = vunpack.c.h.b16 %v462
        %v502 = vunpack.c.l.b16 %v463
        %v503 = vunpack.c.h.b16 %v463
        %v504 = vunpack.c.l.b16 %v464
        %v505 = vunpack.c.h.b16 %v464
        %v506 = vunpack.c.l.b16 %v465
        %v507 = vunpack.c.h.b16 %v465
        %v508 = vunpack.c.l.b16 %v466
        %v509 = vunpack.c.h.b16 %v466
        %v510 = vunpack.c.l.b16 %v467
        %v511 = vunpack.c.h.b16 %v467
        %v512 = vunpack.c.l.b16 %v468
        %v513 = vunpack.c.h.b16 %v468
        %v514 = vunpack.c.l.b16 %v469
        %v515 = vunpack.c.h.b16 %v469
        %v516 = vunpack.c.l.b16 %v470
        %v517 = vunpack.c.h.b16 %v470
        %v518 = vunpack.c.l.b16 %v471
        %v519 = vunpack.c.h.b16 %v471
        %v520 = vunpack.c.l.b16 %v472
        %v521 = vunpack.c.h.b16 %v472
        %v522 = vunpack.c.l.b16 %v473
        %v523 = vunpack.c.h.b16 %v473
        %v524 = vunpack.c.l.b16 %v474
        %v525 = vunpack.c.h.b16 %v474
        %v526 = vunpack.c.l.b16 %v475
        %v527 = vunpack.c.h.b16 %v475
        %v528 = vunpack.c.l.b16 %v476
        %v529 = vunpack.c.h.b16 %v476
        %v530 = vunpack.c.l.b16 %v477
        %v531 = vunpack.c.h.b16 %v477
        %v532 = vpack.c.b16 %v500, %v496
        %v533 = vpack.c.b16 %v501, %v497
        %v534 = vpack.c.b16 %v502, %v498
        %v535 = vpack.c.b16 %v503, %v499
        %v536 = vpack.c.b16 %v508, %v504
        %v537 = vpack.c.b16 %v509, %v505
        %v538 = vpack.c.b16 %v510, %v506
        %v539 = vpack.c.b16 %v511, %v507
        %v540 = vpack.c.b16 %v516, %v512
        %v541 = vpack.c.b16 %v517, %v513
        %v542 = vpack.c.b16 %v518, %v514
        %v543 = vpack.c.b16 %v519, %v515
        %v544 = vpack.c.b16 %v524, %v520
        %v545 = vpack.c.b16 %v525, %v521
        %v546 = vpack.c.b16 %v526, %v522
        %v547 = vpack.c.b16 %v527, %v523
        %v548 = vpack.c.b16 %v528, %v528
        %v549 = vpack.c.b16 %v529, %v529
        %v550 = vpack.c.b16 %v530, %v530
        %v551 = vpack.c.b16 %v531, %v531
        %vm568 = vcmask 588800
        %v570 = vsel %vm568, %v458, 0
        %vm572 = vcmask 1043456
        %v574 = vsel %vm572, %v548, 0
        %v577 = vsel %vm572, %v549, 0
        %v580 = vsel %vm572, %v550, 0
        %v583 = vsel %vm572, %v551, 0
        %585 = vmatpush.bf16.msra.mxu0 0
        %586 = vmatpush.bf16.msra.mxu0 0
        %587 = vmatpush.bf16.msra.mxu0 0
        %588 = vmatpush.bf16.msra.mxu0 %v574
        %589 = vmatpush.bf16.msra.mxu0 %v544
        %590 = vmatpush.bf16.msra.mxu0 %v540
        %591 = vmatpush.bf16.msra.mxu0 %v536
        %592 = vmatpush.bf16.msra.mxu0 %v532
        %593 = vmatmul.bf16.gmra.mxu0 %v570
        %v594 = vpop.f32.mrf.mxu0
        %v595 = vadd.f32 0.0, %v594
        %v596 = vpop.f32.mrf.mxu0
        %v597 = vadd.f32 0.0, %v596
        %598 = vdwg.mxu0
        %599 = vmatpush.bf16.msra.mxu0 0
        %600 = vmatpush.bf16.msra.mxu0 0
        %601 = vmatpush.bf16.msra.mxu0 0
        %602 = vmatpush.bf16.msra.mxu0 %v577
        %603 = vmatpush.bf16.msra.mxu0 %v545
        %604 = vmatpush.bf16.msra.mxu0 %v541
        %605 = vmatpush.bf16.msra.mxu0 %v537
        %606 = vmatpush.bf16.msra.mxu0 %v533
        %607 = vmatmul.bf16.gmra.mxu0 %v570
        %v608 = vpop.f32.mrf.mxu0
        %v609 = vadd.f32 0.0, %v608
        %v610 = vpop.f32.mrf.mxu0
        %v611 = vadd.f32 0.0, %v610
        %612 = vdwg.mxu0
        %613 = vmatpush.bf16.msra.mxu0 0
        %614 = vmatpush.bf16.msra.mxu0 0
        %615 = vmatpush.bf16.msra.mxu0 0
        %616 = vmatpush.bf16.msra.mxu0 %v580
        %617 = vmatpush.bf16.msra.mxu0 %v546
        %618 = vmatpush.bf16.msra.mxu0 %v542
        %619 = vmatpush.bf16.msra.mxu0 %v538
        %620 = vmatpush.bf16.msra.mxu0 %v534
        %621 = vmatmul.bf16.gmra.mxu0 %v570
        %v622 = vpop.f32.mrf.mxu0
        %v623 = vadd.f32 0.0, %v622
        %v624 = vpop.f32.mrf.mxu0
        %v625 = vadd.f32 0.0, %v624
        %626 = vdwg.mxu0
        %627 = vmatpush.bf16.msra.mxu0 0
        %628 = vmatpush.bf16.msra.mxu0 0
        %629 = vmatpush.bf16.msra.mxu0 0
        %630 = vmatpush.bf16.msra.mxu0 %v583
        %631 = vmatpush.bf16.msra.mxu0 %v547
        %632 = vmatpush.bf16.msra.mxu0 %v543
        %633 = vmatpush.bf16.msra.mxu0 %v539
        %634 = vmatpush.bf16.msra.mxu0 %v535
        %635 = vmatmul.bf16.gmra.mxu0 %v570
        %v636 = vpop.f32.mrf.mxu0
        %v637 = vadd.f32 0.0, %v636
        %v638 = vpop.f32.mrf.mxu0
        %v639 = vadd.f32 0.0, %v638
        %640 = vdwg.mxu0
        %v659 = vunpack.c.l.b16 %v438
        %v660 = vunpack.c.h.b16 %v438
        %v661 = vunpack.c.l.b16 %v439
        %v662 = vunpack.c.h.b16 %v439
        %v663 = vunpack.c.l.b16 %v440
        %v664 = vunpack.c.h.b16 %v440
        %v665 = vunpack.c.l.b16 %v441
        %v666 = vunpack.c.h.b16 %v441
        %v667 = vunpack.c.l.b16 %v442
        %v668 = vunpack.c.h.b16 %v442
        %v669 = vunpack.c.l.b16 %v443
        %v670 = vunpack.c.h.b16 %v443
        %v671 = vunpack.c.l.b16 %v444
        %v672 = vunpack.c.h.b16 %v444
        %v673 = vunpack.c.l.b16 %v445
        %v674 = vunpack.c.h.b16 %v445
        %v675 = vunpack.c.l.b16 %v446
        %v676 = vunpack.c.h.b16 %v446
        %v677 = vunpack.c.l.b16 %v447
        %v678 = vunpack.c.h.b16 %v447
        %v679 = vunpack.c.l.b16 %v448
        %v680 = vunpack.c.h.b16 %v448
        %v681 = vunpack.c.l.b16 %v449
        %v682 = vunpack.c.h.b16 %v449
        %v683 = vunpack.c.l.b16 %v450
        %v684 = vunpack.c.h.b16 %v450
        %v685 = vunpack.c.l.b16 %v451
        %v686 = vunpack.c.h.b16 %v451
        %v687 = vunpack.c.l.b16 %v452
        %v688 = vunpack.c.h.b16 %v452
        %v689 = vunpack.c.l.b16 %v453
        %v690 = vunpack.c.h.b16 %v453
        %v691 = vunpack.c.l.b16 %v454
        %v692 = vunpack.c.h.b16 %v454
        %v693 = vunpack.c.l.b16 %v455
        %v694 = vunpack.c.h.b16 %v455
        %v695 = vpack.c.b16 %v663, %v659
        %v696 = vpack.c.b16 %v664, %v660
        %v697 = vpack.c.b16 %v665, %v661
        %v698 = vpack.c.b16 %v666, %v662
        %v699 = vpack.c.b16 %v671, %v667
        %v700 = vpack.c.b16 %v672, %v668
        %v701 = vpack.c.b16 %v673, %v669
        %v702 = vpack.c.b16 %v674, %v670
        %v703 = vpack.c.b16 %v679, %v675
        %v704 = vpack.c.b16 %v680, %v676
        %v705 = vpack.c.b16 %v681, %v677
        %v706 = vpack.c.b16 %v682, %v678
        %v707 = vpack.c.b16 %v687, %v683
        %v708 = vpack.c.b16 %v688, %v684
        %v709 = vpack.c.b16 %v689, %v685
        %v710 = vpack.c.b16 %v690, %v686
        %v711 = vpack.c.b16 %v691, %v691
        %v712 = vpack.c.b16 %v692, %v692
        %v713 = vpack.c.b16 %v693, %v693
        %v714 = vpack.c.b16 %v694, %v694
        %v732 = vsel %vm568, %v437, 0
        %v735 = vsel %vm572, %v711, 0
        %v738 = vsel %vm572, %v712, 0
        %v741 = vsel %vm572, %v713, 0
        %v744 = vsel %vm572, %v714, 0
        %746 = vmatpush.bf16.msra.mxu0 0
        %747 = vmatpush.bf16.msra.mxu0 0
        %748 = vmatpush.bf16.msra.mxu0 0
        %749 = vmatpush.bf16.msra.mxu0 %v735
        %750 = vmatpush.bf16.msra.mxu0 %v707
        %751 = vmatpush.bf16.msra.mxu0 %v703
        %752 = vmatpush.bf16.msra.mxu0 %v699
        %753 = vmatpush.bf16.msra.mxu0 %v695
        %754 = vmatmul.bf16.gmra.mxu0 %v732
        %v755 = vpop.f32.mrf.mxu0
        %v756 = vadd.f32 %v595, %v755
        %v757 = vpop.f32.mrf.mxu0
        %v758 = vadd.f32 %v597, %v757
        %759 = vdwg.mxu0
        %760 = vmatpush.bf16.msra.mxu0 0
        %761 = vmatpush.bf16.msra.mxu0 0
        %762 = vmatpush.bf16.msra.mxu0 0
        %763 = vmatpush.bf16.msra.mxu0 %v738
        %764 = vmatpush.bf16.msra.mxu0 %v708
        %765 = vmatpush.bf16.msra.mxu0 %v704
        %766 = vmatpush.bf16.msra.mxu0 %v700
        %767 = vmatpush.bf16.msra.mxu0 %v696
        %768 = vmatmul.bf16.gmra.mxu0 %v732
        %v769 = vpop.f32.mrf.mxu0
        %v770 = vadd.f32 %v609, %v769
        %v771 = vpop.f32.mrf.mxu0
        %v772 = vadd.f32 %v611, %v771
        %773 = vdwg.mxu0
        %774 = vmatpush.bf16.msra.mxu0 0
        %775 = vmatpush.bf16.msra.mxu0 0
        %776 = vmatpush.bf16.msra.mxu0 0
        %777 = vmatpush.bf16.msra.mxu0 %v741
        %778 = vmatpush.bf16.msra.mxu0 %v709
        %779 = vmatpush.bf16.msra.mxu0 %v705
        %780 = vmatpush.bf16.msra.mxu0 %v701
        %781 = vmatpush.bf16.msra.mxu0 %v697
        %782 = vmatmul.bf16.gmra.mxu0 %v732
        %v783 = vpop.f32.mrf.mxu0
        %v784 = vadd.f32 %v623, %v783
        %v785 = vpop.f32.mrf.mxu0
        %v786 = vadd.f32 %v625, %v785
        %787 = vdwg.mxu0
        %788 = vmatpush.bf16.msra.mxu0 0
        %789 = vmatpush.bf16.msra.mxu0 0
        %790 = vmatpush.bf16.msra.mxu0 0
        %791 = vmatpush.bf16.msra.mxu0 %v744
        %792 = vmatpush.bf16.msra.mxu0 %v710
        %793 = vmatpush.bf16.msra.mxu0 %v706
        %794 = vmatpush.bf16.msra.mxu0 %v702
        %795 = vmatpush.bf16.msra.mxu0 %v698
        %796 = vmatmul.bf16.gmra.mxu0 %v732
        %v797 = vpop.f32.mrf.mxu0
        %v798 = vadd.f32 %v637, %v797
        %v799 = vpop.f32.mrf.mxu0
        %v800 = vadd.f32 %v639, %v799
        %801 = vdwg.mxu0
        %v802 = vld [vmem:[%s433 + $0x2] sm:$0xff]
        %v803 = vld [vmem:[%s433 + $0xa] sm:$0xff]
        %v804 = vpack.c.bf16 %v803, %v802
        %s805 = scalar_lea.vmem [#allocation3], 288
        %v806 = vld [vmem:[%s805] sm:$0xff]
        %v807 = vld [vmem:[%s805 + $0x8] sm:$0xff]
        %v808 = vld [vmem:[%s805 + $0x10] sm:$0xff]
        %v809 = vld [vmem:[%s805 + $0x18] sm:$0xff]
        %v810 = vld [vmem:[%s805 + $0x20] sm:$0xff]
        %v811 = vld [vmem:[%s805 + $0x28] sm:$0xff]
        %v812 = vld [vmem:[%s805 + $0x30] sm:$0xff]
        %v813 = vld [vmem:[%s805 + $0x38] sm:$0xff]
        %v814 = vld [vmem:[%s805 + $0x40] sm:$0xff]
        %v815 = vld [vmem:[%s805 + $0x48] sm:$0xff]
        %v816 = vld [vmem:[%s805 + $0x50] sm:$0xff]
        %v817 = vld [vmem:[%s805 + $0x58] sm:$0xff]
        %v818 = vld [vmem:[%s805 + $0x60] sm:$0xff]
        %v819 = vld [vmem:[%s805 + $0x68] sm:$0xff]
        %v820 = vld [vmem:[%s805 + $0x70] sm:$0xff]
        %v821 = vld [vmem:[%s805 + $0x78] sm:$0xff]
        %v822 = vld [vmem:[%s805 + $0x80] sm:$0xff]
        %v823 = vld [vmem:[%s805 + $0x88] sm:$0xff]
        %v842 = vunpack.c.l.b16 %v806
        %v843 = vunpack.c.h.b16 %v806
        %v844 = vunpack.c.l.b16 %v807
        %v845 = vunpack.c.h.b16 %v807
        %v846 = vunpack.c.l.b16 %v808
        %v847 = vunpack.c.h.b16 %v808
        %v848 = vunpack.c.l.b16 %v809
        %v849 = vunpack.c.h.b16 %v809
        %v850 = vunpack.c.l.b16 %v810
        %v851 = vunpack.c.h.b16 %v810
        %v852 = vunpack.c.l.b16 %v811
        %v853 = vunpack.c.h.b16 %v811
        %v854 = vunpack.c.l.b16 %v812
        %v855 = vunpack.c.h.b16 %v812
        %v856 = vunpack.c.l.b16 %v813
        %v857 = vunpack.c.h.b16 %v813
        %v858 = vunpack.c.l.b16 %v814
        %v859 = vunpack.c.h.b16 %v814
        %v860 = vunpack.c.l.b16 %v815
        %v861 = vunpack.c.h.b16 %v815
        %v862 = vunpack.c.l.b16 %v816
        %v863 = vunpack.c.h.b16 %v816
        %v864 = vunpack.c.l.b16 %v817
        %v865 = vunpack.c.h.b16 %v817
        %v866 = vunpack.c.l.b16 %v818
        %v867 = vunpack.c.h.b16 %v818
        %v868 = vunpack.c.l.b16 %v819
        %v869 = vunpack.c.h.b16 %v819
        %v870 = vunpack.c.l.b16 %v820
        %v871 = vunpack.c.h.b16 %v820
        %v872 = vunpack.c.l.b16 %v821
        %v873 = vunpack.c.h.b16 %v821
        %v874 = vunpack.c.l.b16 %v822
        %v875 = vunpack.c.h.b16 %v822
        %v876 = vunpack.c.l.b16 %v823
        %v877 = vunpack.c.h.b16 %v823
        %v878 = vpack.c.b16 %v846, %v842
        %v879 = vpack.c.b16 %v847, %v843
        %v880 = vpack.c.b16 %v848, %v844
        %v881 = vpack.c.b16 %v849, %v845
        %v882 = vpack.c.b16 %v854, %v850
        %v883 = vpack.c.b16 %v855, %v851
        %v884 = vpack.c.b16 %v856, %v852
        %v885 = vpack.c.b16 %v857, %v853
        %v886 = vpack.c.b16 %v862, %v858
        %v887 = vpack.c.b16 %v863, %v859
        %v888 = vpack.c.b16 %v864, %v860
        %v889 = vpack.c.b16 %v865, %v861
        %v890 = vpack.c.b16 %v870, %v866
        %v891 = vpack.c.b16 %v871, %v867
        %v892 = vpack.c.b16 %v872, %v868
        %v893 = vpack.c.b16 %v873, %v869
        %v894 = vpack.c.b16 %v874, %v874
        %v895 = vpack.c.b16 %v875, %v875
        %v896 = vpack.c.b16 %v876, %v876
        %v897 = vpack.c.b16 %v877, %v877
        %v915 = vsel %vm568, %v804, 0
        %v918 = vsel %vm572, %v894, 0
        %v921 = vsel %vm572, %v895, 0
        %v924 = vsel %vm572, %v896, 0
        %v927 = vsel %vm572, %v897, 0
        %929 = vmatpush.bf16.msra.mxu0 0
        %930 = vmatpush.bf16.msra.mxu0 0
        %931 = vmatpush.bf16.msra.mxu0 0
        %932 = vmatpush.bf16.msra.mxu0 %v918
        %933 = vmatpush.bf16.msra.mxu0 %v890
        %934 = vmatpush.bf16.msra.mxu0 %v886
        %935 = vmatpush.bf16.msra.mxu0 %v882
        %936 = vmatpush.bf16.msra.mxu0 %v878
        %937 = vmatmul.bf16.gmra.mxu0 %v915
        %v938 = vpop.f32.mrf.mxu0
        %v939 = vadd.f32 0.0, %v938
        %v940 = vpop.f32.mrf.mxu0
        %v941 = vadd.f32 0.0, %v940
        %942 = vdwg.mxu0
        %943 = vmatpush.bf16.msra.mxu0 0
        %944 = vmatpush.bf16.msra.mxu0 0
        %945 = vmatpush.bf16.msra.mxu0 0
        %946 = vmatpush.bf16.msra.mxu0 %v921
        %947 = vmatpush.bf16.msra.mxu0 %v891
        %948 = vmatpush.bf16.msra.mxu0 %v887
        %949 = vmatpush.bf16.msra.mxu0 %v883
        %950 = vmatpush.bf16.msra.mxu0 %v879
        %951 = vmatmul.bf16.gmra.mxu0 %v915
        %v952 = vpop.f32.mrf.mxu0
        %v953 = vadd.f32 0.0, %v952
        %v954 = vpop.f32.mrf.mxu0
        %v955 = vadd.f32 0.0, %v954
        %956 = vdwg.mxu0
        %957 = vmatpush.bf16.msra.mxu0 0
        %958 = vmatpush.bf16.msra.mxu0 0
        %959 = vmatpush.bf16.msra.mxu0 0
        %960 = vmatpush.bf16.msra.mxu0 %v924
        %961 = vmatpush.bf16.msra.mxu0 %v892
        %962 = vmatpush.bf16.msra.mxu0 %v888
        %963 = vmatpush.bf16.msra.mxu0 %v884
        %964 = vmatpush.bf16.msra.mxu0 %v880
        %965 = vmatmul.bf16.gmra.mxu0 %v915
        %v966 = vpop.f32.mrf.mxu0
        %v967 = vadd.f32 0.0, %v966
        %v968 = vpop.f32.mrf.mxu0
        %v969 = vadd.f32 0.0, %v968
        %970 = vdwg.mxu0
        %971 = vmatpush.bf16.msra.mxu0 0
        %972 = vmatpush.bf16.msra.mxu0 0
        %973 = vmatpush.bf16.msra.mxu0 0
        %974 = vmatpush.bf16.msra.mxu0 %v927
        %975 = vmatpush.bf16.msra.mxu0 %v893
        %976 = vmatpush.bf16.msra.mxu0 %v889
        %977 = vmatpush.bf16.msra.mxu0 %v885
        %978 = vmatpush.bf16.msra.mxu0 %v881
        %979 = vmatmul.bf16.gmra.mxu0 %v915
        %v980 = vpop.f32.mrf.mxu0
        %v981 = vadd.f32 0.0, %v980
        %v982 = vpop.f32.mrf.mxu0
        %v983 = vadd.f32 0.0, %v982
        %984 = vdwg.mxu0
        %v985 = vadd.f32 %v756, %v939
        %v986 = vadd.f32 %v770, %v953
        %v987 = vadd.f32 %v784, %v967
        %v988 = vadd.f32 %v798, %v981
        %v989 = vadd.f32 %v758, %v941
        %v990 = vadd.f32 %v772, %v955
        %v991 = vadd.f32 %v786, %v969
        %v992 = vadd.f32 %v800, %v983
        %v993 = vld [vmem:[#allocation6] sm:$0xf]
        %v995 = vperm.slane %v993, 0
        %v996 = vperm.slane %v993, 1
        %v997 = vperm.slane %v993, 2
        %v998 = vperm.slane %v993, 3
        %v1003 = vadd.f32 %v985, %v995
        %v1004 = vadd.f32 %v986, %v996
        %v1005 = vadd.f32 %v987, %v997
        %v1006 = vadd.f32 %v988, %v998
        %v1007 = vadd.f32 %v989, %v995
        %v1008 = vadd.f32 %v990, %v996
        %v1009 = vadd.f32 %v991, %v997
        %v1010 = vadd.f32 %v992, %v998
        %v1011 = vmax.f32 %v1003, 0.0
        %v1012 = vmax.f32 %v1004, 0.0
        %v1013 = vmax.f32 %v1005, 0.0
        %v1014 = vmax.f32 %v1006, 0.0
        %v1015 = vmax.f32 %v1007, 0.0
        %v1016 = vmax.f32 %v1008, 0.0
        %v1017 = vmax.f32 %v1009, 0.0
        %v1018 = vmax.f32 %v1010, 0.0
        %v1019 = vadd.f32 %v1013, %v1017
        %v1020 = vrot.slane %v1019, 4
        %v1021 = vadd.f32 %v1019, %v1020
        %v1022 = vrot.slane %v1021, 2
        %v1023 = vadd.f32 %v1021, %v1022
        %v1024 = vrot.slane %v1023, 1
        %v1025 = vadd.f32 %v1023, %v1024
        %v1026 = vadd.f32 %v1014, %v1018
        %v1027 = vrot.slane %v1026, 4
        %v1028 = vadd.f32 %v1026, %v1027
        %v1029 = vrot.slane %v1028, 2
        %v1030 = vadd.f32 %v1028, %v1029
        %v1031 = vrot.slane %v1030, 1
        %v1032 = vadd.f32 %v1030, %v1031
        %v1033 = vld [vmem:[%s5] sm:$0xff]
        %v1034 = vld [vmem:[%s5 + $0x8] sm:$0xff]
        %v1035 = vld [vmem:[%s5 + $0x10] sm:$0xff]
        %v1036 = vld [vmem:[%s5 + $0x18] sm:$0xff]
        %v1037 = vld [vmem:[%s5 + $0x20] sm:$0xff]
        %v1038 = vld [vmem:[%s5 + $0x28] sm:$0xff]
        %v1039 = vld [vmem:[%s5 + $0x30] sm:$0xff]
        %v1040 = vld [vmem:[%s5 + $0x38] sm:$0xff]
        %v1041 = vld [vmem:[%s5 + $0x40] sm:$0xff]
        %v1042 = vld [vmem:[%s5 + $0x48] sm:$0xff]
        %v1043 = vld [vmem:[%s5 + $0x50] sm:$0xff]
        %v1044 = vld [vmem:[%s5 + $0x58] sm:$0xff]
        %v1045 = vld [vmem:[%s5 + $0x60] sm:$0xff]
        %v1046 = vld [vmem:[%s5 + $0x68] sm:$0xff]
        %v1047 = vld [vmem:[%s5 + $0x70] sm:$0xff]
        %v1048 = vld [vmem:[%s5 + $0x78] sm:$0xff]
        %v1049 = vld [vmem:[%s5 + $0x80] sm:$0xff]
        %v1050 = vld [vmem:[%s5 + $0x88] sm:$0xff]
        %v1051 = vld [vmem:[%s5 + $0x90] sm:$0xff]
        %v1052 = vld [vmem:[%s5 + $0x98] sm:$0xff]
        %v1053 = vld [vmem:[%s5 + $0xa0] sm:$0xff]
        %v1054 = vld [vmem:[%s5 + $0xa8] sm:$0xff]
        %v1055 = vld [vmem:[%s5 + $0xb0] sm:$0xff]
        %v1056 = vld [vmem:[%s5 + $0xb8] sm:$0xff]
        %v1057 = vld [vmem:[%s5 + $0xc0] sm:$0xff]
        %v1058 = vld [vmem:[%s5 + $0xc8] sm:$0xff]
        %v1059 = vld [vmem:[%s5 + $0xd0] sm:$0xff]
        %v1060 = vld [vmem:[%s5 + $0xd8] sm:$0xff]
        %v1061 = vld [vmem:[%s5 + $0xe0] sm:$0xff]
        %v1062 = vld [vmem:[%s5 + $0xe8] sm:$0xff]
        %v1063 = vld [vmem:[%s5 + $0xf0] sm:$0xff]
        %v1064 = vld [vmem:[%s5 + $0xf8] sm:$0xff]
        %1065 = vmatpush.msra.mxu0 %v1048
        %1066 = vmatpush.msra.mxu0 %v1047
        %1067 = vmatpush.msra.mxu0 %v1046
        %1068 = vmatpush.msra.mxu0 %v1045
        %1069 = vmatpush.msra.mxu0 %v1044
        %1070 = vmatpush.msra.mxu0 %v1043
        %1071 = vmatpush.msra.mxu0 %v1042
        %1072 = vmatpush.msra.mxu0 %v1041
        %1073 = vmatpush.msra.mxu0 %v1040
        %1074 = vmatpush.msra.mxu0 %v1039
        %1075 = vmatpush.msra.mxu0 %v1038
        %1076 = vmatpush.msra.mxu0 %v1037
        %1077 = vmatpush.msra.mxu0 %v1036
        %1078 = vmatpush.msra.mxu0 %v1035
        %1079 = vmatpush.msra.mxu0 %v1034
        %1080 = vmatpush.msra.mxu0 %v1033
        %1081 = vmatmul.f32.gmra.mxu0 %v1025
        %v1082 = vpop.f32.mrf.mxu0
        %v1083 = vadd.f32 0.0, %v1082
        %1084 = vdwg.mxu0
        %1085 = vmatpush.msra.mxu0 %v1064
        %1086 = vmatpush.msra.mxu0 %v1063
        %1087 = vmatpush.msra.mxu0 %v1062
        %1088 = vmatpush.msra.mxu0 %v1061
        %1089 = vmatpush.msra.mxu0 %v1060
        %1090 = vmatpush.msra.mxu0 %v1059
        %1091 = vmatpush.msra.mxu0 %v1058
        %1092 = vmatpush.msra.mxu0 %v1057
        %1093 = vmatpush.msra.mxu0 %v1056
        %1094 = vmatpush.msra.mxu0 %v1055
        %1095 = vmatpush.msra.mxu0 %v1054
        %1096 = vmatpush.msra.mxu0 %v1053
        %1097 = vmatpush.msra.mxu0 %v1052
        %1098 = vmatpush.msra.mxu0 %v1051
        %1099 = vmatpush.msra.mxu0 %v1050
        %1100 = vmatpush.msra.mxu0 %v1049
        %1101 = vmatmul.f32.gmra.mxu0 %v1032
        %v1102 = vpop.f32.mrf.mxu0
        %v1103 = vadd.f32 %v1083, %v1102
        %1104 = vdwg.mxu0
        %v1105 = vmul.f32 %v1103, 0.00390625
        %1106 = vst [vmem:[#allocation2] sm:$0xff] 0.0
        %1107 = vst [vmem:[#allocation2 + $0x8] sm:$0xff] 0.0
        %1108 = vst [vmem:[#allocation2 + $0x10] sm:$0xff] 0.0
        %1109 = vst [vmem:[#allocation2 + $0x18] sm:$0xff] 0.0
        %1110 = vst [vmem:[#allocation2 + $0x20] sm:$0xff] 0.0
        %1111 = vst [vmem:[#allocation2 + $0x28] sm:$0xff] 0.0
        %1112 = vst [vmem:[#allocation2 + $0x30] sm:$0xff] 0.0
        %1113 = vst [vmem:[#allocation2 + $0x38] sm:$0xff] 0.0
        %1114 = vst [vmem:[#allocation2 + $0x40] sm:$0xff] 0.0
        %1115 = vst [vmem:[#allocation2 + $0x48] sm:$0xff] 0.0
        %1116 = vst [vmem:[#allocation2 + $0x50] sm:$0xff] 0.0
        %1117 = vst [vmem:[#allocation2 + $0x58] sm:$0xff] 0.0
        %1118 = vst [vmem:[#allocation2 + $0x60] sm:$0xff] 0.0
        %1119 = vst [vmem:[#allocation2 + $0x68] sm:$0xff] 0.0
        %1120 = vst [vmem:[#allocation2 + $0x70] sm:$0xff] 0.0
        %1121 = vst [vmem:[#allocation2 + $0x78] sm:$0xff] 0.0
        %1122 = vst [vmem:[#allocation2 + $0x28] sm:$0xff] %v1011
        %1123 = vst [vmem:[#allocation2 + $0x30] sm:$0xff] %v1012
        %1124 = vst [vmem:[#allocation2 + $0x48] sm:$0xff] %v1015
        %1125 = vst [vmem:[#allocation2 + $0x50] sm:$0xff] %v1016
        %v1126 = vld [vmem:[#allocation2] sm:$0x80]
        %v1127 = vld [vmem:[#allocation2 + $0x8] sm:$0x80]
        %v1128 = vld [vmem:[#allocation2 + $0x10] sm:$0x80]
        %v1129 = vld [vmem:[#allocation2 + $0x18] sm:$0x80]
        %v1130 = vld [vmem:[#allocation2 + $0x20] sm:$0xff]
        %v1131 = vld [vmem:[#allocation2 + $0x28] sm:$0xff]
        %v1132 = vld [vmem:[#allocation2 + $0x30] sm:$0xff]
        %v1133 = vld [vmem:[#allocation2 + $0x38] sm:$0xff]
        %v1134 = vld [vmem:[#allocation2 + $0x40] sm:$0x7f]
        %v1135 = vld [vmem:[#allocation2 + $0x48] sm:$0x7f]
        %v1136 = vld [vmem:[#allocation2 + $0x50] sm:$0x7f]
        %v1137 = vld [vmem:[#allocation2 + $0x58] sm:$0x7f]
        %v1138 = vpack.c.bf16 %v1130, %v1126
        %v1139 = vpack.c.bf16 %v1131, %v1127
        %v1140 = vpack.c.bf16 %v1132, %v1128
        %v1141 = vpack.c.bf16 %v1133, %v1129
        %v1142 = vpack.c.bf16 %v1134, %v1134
        %v1143 = vpack.c.bf16 %v1135, %v1135
        %v1144 = vpack.c.bf16 %v1136, %v1136
        %v1145 = vpack.c.bf16 %v1137, %v1137
        %v1146 = vld [vmem:[#allocation8] sm:$0xff]
        %v1147 = vld [vmem:[#allocation8 + $0x8] sm:$0xff]
        %v1148 = vld [vmem:[#allocation8 + $0x10] sm:$0xff]
        %v1149 = vld [vmem:[#allocation8 + $0x18] sm:$0xff]
        %v1150 = vld [vmem:[#allocation8 + $0x20] sm:$0xff]
        %v1151 = vld [vmem:[#allocation8 + $0x28] sm:$0xff]
        %v1152 = vld [vmem:[#allocation8 + $0x30] sm:$0xff]
        %v1153 = vld [vmem:[#allocation8 + $0x38] sm:$0xff]
        %v1154 = vld [vmem:[#allocation8 + $0x40] sm:$0xff]
        %v1155 = vld [vmem:[#allocation8 + $0x48] sm:$0xff]
        %v1156 = vld [vmem:[#allocation8 + $0x50] sm:$0xff]
        %v1157 = vld [vmem:[#allocation8 + $0x58] sm:$0xff]
        %v1158 = vld [vmem:[#allocation8 + $0x60] sm:$0xff]
        %v1159 = vld [vmem:[#allocation8 + $0x68] sm:$0xff]
        %v1160 = vld [vmem:[#allocation8 + $0x70] sm:$0xff]
        %v1161 = vld [vmem:[#allocation8 + $0x78] sm:$0xff]
        %v1162 = vld [vmem:[#allocation8 + $0x80] sm:$0xff]
        %v1163 = vld [vmem:[#allocation8 + $0x88] sm:$0xff]
        %v1164 = vld [vmem:[#allocation8 + $0x90] sm:$0xff]
        %v1165 = vld [vmem:[#allocation8 + $0x98] sm:$0xff]
        %v1166 = vld [vmem:[#allocation8 + $0xa0] sm:$0xff]
        %v1167 = vld [vmem:[#allocation8 + $0xa8] sm:$0xff]
        %v1168 = vld [vmem:[#allocation8 + $0xb0] sm:$0xff]
        %v1169 = vld [vmem:[#allocation8 + $0xb8] sm:$0xff]
        %v1170 = vld [vmem:[#allocation8 + $0xc0] sm:$0xff]
        %v1171 = vld [vmem:[#allocation8 + $0xc8] sm:$0xff]
        %v1172 = vld [vmem:[#allocation8 + $0xd0] sm:$0xff]
        %v1173 = vld [vmem:[#allocation8 + $0xd8] sm:$0xff]
        %v1174 = vld [vmem:[#allocation8 + $0xe0] sm:$0xff]
        %v1175 = vld [vmem:[#allocation8 + $0xe8] sm:$0xff]
        %v1176 = vld [vmem:[#allocation8 + $0xf0] sm:$0xff]
        %v1177 = vld [vmem:[#allocation8 + $0xf8] sm:$0xff]
        %v1178 = vld [vmem:[#allocation8 + $0x100] sm:$0xff]
        %v1179 = vld [vmem:[#allocation8 + $0x108] sm:$0xff]
        %v1180 = vld [vmem:[#allocation8 + $0x110] sm:$0xff]
        %v1181 = vld [vmem:[#allocation8 + $0x118] sm:$0xff]
        %v1182 = vld [vmem:[#allocation8 + $0x120] sm:$0xff]
        %v1183 = vld [vmem:[#allocation8 + $0x128] sm:$0xff]
        %v1184 = vld [vmem:[#allocation8 + $0x130] sm:$0xff]
        %v1185 = vld [vmem:[#allocation8 + $0x138] sm:$0xff]
        %v1186 = vld [vmem:[#allocation8 + $0x140] sm:$0xff]
        %v1187 = vld [vmem:[#allocation8 + $0x148] sm:$0xff]
        %v1188 = vld [vmem:[#allocation8 + $0x150] sm:$0xff]
        %v1189 = vld [vmem:[#allocation8 + $0x158] sm:$0xff]
        %v1190 = vld [vmem:[#allocation8 + $0x160] sm:$0xff]
        %v1191 = vld [vmem:[#allocation8 + $0x168] sm:$0xff]
        %v1192 = vld [vmem:[#allocation8 + $0x170] sm:$0xff]
        %v1193 = vld [vmem:[#allocation8 + $0x178] sm:$0xff]
        %v1194 = vld [vmem:[#allocation8 + $0x180] sm:$0xff]
        %v1195 = vld [vmem:[#allocation8 + $0x188] sm:$0xff]
        %v1196 = vld [vmem:[#allocation8 + $0x190] sm:$0xff]
        %v1197 = vld [vmem:[#allocation8 + $0x198] sm:$0xff]
        %v1198 = vld [vmem:[#allocation8 + $0x1a0] sm:$0xff]
        %v1199 = vld [vmem:[#allocation8 + $0x1a8] sm:$0xff]
        %v1200 = vld [vmem:[#allocation8 + $0x1b0] sm:$0xff]
        %v1201 = vld [vmem:[#allocation8 + $0x1b8] sm:$0xff]
        %v1202 = vld [vmem:[#allocation8 + $0x1c0] sm:$0xff]
        %v1203 = vld [vmem:[#allocation8 + $0x1c8] sm:$0xff]
        %v1204 = vld [vmem:[#allocation8 + $0x1d0] sm:$0xff]
        %v1205 = vld [vmem:[#allocation8 + $0x1d8] sm:$0xff]
        %v1206 = vld [vmem:[#allocation8 + $0x1e0] sm:$0xff]
        %v1207 = vld [vmem:[#allocation8 + $0x1e8] sm:$0xff]
        %v1208 = vld [vmem:[#allocation8 + $0x1f0] sm:$0xff]
        %v1209 = vld [vmem:[#allocation8 + $0x1f8] sm:$0xff]
        %v1210 = vld [vmem:[#allocation8 + $0x200] sm:$0xff]
        %v1211 = vld [vmem:[#allocation8 + $0x208] sm:$0xff]
        %v1212 = vld [vmem:[#allocation8 + $0x210] sm:$0xff]
        %v1213 = vld [vmem:[#allocation8 + $0x218] sm:$0xff]
        %v1214 = vld [vmem:[#allocation8 + $0x220] sm:$0xff]
        %v1215 = vld [vmem:[#allocation8 + $0x228] sm:$0xff]
        %v1216 = vld [vmem:[#allocation8 + $0x230] sm:$0xff]
        %v1217 = vld [vmem:[#allocation8 + $0x238] sm:$0xff]
        %v1218 = vld [vmem:[#allocation8 + $0x240] sm:$0xff]
        %v1219 = vld [vmem:[#allocation8 + $0x248] sm:$0xff]
        %v1220 = vld [vmem:[#allocation8 + $0x250] sm:$0xff]
        %v1221 = vld [vmem:[#allocation8 + $0x258] sm:$0xff]
        %v1222 = vld [vmem:[#allocation8 + $0x260] sm:$0xff]
        %v1223 = vld [vmem:[#allocation8 + $0x268] sm:$0xff]
        %v1224 = vld [vmem:[#allocation8 + $0x270] sm:$0xff]
        %v1225 = vld [vmem:[#allocation8 + $0x278] sm:$0xff]
        %v1226 = vld [vmem:[#allocation8 + $0x280] sm:$0xff]
        %v1227 = vld [vmem:[#allocation8 + $0x288] sm:$0xff]
        %v1228 = vld [vmem:[#allocation8 + $0x290] sm:$0xff]
        %v1229 = vld [vmem:[#allocation8 + $0x298] sm:$0xff]
        %v1230 = vld [vmem:[#allocation8 + $0x2a0] sm:$0xff]
        %v1231 = vld [vmem:[#allocation8 + $0x2a8] sm:$0xff]
        %v1232 = vld [vmem:[#allocation8 + $0x2b0] sm:$0xff]
        %v1233 = vld [vmem:[#allocation8 + $0x2b8] sm:$0xff]
        %v1234 = vld [vmem:[#allocation8 + $0x2c0] sm:$0xff]
        %v1235 = vld [vmem:[#allocation8 + $0x2c8] sm:$0xff]
        %v1236 = vld [vmem:[#allocation8 + $0x2d0] sm:$0xff]
        %v1237 = vld [vmem:[#allocation8 + $0x2d8] sm:$0xff]
        %v1238 = vld [vmem:[#allocation8 + $0x2e0] sm:$0xff]
        %v1239 = vld [vmem:[#allocation8 + $0x2e8] sm:$0xff]
        %v1240 = vld [vmem:[#allocation8 + $0x2f0] sm:$0xff]
        %v1241 = vld [vmem:[#allocation8 + $0x2f8] sm:$0xff]
        %v1242 = vld [vmem:[#allocation8 + $0x300] sm:$0xff]
        %v1243 = vld [vmem:[#allocation8 + $0x308] sm:$0xff]
        %v1244 = vld [vmem:[#allocation8 + $0x310] sm:$0xff]
        %v1245 = vld [vmem:[#allocation8 + $0x318] sm:$0xff]
        %v1246 = vld [vmem:[#allocation8 + $0x320] sm:$0xff]
        %v1247 = vld [vmem:[#allocation8 + $0x328] sm:$0xff]
        %v1248 = vld [vmem:[#allocation8 + $0x330] sm:$0xff]
        %v1249 = vld [vmem:[#allocation8 + $0x338] sm:$0xff]
        %v1250 = vld [vmem:[#allocation8 + $0x340] sm:$0xff]
        %v1251 = vld [vmem:[#allocation8 + $0x348] sm:$0xff]
        %v1252 = vld [vmem:[#allocation8 + $0x350] sm:$0xff]
        %v1253 = vld [vmem:[#allocation8 + $0x358] sm:$0xff]
        %v1254 = vld [vmem:[#allocation8 + $0x360] sm:$0xff]
        %v1255 = vld [vmem:[#allocation8 + $0x368] sm:$0xff]
        %v1256 = vld [vmem:[#allocation8 + $0x370] sm:$0xff]
        %v1257 = vld [vmem:[#allocation8 + $0x378] sm:$0xff]
        %v1258 = vld [vmem:[#allocation8 + $0x380] sm:$0xff]
        %v1259 = vld [vmem:[#allocation8 + $0x388] sm:$0xff]
        %v1260 = vld [vmem:[#allocation8 + $0x390] sm:$0xff]
        %v1261 = vld [vmem:[#allocation8 + $0x398] sm:$0xff]
        %v1262 = vld [vmem:[#allocation8 + $0x3a0] sm:$0xff]
        %v1263 = vld [vmem:[#allocation8 + $0x3a8] sm:$0xff]
        %v1264 = vld [vmem:[#allocation8 + $0x3b0] sm:$0xff]
        %v1265 = vld [vmem:[#allocation8 + $0x3b8] sm:$0xff]
        %v1266 = vld [vmem:[#allocation8 + $0x3c0] sm:$0xff]
        %v1267 = vld [vmem:[#allocation8 + $0x3c8] sm:$0xff]
        %v1268 = vld [vmem:[#allocation8 + $0x3d0] sm:$0xff]
        %v1269 = vld [vmem:[#allocation8 + $0x3d8] sm:$0xff]
        %v1270 = vld [vmem:[#allocation8 + $0x3e0] sm:$0xff]
        %v1271 = vld [vmem:[#allocation8 + $0x3e8] sm:$0xff]
        %v1272 = vld [vmem:[#allocation8 + $0x3f0] sm:$0xff]
        %v1273 = vld [vmem:[#allocation8 + $0x3f8] sm:$0xff]
        %v1274 = vld [vmem:[#allocation2 + $0x40] sm:$0xff]
        %v1275 = vld [vmem:[#allocation2 + $0x48] sm:$0xff]
        %v1276 = vld [vmem:[#allocation2 + $0x50] sm:$0xff]
        %v1277 = vld [vmem:[#allocation2 + $0x58] sm:$0xff]
        %v1278 = vpack.c.bf16 %v1274, %v1130
        %v1279 = vpack.c.bf16 %v1275, %v1131
        %v1280 = vpack.c.bf16 %v1276, %v1132
        %v1281 = vpack.c.bf16 %v1277, %v1133
        %s1282 = scalar_lea.vmem [#allocation8], 1024
        %v1283 = vld [vmem:[%s1282] sm:$0xff]
        %v1284 = vld [vmem:[%s1282 + $0x8] sm:$0xff]
        %v1285 = vld [vmem:[%s1282 + $0x10] sm:$0xff]
        %v1286 = vld [vmem:[%s1282 + $0x18] sm:$0xff]
        %v1287 = vld [vmem:[%s1282 + $0x20] sm:$0xff]
        %v1288 = vld [vmem:[%s1282 + $0x28] sm:$0xff]
        %v1289 = vld [vmem:[%s1282 + $0x30] sm:$0xff]
        %v1290 = vld [vmem:[%s1282 + $0x38] sm:$0xff]
        %v1291 = vld [vmem:[%s1282 + $0x40] sm:$0xff]
        %v1292 = vld [vmem:[%s1282 + $0x48] sm:$0xff]
        %v1293 = vld [vmem:[%s1282 + $0x50] sm:$0xff]
        %v1294 = vld [vmem:[%s1282 + $0x58] sm:$0xff]
        %v1295 = vld [vmem:[%s1282 + $0x60] sm:$0xff]
        %v1296 = vld [vmem:[%s1282 + $0x68] sm:$0xff]
        %v1297 = vld [vmem:[%s1282 + $0x70] sm:$0xff]
        %v1298 = vld [vmem:[%s1282 + $0x78] sm:$0xff]
        %v1299 = vld [vmem:[%s1282 + $0x80] sm:$0xff]
        %v1300 = vld [vmem:[%s1282 + $0x88] sm:$0xff]
        %v1301 = vld [vmem:[%s1282 + $0x90] sm:$0xff]
        %v1302 = vld [vmem:[%s1282 + $0x98] sm:$0xff]
        %v1303 = vld [vmem:[%s1282 + $0xa0] sm:$0xff]
        %v1304 = vld [vmem:[%s1282 + $0xa8] sm:$0xff]
        %v1305 = vld [vmem:[%s1282 + $0xb0] sm:$0xff]
        %v1306 = vld [vmem:[%s1282 + $0xb8] sm:$0xff]
        %v1307 = vld [vmem:[%s1282 + $0xc0] sm:$0xff]
        %v1308 = vld [vmem:[%s1282 + $0xc8] sm:$0xff]
        %v1309 = vld [vmem:[%s1282 + $0xd0] sm:$0xff]
        %v1310 = vld [vmem:[%s1282 + $0xd8] sm:$0xff]
        %v1311 = vld [vmem:[%s1282 + $0xe0] sm:$0xff]
        %v1312 = vld [vmem:[%s1282 + $0xe8] sm:$0xff]
        %v1313 = vld [vmem:[%s1282 + $0xf0] sm:$0xff]
        %v1314 = vld [vmem:[%s1282 + $0xf8] sm:$0xff]
        %v1315 = vld [vmem:[%s1282 + $0x100] sm:$0xff]
        %v1316 = vld [vmem:[%s1282 + $0x108] sm:$0xff]
        %v1317 = vld [vmem:[%s1282 + $0x110] sm:$0xff]
        %v1318 = vld [vmem:[%s1282 + $0x118] sm:$0xff]
        %v1319 = vld [vmem:[%s1282 + $0x120] sm:$0xff]
        %v1320 = vld [vmem:[%s1282 + $0x128] sm:$0xff]
        %v1321 = vld [vmem:[%s1282 + $0x130] sm:$0xff]
        %v1322 = vld [vmem:[%s1282 + $0x138] sm:$0xff]
        %v1323 = vld [vmem:[%s1282 + $0x140] sm:$0xff]
        %v1324 = vld [vmem:[%s1282 + $0x148] sm:$0xff]
        %v1325 = vld [vmem:[%s1282 + $0x150] sm:$0xff]
        %v1326 = vld [vmem:[%s1282 + $0x158] sm:$0xff]
        %v1327 = vld [vmem:[%s1282 + $0x160] sm:$0xff]
        %v1328 = vld [vmem:[%s1282 + $0x168] sm:$0xff]
        %v1329 = vld [vmem:[%s1282 + $0x170] sm:$0xff]
        %v1330 = vld [vmem:[%s1282 + $0x178] sm:$0xff]
        %v1331 = vld [vmem:[%s1282 + $0x180] sm:$0xff]
        %v1332 = vld [vmem:[%s1282 + $0x188] sm:$0xff]
        %v1333 = vld [vmem:[%s1282 + $0x190] sm:$0xff]
        %v1334 = vld [vmem:[%s1282 + $0x198] sm:$0xff]
        %v1335 = vld [vmem:[%s1282 + $0x1a0] sm:$0xff]
        %v1336 = vld [vmem:[%s1282 + $0x1a8] sm:$0xff]
        %v1337 = vld [vmem:[%s1282 + $0x1b0] sm:$0xff]
        %v1338 = vld [vmem:[%s1282 + $0x1b8] sm:$0xff]
        %v1339 = vld [vmem:[%s1282 + $0x1c0] sm:$0xff]
        %v1340 = vld [vmem:[%s1282 + $0x1c8] sm:$0xff]
        %v1341 = vld [vmem:[%s1282 + $0x1d0] sm:$0xff]
        %v1342 = vld [vmem:[%s1282 + $0x1d8] sm:$0xff]
        %v1343 = vld [vmem:[%s1282 + $0x1e0] sm:$0xff]
        %v1344 = vld [vmem:[%s1282 + $0x1e8] sm:$0xff]
        %v1345 = vld [vmem:[%s1282 + $0x1f0] sm:$0xff]
        %v1346 = vld [vmem:[%s1282 + $0x1f8] sm:$0xff]
        %v1347 = vld [vmem:[%s1282 + $0x200] sm:$0xff]
        %v1348 = vld [vmem:[%s1282 + $0x208] sm:$0xff]
        %v1349 = vld [vmem:[%s1282 + $0x210] sm:$0xff]
        %v1350 = vld [vmem:[%s1282 + $0x218] sm:$0xff]
        %v1351 = vld [vmem:[%s1282 + $0x220] sm:$0xff]
        %v1352 = vld [vmem:[%s1282 + $0x228] sm:$0xff]
        %v1353 = vld [vmem:[%s1282 + $0x230] sm:$0xff]
        %v1354 = vld [vmem:[%s1282 + $0x238] sm:$0xff]
        %v1355 = vld [vmem:[%s1282 + $0x240] sm:$0xff]
        %v1356 = vld [vmem:[%s1282 + $0x248] sm:$0xff]
        %v1357 = vld [vmem:[%s1282 + $0x250] sm:$0xff]
        %v1358 = vld [vmem:[%s1282 + $0x258] sm:$0xff]
        %v1359 = vld [vmem:[%s1282 + $0x260] sm:$0xff]
        %v1360 = vld [vmem:[%s1282 + $0x268] sm:$0xff]
        %v1361 = vld [vmem:[%s1282 + $0x270] sm:$0xff]
        %v1362 = vld [vmem:[%s1282 + $0x278] sm:$0xff]
        %v1363 = vld [vmem:[%s1282 + $0x280] sm:$0xff]
        %v1364 = vld [vmem:[%s1282 + $0x288] sm:$0xff]
        %v1365 = vld [vmem:[%s1282 + $0x290] sm:$0xff]
        %v1366 = vld [vmem:[%s1282 + $0x298] sm:$0xff]
        %v1367 = vld [vmem:[%s1282 + $0x2a0] sm:$0xff]
        %v1368 = vld [vmem:[%s1282 + $0x2a8] sm:$0xff]
        %v1369 = vld [vmem:[%s1282 + $0x2b0] sm:$0xff]
        %v1370 = vld [vmem:[%s1282 + $0x2b8] sm:$0xff]
        %v1371 = vld [vmem:[%s1282 + $0x2c0] sm:$0xff]
        %v1372 = vld [vmem:[%s1282 + $0x2c8] sm:$0xff]
        %v1373 = vld [vmem:[%s1282 + $0x2d0] sm:$0xff]
        %v1374 = vld [vmem:[%s1282 + $0x2d8] sm:$0xff]
        %v1375 = vld [vmem:[%s1282 + $0x2e0] sm:$0xff]
        %v1376 = vld [vmem:[%s1282 + $0x2e8] sm:$0xff]
        %v1377 = vld [vmem:[%s1282 + $0x2f0] sm:$0xff]
        %v1378 = vld [vmem:[%s1282 + $0x2f8] sm:$0xff]
        %v1379 = vld [vmem:[%s1282 + $0x300] sm:$0xff]
        %v1380 = vld [vmem:[%s1282 + $0x308] sm:$0xff]
        %v1381 = vld [vmem:[%s1282 + $0x310] sm:$0xff]
        %v1382 = vld [vmem:[%s1282 + $0x318] sm:$0xff]
        %v1383 = vld [vmem:[%s1282 + $0x320] sm:$0xff]
        %v1384 = vld [vmem:[%s1282 + $0x328] sm:$0xff]
        %v1385 = vld [vmem:[%s1282 + $0x330] sm:$0xff]
        %v1386 = vld [vmem:[%s1282 + $0x338] sm:$0xff]
        %v1387 = vld [vmem:[%s1282 + $0x340] sm:$0xff]
        %v1388 = vld [vmem:[%s1282 + $0x348] sm:$0xff]
        %v1389 = vld [vmem:[%s1282 + $0x350] sm:$0xff]
        %v1390 = vld [vmem:[%s1282 + $0x358] sm:$0xff]
        %v1391 = vld [vmem:[%s1282 + $0x360] sm:$0xff]
        %v1392 = vld [vmem:[%s1282 + $0x368] sm:$0xff]
        %v1393 = vld [vmem:[%s1282 + $0x370] sm:$0xff]
        %v1394 = vld [vmem:[%s1282 + $0x378] sm:$0xff]
        %v1395 = vld [vmem:[%s1282 + $0x380] sm:$0xff]
        %v1396 = vld [vmem:[%s1282 + $0x388] sm:$0xff]
        %v1397 = vld [vmem:[%s1282 + $0x390] sm:$0xff]
        %v1398 = vld [vmem:[%s1282 + $0x398] sm:$0xff]
        %v1399 = vld [vmem:[%s1282 + $0x3a0] sm:$0xff]
        %v1400 = vld [vmem:[%s1282 + $0x3a8] sm:$0xff]
        %v1401 = vld [vmem:[%s1282 + $0x3b0] sm:$0xff]
        %v1402 = vld [vmem:[%s1282 + $0x3b8] sm:$0xff]
        %v1403 = vld [vmem:[%s1282 + $0x3c0] sm:$0xff]
        %v1404 = vld [vmem:[%s1282 + $0x3c8] sm:$0xff]
        %v1405 = vld [vmem:[%s1282 + $0x3d0] sm:$0xff]
        %v1406 = vld [vmem:[%s1282 + $0x3d8] sm:$0xff]
        %v1407 = vld [vmem:[%s1282 + $0x3e0] sm:$0xff]
        %v1408 = vld [vmem:[%s1282 + $0x3e8] sm:$0xff]
        %v1409 = vld [vmem:[%s1282 + $0x3f0] sm:$0xff]
        %v1410 = vld [vmem:[%s1282 + $0x3f8] sm:$0xff]
        %v1539 = vunpack.c.l.b16 %v1283
        %v1540 = vunpack.c.h.b16 %v1283
        %v1541 = vunpack.c.l.b16 %v1284
        %v1542 = vunpack.c.h.b16 %v1284
        %v1543 = vunpack.c.l.b16 %v1285
        %v1544 = vunpack.c.h.b16 %v1285
        %v1545 = vunpack.c.l.b16 %v1286
        %v1546 = vunpack.c.h.b16 %v1286
        %v1547 = vunpack.c.l.b16 %v1287
        %v1548 = vunpack.c.h.b16 %v1287
        %v1549 = vunpack.c.l.b16 %v1288
        %v1550 = vunpack.c.h.b16 %v1288
        %v1551 = vunpack.c.l.b16 %v1289
        %v1552 = vunpack.c.h.b16 %v1289
        %v1553 = vunpack.c.l.b16 %v1290
        %v1554 = vunpack.c.h.b16 %v1290
        %v1555 = vunpack.c.l.b16 %v1291
        %v1556 = vunpack.c.h.b16 %v1291
        %v1557 = vunpack.c.l.b16 %v1292
        %v1558 = vunpack.c.h.b16 %v1292
        %v1559 = vunpack.c.l.b16 %v1293
        %v1560 = vunpack.c.h.b16 %v1293
        %v1561 = vunpack.c.l.b16 %v1294
        %v1562 = vunpack.c.h.b16 %v1294
        %v1563 = vunpack.c.l.b16 %v1295
        %v1564 = vunpack.c.h.b16 %v1295
        %v1565 = vunpack.c.l.b16 %v1296
        %v1566 = vunpack.c.h.b16 %v1296
        %v1567 = vunpack.c.l.b16 %v1297
        %v1568 = vunpack.c.h.b16 %v1297
        %v1569 = vunpack.c.l.b16 %v1298
        %v1570 = vunpack.c.h.b16 %v1298
        %v1571 = vunpack.c.l.b16 %v1299
        %v1572 = vunpack.c.h.b16 %v1299
        %v1573 = vunpack.c.l.b16 %v1300
        %v1574 = vunpack.c.h.b16 %v1300
        %v1575 = vunpack.c.l.b16 %v1301
        %v1576 = vunpack.c.h.b16 %v1301
        %v1577 = vunpack.c.l.b16 %v1302
        %v1578 = vunpack.c.h.b16 %v1302
        %v1579 = vunpack.c.l.b16 %v1303
        %v1580 = vunpack.c.h.b16 %v1303
        %v1581 = vunpack.c.l.b16 %v1304
        %v1582 = vunpack.c.h.b16 %v1304
        %v1583 = vunpack.c.l.b16 %v1305
        %v1584 = vunpack.c.h.b16 %v1305
        %v1585 = vunpack.c.l.b16 %v1306
        %v1586 = vunpack.c.h.b16 %v1306
        %v1587 = vunpack.c.l.b16 %v1307
        %v1588 = vunpack.c.h.b16 %v1307
        %v1589 = vunpack.c.l.b16 %v1308
        %v1590 = vunpack.c.h.b16 %v1308
        %v1591 = vunpack.c.l.b16 %v1309
        %v1592 = vunpack.c.h.b16 %v1309
        %v1593 = vunpack.c.l.b16 %v1310
        %v1594 = vunpack.c.h.b16 %v1310
        %v1595 = vunpack.c.l.b16 %v1311
        %v1596 = vunpack.c.h.b16 %v1311
        %v1597 = vunpack.c.l.b16 %v1312
        %v1598 = vunpack.c.h.b16 %v1312
        %v1599 = vunpack.c.l.b16 %v1313
        %v1600 = vunpack.c.h.b16 %v1313
        %v1601 = vunpack.c.l.b16 %v1314
        %v1602 = vunpack.c.h.b16 %v1314
        %v1603 = vunpack.c.l.b16 %v1315
        %v1604 = vunpack.c.h.b16 %v1315
        %v1605 = vunpack.c.l.b16 %v1316
        %v1606 = vunpack.c.h.b16 %v1316
        %v1607 = vunpack.c.l.b16 %v1317
        %v1608 = vunpack.c.h.b16 %v1317
        %v1609 = vunpack.c.l.b16 %v1318
        %v1610 = vunpack.c.h.b16 %v1318
        %v1611 = vunpack.c.l.b16 %v1319
        %v1612 = vunpack.c.h.b16 %v1319
        %v1613 = vunpack.c.l.b16 %v1320
        %v1614 = vunpack.c.h.b16 %v1320
        %v1615 = vunpack.c.l.b16 %v1321
        %v1616 = vunpack.c.h.b16 %v1321
        %v1617 = vunpack.c.l.b16 %v1322
        %v1618 = vunpack.c.h.b16 %v1322
        %v1619 = vunpack.c.l.b16 %v1323
        %v1620 = vunpack.c.h.b16 %v1323
        %v1621 = vunpack.c.l.b16 %v1324
        %v1622 = vunpack.c.h.b16 %v1324
        %v1623 = vunpack.c.l.b16 %v1325
        %v1624 = vunpack.c.h.b16 %v1325
        %v1625 = vunpack.c.l.b16 %v1326
        %v1626 = vunpack.c.h.b16 %v1326
        %v1627 = vunpack.c.l.b16 %v1327
        %v1628 = vunpack.c.h.b16 %v1327
        %v1629 = vunpack.c.l.b16 %v1328
        %v1630 = vunpack.c.h.b16 %v1328
        %v1631 = vunpack.c.l.b16 %v1329
        %v1632 = vunpack.c.h.b16 %v1329
        %v1633 = vunpack.c.l.b16 %v1330
        %v1634 = vunpack.c.h.b16 %v1330
        %v1635 = vunpack.c.l.b16 %v1331
        %v1636 = vunpack.c.h.b16 %v1331
        %v1637 = vunpack.c.l.b16 %v1332
        %v1638 = vunpack.c.h.b16 %v1332
        %v1639 = vunpack.c.l.b16 %v1333
        %v1640 = vunpack.c.h.b16 %v1333
        %v1641 = vunpack.c.l.b16 %v1334
        %v1642 = vunpack.c.h.b16 %v1334
        %v1643 = vunpack.c.l.b16 %v1335
        %v1644 = vunpack.c.h.b16 %v1335
        %v1645 = vunpack.c.l.b16 %v1336
        %v1646 = vunpack.c.h.b16 %v1336
        %v1647 = vunpack.c.l.b16 %v1337
        %v1648 = vunpack.c.h.b16 %v1337
        %v1649 = vunpack.c.l.b16 %v1338
        %v1650 = vunpack.c.h.b16 %v1338
        %v1651 = vunpack.c.l.b16 %v1339
        %v1652 = vunpack.c.h.b16 %v1339
        %v1653 = vunpack.c.l.b16 %v1340
        %v1654 = vunpack.c.h.b16 %v1340
        %v1655 = vunpack.c.l.b16 %v1341
        %v1656 = vunpack.c.h.b16 %v1341
        %v1657 = vunpack.c.l.b16 %v1342
        %v1658 = vunpack.c.h.b16 %v1342
        %v1659 = vunpack.c.l.b16 %v1343
        %v1660 = vunpack.c.h.b16 %v1343
        %v1661 = vunpack.c.l.b16 %v1344
        %v1662 = vunpack.c.h.b16 %v1344
        %v1663 = vunpack.c.l.b16 %v1345
        %v1664 = vunpack.c.h.b16 %v1345
        %v1665 = vunpack.c.l.b16 %v1346
        %v1666 = vunpack.c.h.b16 %v1346
        %v1667 = vunpack.c.l.b16 %v1347
        %v1668 = vunpack.c.h.b16 %v1347
        %v1669 = vunpack.c.l.b16 %v1348
        %v1670 = vunpack.c.h.b16 %v1348
        %v1671 = vunpack.c.l.b16 %v1349
        %v1672 = vunpack.c.h.b16 %v1349
        %v1673 = vunpack.c.l.b16 %v1350
        %v1674 = vunpack.c.h.b16 %v1350
        %v1675 = vunpack.c.l.b16 %v1351
        %v1676 = vunpack.c.h.b16 %v1351
        %v1677 = vunpack.c.l.b16 %v1352
        %v1678 = vunpack.c.h.b16 %v1352
        %v1679 = vunpack.c.l.b16 %v1353
        %v1680 = vunpack.c.h.b16 %v1353
        %v1681 = vunpack.c.l.b16 %v1354
        %v1682 = vunpack.c.h.b16 %v1354
        %v1683 = vunpack.c.l.b16 %v1355
        %v1684 = vunpack.c.h.b16 %v1355
        %v1685 = vunpack.c.l.b16 %v1356
        %v1686 = vunpack.c.h.b16 %v1356
        %v1687 = vunpack.c.l.b16 %v1357
        %v1688 = vunpack.c.h.b16 %v1357
        %v1689 = vunpack.c.l.b16 %v1358
        %v1690 = vunpack.c.h.b16 %v1358
        %v1691 = vunpack.c.l.b16 %v1359
        %v1692 = vunpack.c.h.b16 %v1359
        %v1693 = vunpack.c.l.b16 %v1360
        %v1694 = vunpack.c.h.b16 %v1360
        %v1695 = vunpack.c.l.b16 %v1361
        %v1696 = vunpack.c.h.b16 %v1361
        %v1697 = vunpack.c.l.b16 %v1362
        %v1698 = vunpack.c.h.b16 %v1362
        %v1699 = vunpack.c.l.b16 %v1363
        %v1700 = vunpack.c.h.b16 %v1363
        %v1701 = vunpack.c.l.b16 %v1364
        %v1702 = vunpack.c.h.b16 %v1364
        %v1703 = vunpack.c.l.b16 %v1365
        %v1704 = vunpack.c.h.b16 %v1365
        %v1705 = vunpack.c.l.b16 %v1366
        %v1706 = vunpack.c.h.b16 %v1366
        %v1707 = vunpack.c.l.b16 %v1367
        %v1708 = vunpack.c.h.b16 %v1367
        %v1709 = vunpack.c.l.b16 %v1368
        %v1710 = vunpack.c.h.b16 %v1368
        %v1711 = vunpack.c.l.b16 %v1369
        %v1712 = vunpack.c.h.b16 %v1369
        %v1713 = vunpack.c.l.b16 %v1370
        %v1714 = vunpack.c.h.b16 %v1370
        %v1715 = vunpack.c.l.b16 %v1371
        %v1716 = vunpack.c.h.b16 %v1371
        %v1717 = vunpack.c.l.b16 %v1372
        %v1718 = vunpack.c.h.b16 %v1372
        %v1719 = vunpack.c.l.b16 %v1373
        %v1720 = vunpack.c.h.b16 %v1373
        %v1721 = vunpack.c.l.b16 %v1374
        %v1722 = vunpack.c.h.b16 %v1374
        %v1723 = vunpack.c.l.b16 %v1375
        %v1724 = vunpack.c.h.b16 %v1375
        %v1725 = vunpack.c.l.b16 %v1376
        %v1726 = vunpack.c.h.b16 %v1376
        %v1727 = vunpack.c.l.b16 %v1377
        %v1728 = vunpack.c.h.b16 %v1377
        %v1729 = vunpack.c.l.b16 %v1378
        %v1730 = vunpack.c.h.b16 %v1378
        %v1731 = vunpack.c.l.b16 %v1379
        %v1732 = vunpack.c.h.b16 %v1379
        %v1733 = vunpack.c.l.b16 %v1380
        %v1734 = vunpack.c.h.b16 %v1380
        %v1735 = vunpack.c.l.b16 %v1381
        %v1736 = vunpack.c.h.b16 %v1381
        %v1737 = vunpack.c.l.b16 %v1382
        %v1738 = vunpack.c.h.b16 %v1382
        %v1739 = vunpack.c.l.b16 %v1383
        %v1740 = vunpack.c.h.b16 %v1383
        %v1741 = vunpack.c.l.b16 %v1384
        %v1742 = vunpack.c.h.b16 %v1384
        %v1743 = vunpack.c.l.b16 %v1385
        %v1744 = vunpack.c.h.b16 %v1385
        %v1745 = vunpack.c.l.b16 %v1386
        %v1746 = vunpack.c.h.b16 %v1386
        %v1747 = vunpack.c.l.b16 %v1387
        %v1748 = vunpack.c.h.b16 %v1387
        %v1749 = vunpack.c.l.b16 %v1388
        %v1750 = vunpack.c.h.b16 %v1388
        %v1751 = vunpack.c.l.b16 %v1389
        %v1752 = vunpack.c.h.b16 %v1389
        %v1753 = vunpack.c.l.b16 %v1390
        %v1754 = vunpack.c.h.b16 %v1390
        %v1755 = vunpack.c.l.b16 %v1391
        %v1756 = vunpack.c.h.b16 %v1391
        %v1757 = vunpack.c.l.b16 %v1392
        %v1758 = vunpack.c.h.b16 %v1392
        %v1759 = vunpack.c.l.b16 %v1393
        %v1760 = vunpack.c.h.b16 %v1393
        %v1761 = vunpack.c.l.b16 %v1394
        %v1762 = vunpack.c.h.b16 %v1394
        %v1763 = vunpack.c.l.b16 %v1395
        %v1764 = vunpack.c.h.b16 %v1395
        %v1765 = vunpack.c.l.b16 %v1396
        %v1766 = vunpack.c.h.b16 %v1396
        %v1767 = vunpack.c.l.b16 %v1397
        %v1768 = vunpack.c.h.b16 %v1397
        %v1769 = vunpack.c.l.b16 %v1398
        %v1770 = vunpack.c.h.b16 %v1398
        %v1771 = vunpack.c.l.b16 %v1399
        %v1772 = vunpack.c.h.b16 %v1399
        %v1773 = vunpack.c.l.b16 %v1400
        %v1774 = vunpack.c.h.b16 %v1400
        %v1775 = vunpack.c.l.b16 %v1401
        %v1776 = vunpack.c.h.b16 %v1401
        %v1777 = vunpack.c.l.b16 %v1402
        %v1778 = vunpack.c.h.b16 %v1402
        %v1779 = vunpack.c.l.b16 %v1403
        %v1780 = vunpack.c.h.b16 %v1403
        %v1781 = vunpack.c.l.b16 %v1404
        %v1782 = vunpack.c.h.b16 %v1404
        %v1783 = vunpack.c.l.b16 %v1405
        %v1784 = vunpack.c.h.b16 %v1405
        %v1785 = vunpack.c.l.b16 %v1406
        %v1786 = vunpack.c.h.b16 %v1406
        %v1787 = vunpack.c.l.b16 %v1407
        %v1788 = vunpack.c.h.b16 %v1407
        %v1789 = vunpack.c.l.b16 %v1408
        %v1790 = vunpack.c.h.b16 %v1408
        %v1791 = vunpack.c.l.b16 %v1409
        %v1792 = vunpack.c.h.b16 %v1409
        %v1793 = vunpack.c.l.b16 %v1410
        %v1794 = vunpack.c.h.b16 %v1410
        %v1795 = vpack.c.b16 %v1543, %v1539
        %v1796 = vpack.c.b16 %v1544, %v1540
        %v1797 = vpack.c.b16 %v1545, %v1541
        %v1798 = vpack.c.b16 %v1546, %v1542
        %v1799 = vpack.c.b16 %v1551, %v1547
        %v1800 = vpack.c.b16 %v1552, %v1548
        %v1801 = vpack.c.b16 %v1553, %v1549
        %v1802 = vpack.c.b16 %v1554, %v1550
        %v1803 = vpack.c.b16 %v1559, %v1555
        %v1804 = vpack.c.b16 %v1560, %v1556
        %v1805 = vpack.c.b16 %v1561, %v1557
        %v1806 = vpack.c.b16 %v1562, %v1558
        %v1807 = vpack.c.b16 %v1567, %v1563
        %v1808 = vpack.c.b16 %v1568, %v1564
        %v1809 = vpack.c.b16 %v1569, %v1565
        %v1810 = vpack.c.b16 %v1570, %v1566
        %v1811 = vpack.c.b16 %v1575, %v1571
        %v1812 = vpack.c.b16 %v1576, %v1572
        %v1813 = vpack.c.b16 %v1577, %v1573
        %v1814 = vpack.c.b16 %v1578, %v1574
        %v1815 = vpack.c.b16 %v1583, %v1579
        %v1816 = vpack.c.b16 %v1584, %v1580
        %v1817 = vpack.c.b16 %v1585, %v1581
        %v1818 = vpack.c.b16 %v1586, %v1582
        %v1819 = vpack.c.b16 %v1591, %v1587
        %v1820 = vpack.c.b16 %v1592, %v1588
        %v1821 = vpack.c.b16 %v1593, %v1589
        %v1822 = vpack.c.b16 %v1594, %v1590
        %v1823 = vpack.c.b16 %v1599, %v1595
        %v1824 = vpack.c.b16 %v1600, %v1596
        %v1825 = vpack.c.b16 %v1601, %v1597
        %v1826 = vpack.c.b16 %v1602, %v1598
        %v1827 = vpack.c.b16 %v1607, %v1603
        %v1828 = vpack.c.b16 %v1608, %v1604
        %v1829 = vpack.c.b16 %v1609, %v1605
        %v1830 = vpack.c.b16 %v1610, %v1606
        %v1831 = vpack.c.b16 %v1615, %v1611
        %v1832 = vpack.c.b16 %v1616, %v1612
        %v1833 = vpack.c.b16 %v1617, %v1613
        %v1834 = vpack.c.b16 %v1618, %v1614
        %v1835 = vpack.c.b16 %v1623, %v1619
        %v1836 = vpack.c.b16 %v1624, %v1620
        %v1837 = vpack.c.b16 %v1625, %v1621
        %v1838 = vpack.c.b16 %v1626, %v1622
        %v1839 = vpack.c.b16 %v1631, %v1627
        %v1840 = vpack.c.b16 %v1632, %v1628
        %v1841 = vpack.c.b16 %v1633, %v1629
        %v1842 = vpack.c.b16 %v1634, %v1630
        %v1843 = vpack.c.b16 %v1639, %v1635
        %v1844 = vpack.c.b16 %v1640, %v1636
        %v1845 = vpack.c.b16 %v1641, %v1637
        %v1846 = vpack.c.b16 %v1642, %v1638
        %v1847 = vpack.c.b16 %v1647, %v1643
        %v1848 = vpack.c.b16 %v1648, %v1644
        %v1849 = vpack.c.b16 %v1649, %v1645
        %v1850 = vpack.c.b16 %v1650, %v1646
        %v1851 = vpack.c.b16 %v1655, %v1651
        %v1852 = vpack.c.b16 %v1656, %v1652
        %v1853 = vpack.c.b16 %v1657, %v1653
        %v1854 = vpack.c.b16 %v1658, %v1654
        %v1855 = vpack.c.b16 %v1663, %v1659
        %v1856 = vpack.c.b16 %v1664, %v1660
        %v1857 = vpack.c.b16 %v1665, %v1661
        %v1858 = vpack.c.b16 %v1666, %v1662
        %v1859 = vpack.c.b16 %v1671, %v1667
        %v1860 = vpack.c.b16 %v1672, %v1668
        %v1861 = vpack.c.b16 %v1673, %v1669
        %v1862 = vpack.c.b16 %v1674, %v1670
        %v1863 = vpack.c.b16 %v1679, %v1675
        %v1864 = vpack.c.b16 %v1680, %v1676
        %v1865 = vpack.c.b16 %v1681, %v1677
        %v1866 = vpack.c.b16 %v1682, %v1678
        %v1867 = vpack.c.b16 %v1687, %v1683
        %v1868 = vpack.c.b16 %v1688, %v1684
        %v1869 = vpack.c.b16 %v1689, %v1685
        %v1870 = vpack.c.b16 %v1690, %v1686
        %v1871 = vpack.c.b16 %v1695, %v1691
        %v1872 = vpack.c.b16 %v1696, %v1692
        %v1873 = vpack.c.b16 %v1697, %v1693
        %v1874 = vpack.c.b16 %v1698, %v1694
        %v1875 = vpack.c.b16 %v1703, %v1699
        %v1876 = vpack.c.b16 %v1704, %v1700
        %v1877 = vpack.c.b16 %v1705, %v1701
        %v1878 = vpack.c.b16 %v1706, %v1702
        %v1879 = vpack.c.b16 %v1711, %v1707
        %v1880 = vpack.c.b16 %v1712, %v1708
        %v1881 = vpack.c.b16 %v1713, %v1709
        %v1882 = vpack.c.b16 %v1714, %v1710
        %v1883 = vpack.c.b16 %v1719, %v1715
        %v1884 = vpack.c.b16 %v1720, %v1716
        %v1885 = vpack.c.b16 %v1721, %v1717
        %v1886 = vpack.c.b16 %v1722, %v1718
        %v1887 = vpack.c.b16 %v1727, %v1723
        %v1888 = vpack.c.b16 %v1728, %v1724
        %v1889 = vpack.c.b16 %v1729, %v1725
        %v1890 = vpack.c.b16 %v1730, %v1726
        %v1891 = vpack.c.b16 %v1735, %v1731
        %v1892 = vpack.c.b16 %v1736, %v1732
        %v1893 = vpack.c.b16 %v1737, %v1733
        %v1894 = vpack.c.b16 %v1738, %v1734
        %v1895 = vpack.c.b16 %v1743, %v1739
        %v1896 = vpack.c.b16 %v1744, %v1740
        %v1897 = vpack.c.b16 %v1745, %v1741
        %v1898 = vpack.c.b16 %v1746, %v1742
        %v1899 = vpack.c.b16 %v1751, %v1747
        %v1900 = vpack.c.b16 %v1752, %v1748
        %v1901 = vpack.c.b16 %v1753, %v1749
        %v1902 = vpack.c.b16 %v1754, %v1750
        %v1903 = vpack.c.b16 %v1759, %v1755
        %v1904 = vpack.c.b16 %v1760, %v1756
        %v1905 = vpack.c.b16 %v1761, %v1757
        %v1906 = vpack.c.b16 %v1762, %v1758
        %v1907 = vpack.c.b16 %v1767, %v1763
        %v1908 = vpack.c.b16 %v1768, %v1764
        %v1909 = vpack.c.b16 %v1769, %v1765
        %v1910 = vpack.c.b16 %v1770, %v1766
        %v1911 = vpack.c.b16 %v1775, %v1771
        %v1912 = vpack.c.b16 %v1776, %v1772
        %v1913 = vpack.c.b16 %v1777, %v1773
        %v1914 = vpack.c.b16 %v1778, %v1774
        %v1915 = vpack.c.b16 %v1783, %v1779
        %v1916 = vpack.c.b16 %v1784, %v1780
        %v1917 = vpack.c.b16 %v1785, %v1781
        %v1918 = vpack.c.b16 %v1786, %v1782
        %v1919 = vpack.c.b16 %v1791, %v1787
        %v1920 = vpack.c.b16 %v1792, %v1788
        %v1921 = vpack.c.b16 %v1793, %v1789
        %v1922 = vpack.c.b16 %v1794, %v1790
        %2051 = vmatpush.bf16.msra.mxu0 %v1823
        %2052 = vmatpush.bf16.msra.mxu0 %v1819
        %2053 = vmatpush.bf16.msra.mxu0 %v1815
        %2054 = vmatpush.bf16.msra.mxu0 %v1811
        %2055 = vmatpush.bf16.msra.mxu0 %v1807
        %2056 = vmatpush.bf16.msra.mxu0 %v1803
        %2057 = vmatpush.bf16.msra.mxu0 %v1799
        %2058 = vmatpush.bf16.msra.mxu0 %v1795
        %2059 = vmatmul.bf16.gmra.mxu0 %v1278
        %v2060 = vpop.f32.mrf.mxu0
        %v2061 = vadd.f32 0.0, %v2060
        %v2062 = vpop.f32.mrf.mxu0
        %v2063 = vadd.f32 0.0, %v2062
        %2064 = vdwg.mxu0
        %2065 = vmatpush.bf16.msra.mxu0 %v1855
        %2066 = vmatpush.bf16.msra.mxu0 %v1851
        %2067 = vmatpush.bf16.msra.mxu0 %v1847
        %2068 = vmatpush.bf16.msra.mxu0 %v1843
        %2069 = vmatpush.bf16.msra.mxu0 %v1839
        %2070 = vmatpush.bf16.msra.mxu0 %v1835
        %2071 = vmatpush.bf16.msra.mxu0 %v1831
        %2072 = vmatpush.bf16.msra.mxu0 %v1827
        %2073 = vmatmul.bf16.gmra.mxu0 %v1279
        %v2074 = vpop.f32.mrf.mxu0
        %v2075 = vadd.f32 %v2061, %v2074
        %v2076 = vpop.f32.mrf.mxu0
        %v2077 = vadd.f32 %v2063, %v2076
        %2078 = vdwg.mxu0
        %2079 = vmatpush.bf16.msra.mxu0 %v1887
        %2080 = vmatpush.bf16.msra.mxu0 %v1883
        %2081 = vmatpush.bf16.msra.mxu0 %v1879
        %2082 = vmatpush.bf16.msra.mxu0 %v1875
        %2083 = vmatpush.bf16.msra.mxu0 %v1871
        %2084 = vmatpush.bf16.msra.mxu0 %v1867
        %2085 = vmatpush.bf16.msra.mxu0 %v1863
        %2086 = vmatpush.bf16.msra.mxu0 %v1859
        %2087 = vmatmul.bf16.gmra.mxu0 %v1280
        %v2088 = vpop.f32.mrf.mxu0
        %v2089 = vadd.f32 %v2075, %v2088
        %v2090 = vpop.f32.mrf.mxu0
        %v2091 = vadd.f32 %v2077, %v2090
        %2092 = vdwg.mxu0
        %2093 = vmatpush.bf16.msra.mxu0 %v1919
        %2094 = vmatpush.bf16.msra.mxu0 %v1915
        %2095 = vmatpush.bf16.msra.mxu0 %v1911
        %2096 = vmatpush.bf16.msra.mxu0 %v1907
        %2097 = vmatpush.bf16.msra.mxu0 %v1903
        %2098 = vmatpush.bf16.msra.mxu0 %v1899
        %2099 = vmatpush.bf16.msra.mxu0 %v1895
        %2100 = vmatpush.bf16.msra.mxu0 %v1891
        %2101 = vmatmul.bf16.gmra.mxu0 %v1281
        %v2102 = vpop.f32.mrf.mxu0
        %v2103 = vadd.f32 %v2089, %v2102
        %v2104 = vpop.f32.mrf.mxu0
        %v2105 = vadd.f32 %v2091, %v2104
        %2106 = vdwg.mxu0
        %2107 = vmatpush.bf16.msra.mxu0 %v1824
        %2108 = vmatpush.bf16.msra.mxu0 %v1820
        %2109 = vmatpush.bf16.msra.mxu0 %v1816
        %2110 = vmatpush.bf16.msra.mxu0 %v1812
        %2111 = vmatpush.bf16.msra.mxu0 %v1808
        %2112 = vmatpush.bf16.msra.mxu0 %v1804
        %2113 = vmatpush.bf16.msra.mxu0 %v1800
        %2114 = vmatpush.bf16.msra.mxu0 %v1796
        %2115 = vmatmul.bf16.gmra.mxu0 %v1278
        %v2116 = vpop.f32.mrf.mxu0
        %v2117 = vadd.f32 0.0, %v2116
        %v2118 = vpop.f32.mrf.mxu0
        %v2119 = vadd.f32 0.0, %v2118
        %2120 = vdwg.mxu0
        %2121 = vmatpush.bf16.msra.mxu0 %v1856
        %2122 = vmatpush.bf16.msra.mxu0 %v1852
        %2123 = vmatpush.bf16.msra.mxu0 %v1848
        %2124 = vmatpush.bf16.msra.mxu0 %v1844
        %2125 = vmatpush.bf16.msra.mxu0 %v1840
        %2126 = vmatpush.bf16.msra.mxu0 %v1836
        %2127 = vmatpush.bf16.msra.mxu0 %v1832
        %2128 = vmatpush.bf16.msra.mxu0 %v1828
        %2129 = vmatmul.bf16.gmra.mxu0 %v1279
        %v2130 = vpop.f32.mrf.mxu0
        %v2131 = vadd.f32 %v2117, %v2130
        %v2132 = vpop.f32.mrf.mxu0
        %v2133 = vadd.f32 %v2119, %v2132
        %2134 = vdwg.mxu0
        %2135 = vmatpush.bf16.msra.mxu0 %v1888
        %2136 = vmatpush.bf16.msra.mxu0 %v1884
        %2137 = vmatpush.bf16.msra.mxu0 %v1880
        %2138 = vmatpush.bf16.msra.mxu0 %v1876
        %2139 = vmatpush.bf16.msra.mxu0 %v1872
        %2140 = vmatpush.bf16.msra.mxu0 %v1868
        %2141 = vmatpush.bf16.msra.mxu0 %v1864
        %2142 = vmatpush.bf16.msra.mxu0 %v1860
        %2143 = vmatmul.bf16.gmra.mxu0 %v1280
        %v2144 = vpop.f32.mrf.mxu0
        %v2145 = vadd.f32 %v2131, %v2144
        %v2146 = vpop.f32.mrf.mxu0
        %v2147 = vadd.f32 %v2133, %v2146
        %2148 = vdwg.mxu0
        %2149 = vmatpush.bf16.msra.mxu0 %v1920
        %2150 = vmatpush.bf16.msra.mxu0 %v1916
        %2151 = vmatpush.bf16.msra.mxu0 %v1912
        %2152 = vmatpush.bf16.msra.mxu0 %v1908
        %2153 = vmatpush.bf16.msra.mxu0 %v1904
        %2154 = vmatpush.bf16.msra.mxu0 %v1900
        %2155 = vmatpush.bf16.msra.mxu0 %v1896
        %2156 = vmatpush.bf16.msra.mxu0 %v1892
        %2157 = vmatmul.bf16.gmra.mxu0 %v1281
        %v2158 = vpop.f32.mrf.mxu0
        %v2159 = vadd.f32 %v2145, %v2158
        %v2160 = vpop.f32.mrf.mxu0
        %v2161 = vadd.f32 %v2147, %v2160
        %2162 = vdwg.mxu0
        %2163 = vmatpush.bf16.msra.mxu0 %v1825
        %2164 = vmatpush.bf16.msra.mxu0 %v1821
        %2165 = vmatpush.bf16.msra.mxu0 %v1817
        %2166 = vmatpush.bf16.msra.mxu0 %v1813
        %2167 = vmatpush.bf16.msra.mxu0 %v1809
        %2168 = vmatpush.bf16.msra.mxu0 %v1805
        %2169 = vmatpush.bf16.msra.mxu0 %v1801
        %2170 = vmatpush.bf16.msra.mxu0 %v1797
        %2171 = vmatmul.bf16.gmra.mxu0 %v1278
        %v2172 = vpop.f32.mrf.mxu0
        %v2173 = vadd.f32 0.0, %v2172
        %v2174 = vpop.f32.mrf.mxu0
        %v2175 = vadd.f32 0.0, %v2174
        %2176 = vdwg.mxu0
        %2177 = vmatpush.bf16.msra.mxu0 %v1857
        %2178 = vmatpush.bf16.msra.mxu0 %v1853
        %2179 = vmatpush.bf16.msra.mxu0 %v1849
        %2180 = vmatpush.bf16.msra.mxu0 %v1845
        %2181 = vmatpush.bf16.msra.mxu0 %v1841
        %2182 = vmatpush.bf16.msra.mxu0 %v1837
        %2183 = vmatpush.bf16.msra.mxu0 %v1833
        %2184 = vmatpush.bf16.msra.mxu0 %v1829
        %2185 = vmatmul.bf16.gmra.mxu0 %v1279
        %v2186 = vpop.f32.mrf.mxu0
        %v2187 = vadd.f32 %v2173, %v2186
        %v2188 = vpop.f32.mrf.mxu0
        %v2189 = vadd.f32 %v2175, %v2188
        %2190 = vdwg.mxu0
        %2191 = vmatpush.bf16.msra.mxu0 %v1889
        %2192 = vmatpush.bf16.msra.mxu0 %v1885
        %2193 = vmatpush.bf16.msra.mxu0 %v1881
        %2194 = vmatpush.bf16.msra.mxu0 %v1877
        %2195 = vmatpush.bf16.msra.mxu0 %v1873
        %2196 = vmatpush.bf16.msra.mxu0 %v1869
        %2197 = vmatpush.bf16.msra.mxu0 %v1865
        %2198 = vmatpush.bf16.msra.mxu0 %v1861
        %2199 = vmatmul.bf16.gmra.mxu0 %v1280
        %v2200 = vpop.f32.mrf.mxu0
        %v2201 = vadd.f32 %v2187, %v2200
        %v2202 = vpop.f32.mrf.mxu0
        %v2203 = vadd.f32 %v2189, %v2202
        %2204 = vdwg.mxu0
        %2205 = vmatpush.bf16.msra.mxu0 %v1921
        %2206 = vmatpush.bf16.msra.mxu0 %v1917
        %2207 = vmatpush.bf16.msra.mxu0 %v1913
        %2208 = vmatpush.bf16.msra.mxu0 %v1909
        %2209 = vmatpush.bf16.msra.mxu0 %v1905
        %2210 = vmatpush.bf16.msra.mxu0 %v1901
        %2211 = vmatpush.bf16.msra.mxu0 %v1897
        %2212 = vmatpush.bf16.msra.mxu0 %v1893
        %2213 = vmatmul.bf16.gmra.mxu0 %v1281
        %v2214 = vpop.f32.mrf.mxu0
        %v2215 = vadd.f32 %v2201, %v2214
        %v2216 = vpop.f32.mrf.mxu0
        %v2217 = vadd.f32 %v2203, %v2216
        %2218 = vdwg.mxu0
        %2219 = vmatpush.bf16.msra.mxu0 %v1826
        %2220 = vmatpush.bf16.msra.mxu0 %v1822
        %2221 = vmatpush.bf16.msra.mxu0 %v1818
        %2222 = vmatpush.bf16.msra.mxu0 %v1814
        %2223 = vmatpush.bf16.msra.mxu0 %v1810
        %2224 = vmatpush.bf16.msra.mxu0 %v1806
        %2225 = vmatpush.bf16.msra.mxu0 %v1802
        %2226 = vmatpush.bf16.msra.mxu0 %v1798
        %2227 = vmatmul.bf16.gmra.mxu0 %v1278
        %v2228 = vpop.f32.mrf.mxu0
        %v2229 = vadd.f32 0.0, %v2228
        %v2230 = vpop.f32.mrf.mxu0
        %v2231 = vadd.f32 0.0, %v2230
        %2232 = vdwg.mxu0
        %2233 = vmatpush.bf16.msra.mxu0 %v1858
        %2234 = vmatpush.bf16.msra.mxu0 %v1854
        %2235 = vmatpush.bf16.msra.mxu0 %v1850
        %2236 = vmatpush.bf16.msra.mxu0 %v1846
        %2237 = vmatpush.bf16.msra.mxu0 %v1842
        %2238 = vmatpush.bf16.msra.mxu0 %v1838
        %2239 = vmatpush.bf16.msra.mxu0 %v1834
        %2240 = vmatpush.bf16.msra.mxu0 %v1830
        %2241 = vmatmul.bf16.gmra.mxu0 %v1279
        %v2242 = vpop.f32.mrf.mxu0
        %v2243 = vadd.f32 %v2229, %v2242
        %v2244 = vpop.f32.mrf.mxu0
        %v2245 = vadd.f32 %v2231, %v2244
        %2246 = vdwg.mxu0
        %2247 = vmatpush.bf16.msra.mxu0 %v1890
        %2248 = vmatpush.bf16.msra.mxu0 %v1886
        %2249 = vmatpush.bf16.msra.mxu0 %v1882
        %2250 = vmatpush.bf16.msra.mxu0 %v1878
        %2251 = vmatpush.bf16.msra.mxu0 %v1874
        %2252 = vmatpush.bf16.msra.mxu0 %v1870
        %2253 = vmatpush.bf16.msra.mxu0 %v1866
        %2254 = vmatpush.bf16.msra.mxu0 %v1862
        %2255 = vmatmul.bf16.gmra.mxu0 %v1280
        %v2256 = vpop.f32.mrf.mxu0
        %v2257 = vadd.f32 %v2243, %v2256
        %v2258 = vpop.f32.mrf.mxu0
        %v2259 = vadd.f32 %v2245, %v2258
        %2260 = vdwg.mxu0
        %2261 = vmatpush.bf16.msra.mxu0 %v1922
        %2262 = vmatpush.bf16.msra.mxu0 %v1918
        %2263 = vmatpush.bf16.msra.mxu0 %v1914
        %2264 = vmatpush.bf16.msra.mxu0 %v1910
        %2265 = vmatpush.bf16.msra.mxu0 %v1906
        %2266 = vmatpush.bf16.msra.mxu0 %v1902
        %2267 = vmatpush.bf16.msra.mxu0 %v1898
        %2268 = vmatpush.bf16.msra.mxu0 %v1894
        %2269 = vmatmul.bf16.gmra.mxu0 %v1281
        %v2270 = vpop.f32.mrf.mxu0
        %v2271 = vadd.f32 %v2257, %v2270
        %v2272 = vpop.f32.mrf.mxu0
        %v2273 = vadd.f32 %v2259, %v2272
        %2274 = vdwg.mxu0
        %vm2275 = vsmask.f32 4352
        %v2277 = vshrl.u32 %v1138, 16
        %v2279 = vrot.slane %v2277, 3
        %v2280 = vshll.u32 %v1138, 16
        %v2282 = vrot.slane %v2280, 4
        %v2283 = vor.u32 %v2279, %v2282
        %v2285 = vshrl.u32 %v1142, 16
        %v2287 = vrot.slane %v2285, 3
        %v2288 = vshll.u32 %v1142, 16
        %v2290 = vrot.slane %v2288, 4
        %v2291 = vor.u32 %v2287, %v2290
        %v2292 = vsel %vm2275, %v2283, %v2291
        %v2294 = vshrl.u32 %v1139, 16
        %v2296 = vrot.slane %v2294, 3
        %v2297 = vshll.u32 %v1139, 16
        %v2299 = vrot.slane %v2297, 4
        %v2300 = vor.u32 %v2296, %v2299
        %v2302 = vshrl.u32 %v1143, 16
        %v2304 = vrot.slane %v2302, 3
        %v2305 = vshll.u32 %v1143, 16
        %v2307 = vrot.slane %v2305, 4
        %v2308 = vor.u32 %v2304, %v2307
        %v2309 = vsel %vm2275, %v2300, %v2308
        %v2311 = vshrl.u32 %v1140, 16
        %v2313 = vrot.slane %v2311, 3
        %v2314 = vshll.u32 %v1140, 16
        %v2316 = vrot.slane %v2314, 4
        %v2317 = vor.u32 %v2313, %v2316
        %v2319 = vshrl.u32 %v1144, 16
        %v2321 = vrot.slane %v2319, 3
        %v2322 = vshll.u32 %v1144, 16
        %v2324 = vrot.slane %v2322, 4
        %v2325 = vor.u32 %v2321, %v2324
        %v2326 = vsel %vm2275, %v2317, %v2325
        %v2328 = vshrl.u32 %v1141, 16
        %v2330 = vrot.slane %v2328, 3
        %v2331 = vshll.u32 %v1141, 16
        %v2333 = vrot.slane %v2331, 4
        %v2334 = vor.u32 %v2330, %v2333
        %v2336 = vshrl.u32 %v1145, 16
        %v2338 = vrot.slane %v2336, 3
        %v2339 = vshll.u32 %v1145, 16
        %v2341 = vrot.slane %v2339, 4
        %v2342 = vor.u32 %v2338, %v2341
        %v2343 = vsel %vm2275, %v2334, %v2342
        %v2476 = vunpack.c.l.b16 %v1146
        %v2477 = vunpack.c.h.b16 %v1146
        %v2478 = vunpack.c.l.b16 %v1147
        %v2479 = vunpack.c.h.b16 %v1147
        %v2480 = vunpack.c.l.b16 %v1148
        %v2481 = vunpack.c.h.b16 %v1148
        %v2482 = vunpack.c.l.b16 %v1149
        %v2483 = vunpack.c.h.b16 %v1149
        %v2484 = vunpack.c.l.b16 %v1150
        %v2485 = vunpack.c.h.b16 %v1150
        %v2486 = vunpack.c.l.b16 %v1151
        %v2487 = vunpack.c.h.b16 %v1151
        %v2488 = vunpack.c.l.b16 %v1152
        %v2489 = vunpack.c.h.b16 %v1152
        %v2490 = vunpack.c.l.b16 %v1153
        %v2491 = vunpack.c.h.b16 %v1153
        %v2492 = vunpack.c.l.b16 %v1154
        %v2493 = vunpack.c.h.b16 %v1154
        %v2494 = vunpack.c.l.b16 %v1155
        %v2495 = vunpack.c.h.b16 %v1155
        %v2496 = vunpack.c.l.b16 %v1156
        %v2497 = vunpack.c.h.b16 %v1156
        %v2498 = vunpack.c.l.b16 %v1157
        %v2499 = vunpack.c.h.b16 %v1157
        %v2500 = vunpack.c.l.b16 %v1158
        %v2501 = vunpack.c.h.b16 %v1158
        %v2502 = vunpack.c.l.b16 %v1159
        %v2503 = vunpack.c.h.b16 %v1159
        %v2504 = vunpack.c.l.b16 %v1160
        %v2505 = vunpack.c.h.b16 %v1160
        %v2506 = vunpack.c.l.b16 %v1161
        %v2507 = vunpack.c.h.b16 %v1161
        %v2508 = vunpack.c.l.b16 %v1162
        %v2509 = vunpack.c.h.b16 %v1162
        %v2510 = vunpack.c.l.b16 %v1163
        %v2511 = vunpack.c.h.b16 %v1163
        %v2512 = vunpack.c.l.b16 %v1164
        %v2513 = vunpack.c.h.b16 %v1164
        %v2514 = vunpack.c.l.b16 %v1165
        %v2515 = vunpack.c.h.b16 %v1165
        %v2516 = vunpack.c.l.b16 %v1166
        %v2517 = vunpack.c.h.b16 %v1166
        %v2518 = vunpack.c.l.b16 %v1167
        %v2519 = vunpack.c.h.b16 %v1167
        %v2520 = vunpack.c.l.b16 %v1168
        %v2521 = vunpack.c.h.b16 %v1168
        %v2522 = vunpack.c.l.b16 %v1169
        %v2523 = vunpack.c.h.b16 %v1169
        %v2524 = vunpack.c.l.b16 %v1170
        %v2525 = vunpack.c.h.b16 %v1170
        %v2526 = vunpack.c.l.b16 %v1171
        %v2527 = vunpack.c.h.b16 %v1171
        %v2528 = vunpack.c.l.b16 %v1172
        %v2529 = vunpack.c.h.b16 %v1172
        %v2530 = vunpack.c.l.b16 %v1173
        %v2531 = vunpack.c.h.b16 %v1173
        %v2532 = vunpack.c.l.b16 %v1174
        %v2533 = vunpack.c.h.b16 %v1174
        %v2534 = vunpack.c.l.b16 %v1175
        %v2535 = vunpack.c.h.b16 %v1175
        %v2536 = vunpack.c.l.b16 %v1176
        %v2537 = vunpack.c.h.b16 %v1176
        %v2538 = vunpack.c.l.b16 %v1177
        %v2539 = vunpack.c.h.b16 %v1177
        %v2540 = vunpack.c.l.b16 %v1178
        %v2541 = vunpack.c.h.b16 %v1178
        %v2542 = vunpack.c.l.b16 %v1179
        %v2543 = vunpack.c.h.b16 %v1179
        %v2544 = vunpack.c.l.b16 %v1180
        %v2545 = vunpack.c.h.b16 %v1180
        %v2546 = vunpack.c.l.b16 %v1181
        %v2547 = vunpack.c.h.b16 %v1181
        %v2548 = vunpack.c.l.b16 %v1182
        %v2549 = vunpack.c.h.b16 %v1182
        %v2550 = vunpack.c.l.b16 %v1183
        %v2551 = vunpack.c.h.b16 %v1183
        %v2552 = vunpack.c.l.b16 %v1184
        %v2553 = vunpack.c.h.b16 %v1184
        %v2554 = vunpack.c.l.b16 %v1185
        %v2555 = vunpack.c.h.b16 %v1185
        %v2556 = vunpack.c.l.b16 %v1186
        %v2557 = vunpack.c.h.b16 %v1186
        %v2558 = vunpack.c.l.b16 %v1187
        %v2559 = vunpack.c.h.b16 %v1187
        %v2560 = vunpack.c.l.b16 %v1188
        %v2561 = vunpack.c.h.b16 %v1188
        %v2562 = vunpack.c.l.b16 %v1189
        %v2563 = vunpack.c.h.b16 %v1189
        %v2564 = vunpack.c.l.b16 %v1190
        %v2565 = vunpack.c.h.b16 %v1190
        %v2566 = vunpack.c.l.b16 %v1191
        %v2567 = vunpack.c.h.b16 %v1191
        %v2568 = vunpack.c.l.b16 %v1192
        %v2569 = vunpack.c.h.b16 %v1192
        %v2570 = vunpack.c.l.b16 %v1193
        %v2571 = vunpack.c.h.b16 %v1193
        %v2572 = vunpack.c.l.b16 %v1194
        %v2573 = vunpack.c.h.b16 %v1194
        %v2574 = vunpack.c.l.b16 %v1195
        %v2575 = vunpack.c.h.b16 %v1195
        %v2576 = vunpack.c.l.b16 %v1196
        %v2577 = vunpack.c.h.b16 %v1196
        %v2578 = vunpack.c.l.b16 %v1197
        %v2579 = vunpack.c.h.b16 %v1197
        %v2580 = vunpack.c.l.b16 %v1198
        %v2581 = vunpack.c.h.b16 %v1198
        %v2582 = vunpack.c.l.b16 %v1199
        %v2583 = vunpack.c.h.b16 %v1199
        %v2584 = vunpack.c.l.b16 %v1200
        %v2585 = vunpack.c.h.b16 %v1200
        %v2586 = vunpack.c.l.b16 %v1201
        %v2587 = vunpack.c.h.b16 %v1201
        %v2588 = vunpack.c.l.b16 %v1202
        %v2589 = vunpack.c.h.b16 %v1202
        %v2590 = vunpack.c.l.b16 %v1203
        %v2591 = vunpack.c.h.b16 %v1203
        %v2592 = vunpack.c.l.b16 %v1204
        %v2593 = vunpack.c.h.b16 %v1204
        %v2594 = vunpack.c.l.b16 %v1205
        %v2595 = vunpack.c.h.b16 %v1205
        %v2596 = vunpack.c.l.b16 %v1206
        %v2597 = vunpack.c.h.b16 %v1206
        %v2598 = vunpack.c.l.b16 %v1207
        %v2599 = vunpack.c.h.b16 %v1207
        %v2600 = vunpack.c.l.b16 %v1208
        %v2601 = vunpack.c.h.b16 %v1208
        %v2602 = vunpack.c.l.b16 %v1209
        %v2603 = vunpack.c.h.b16 %v1209
        %v2604 = vunpack.c.l.b16 %v1210
        %v2605 = vunpack.c.h.b16 %v1210
        %v2606 = vunpack.c.l.b16 %v1211
        %v2607 = vunpack.c.h.b16 %v1211
        %v2608 = vunpack.c.l.b16 %v1212
        %v2609 = vunpack.c.h.b16 %v1212
        %v2610 = vunpack.c.l.b16 %v1213
        %v2611 = vunpack.c.h.b16 %v1213
        %v2612 = vunpack.c.l.b16 %v1214
        %v2613 = vunpack.c.h.b16 %v1214
        %v2614 = vunpack.c.l.b16 %v1215
        %v2615 = vunpack.c.h.b16 %v1215
        %v2616 = vunpack.c.l.b16 %v1216
        %v2617 = vunpack.c.h.b16 %v1216
        %v2618 = vunpack.c.l.b16 %v1217
        %v2619 = vunpack.c.h.b16 %v1217
        %v2620 = vunpack.c.l.b16 %v1218
        %v2621 = vunpack.c.h.b16 %v1218
        %v2622 = vunpack.c.l.b16 %v1219
        %v2623 = vunpack.c.h.b16 %v1219
        %v2624 = vunpack.c.l.b16 %v1220
        %v2625 = vunpack.c.h.b16 %v1220
        %v2626 = vunpack.c.l.b16 %v1221
        %v2627 = vunpack.c.h.b16 %v1221
        %v2628 = vunpack.c.l.b16 %v1222
        %v2629 = vunpack.c.h.b16 %v1222
        %v2630 = vunpack.c.l.b16 %v1223
        %v2631 = vunpack.c.h.b16 %v1223
        %v2632 = vunpack.c.l.b16 %v1224
        %v2633 = vunpack.c.h.b16 %v1224
        %v2634 = vunpack.c.l.b16 %v1225
        %v2635 = vunpack.c.h.b16 %v1225
        %v2636 = vunpack.c.l.b16 %v1226
        %v2637 = vunpack.c.h.b16 %v1226
        %v2638 = vunpack.c.l.b16 %v1227
        %v2639 = vunpack.c.h.b16 %v1227
        %v2640 = vunpack.c.l.b16 %v1228
        %v2641 = vunpack.c.h.b16 %v1228
        %v2642 = vunpack.c.l.b16 %v1229
        %v2643 = vunpack.c.h.b16 %v1229
        %v2644 = vunpack.c.l.b16 %v1230
        %v2645 = vunpack.c.h.b16 %v1230
        %v2646 = vunpack.c.l.b16 %v1231
        %v2647 = vunpack.c.h.b16 %v1231
        %v2648 = vunpack.c.l.b16 %v1232
        %v2649 = vunpack.c.h.b16 %v1232
        %v2650 = vunpack.c.l.b16 %v1233
        %v2651 = vunpack.c.h.b16 %v1233
        %v2652 = vunpack.c.l.b16 %v1234
        %v2653 = vunpack.c.h.b16 %v1234
        %v2654 = vunpack.c.l.b16 %v1235
        %v2655 = vunpack.c.h.b16 %v1235
        %v2656 = vunpack.c.l.b16 %v1236
        %v2657 = vunpack.c.h.b16 %v1236
        %v2658 = vunpack.c.l.b16 %v1237
        %v2659 = vunpack.c.h.b16 %v1237
        %v2660 = vunpack.c.l.b16 %v1238
        %v2661 = vunpack.c.h.b16 %v1238
        %v2662 = vunpack.c.l.b16 %v1239
        %v2663 = vunpack.c.h.b16 %v1239
        %v2664 = vunpack.c.l.b16 %v1240
        %v2665 = vunpack.c.h.b16 %v1240
        %v2666 = vunpack.c.l.b16 %v1241
        %v2667 = vunpack.c.h.b16 %v1241
        %v2668 = vunpack.c.l.b16 %v1242
        %v2669 = vunpack.c.h.b16 %v1242
        %v2670 = vunpack.c.l.b16 %v1243
        %v2671 = vunpack.c.h.b16 %v1243
        %v2672 = vunpack.c.l.b16 %v1244
        %v2673 = vunpack.c.h.b16 %v1244
        %v2674 = vunpack.c.l.b16 %v1245
        %v2675 = vunpack.c.h.b16 %v1245
        %v2676 = vunpack.c.l.b16 %v1246
        %v2677 = vunpack.c.h.b16 %v1246
        %v2678 = vunpack.c.l.b16 %v1247
        %v2679 = vunpack.c.h.b16 %v1247
        %v2680 = vunpack.c.l.b16 %v1248
        %v2681 = vunpack.c.h.b16 %v1248
        %v2682 = vunpack.c.l.b16 %v1249
        %v2683 = vunpack.c.h.b16 %v1249
        %v2684 = vunpack.c.l.b16 %v1250
        %v2685 = vunpack.c.h.b16 %v1250
        %v2686 = vunpack.c.l.b16 %v1251
        %v2687 = vunpack.c.h.b16 %v1251
        %v2688 = vunpack.c.l.b16 %v1252
        %v2689 = vunpack.c.h.b16 %v1252
        %v2690 = vunpack.c.l.b16 %v1253
        %v2691 = vunpack.c.h.b16 %v1253
        %v2692 = vunpack.c.l.b16 %v1254
        %v2693 = vunpack.c.h.b16 %v1254
        %v2694 = vunpack.c.l.b16 %v1255
        %v2695 = vunpack.c.h.b16 %v1255
        %v2696 = vunpack.c.l.b16 %v1256
        %v2697 = vunpack.c.h.b16 %v1256
        %v2698 = vunpack.c.l.b16 %v1257
        %v2699 = vunpack.c.h.b16 %v1257
        %v2700 = vunpack.c.l.b16 %v1258
        %v2701 = vunpack.c.h.b16 %v1258
        %v2702 = vunpack.c.l.b16 %v1259
        %v2703 = vunpack.c.h.b16 %v1259
        %v2704 = vunpack.c.l.b16 %v1260
        %v2705 = vunpack.c.h.b16 %v1260
        %v2706 = vunpack.c.l.b16 %v1261
        %v2707 = vunpack.c.h.b16 %v1261
        %v2708 = vunpack.c.l.b16 %v1262
        %v2709 = vunpack.c.h.b16 %v1262
        %v2710 = vunpack.c.l.b16 %v1263
        %v2711 = vunpack.c.h.b16 %v1263
        %v2712 = vunpack.c.l.b16 %v1264
        %v2713 = vunpack.c.h.b16 %v1264
        %v2714 = vunpack.c.l.b16 %v1265
        %v2715 = vunpack.c.h.b16 %v1265
        %v2716 = vunpack.c.l.b16 %v1266
        %v2717 = vunpack.c.h.b16 %v1266
        %v2718 = vunpack.c.l.b16 %v1267
        %v2719 = vunpack.c.h.b16 %v1267
        %v2720 = vunpack.c.l.b16 %v1268
        %v2721 = vunpack.c.h.b16 %v1268
        %v2722 = vunpack.c.l.b16 %v1269
        %v2723 = vunpack.c.h.b16 %v1269
        %v2724 = vunpack.c.l.b16 %v1270
        %v2725 = vunpack.c.h.b16 %v1270
        %v2726 = vunpack.c.l.b16 %v1271
        %v2727 = vunpack.c.h.b16 %v1271
        %v2728 = vunpack.c.l.b16 %v1272
        %v2729 = vunpack.c.h.b16 %v1272
        %v2730 = vunpack.c.l.b16 %v1273
        %v2731 = vunpack.c.h.b16 %v1273
        %v2732 = vpack.c.b16 %v2480, %v2476
        %v2733 = vpack.c.b16 %v2481, %v2477
        %v2734 = vpack.c.b16 %v2482, %v2478
        %v2735 = vpack.c.b16 %v2483, %v2479
        %v2736 = vpack.c.b16 %v2488, %v2484
        %v2737 = vpack.c.b16 %v2489, %v2485
        %v2738 = vpack.c.b16 %v2490, %v2486
        %v2739 = vpack.c.b16 %v2491, %v2487
        %v2740 = vpack.c.b16 %v2496, %v2492
        %v2741 = vpack.c.b16 %v2497, %v2493
        %v2742 = vpack.c.b16 %v2498, %v2494
        %v2743 = vpack.c.b16 %v2499, %v2495
        %v2744 = vpack.c.b16 %v2504, %v2500
        %v2745 = vpack.c.b16 %v2505, %v2501
        %v2746 = vpack.c.b16 %v2506, %v2502
        %v2747 = vpack.c.b16 %v2507, %v2503
        %v2748 = vpack.c.b16 %v2512, %v2508
        %v2749 = vpack.c.b16 %v2513, %v2509
        %v2750 = vpack.c.b16 %v2514, %v2510
        %v2751 = vpack.c.b16 %v2515, %v2511
        %v2752 = vpack.c.b16 %v2520, %v2516
        %v2753 = vpack.c.b16 %v2521, %v2517
        %v2754 = vpack.c.b16 %v2522, %v2518
        %v2755 = vpack.c.b16 %v2523, %v2519
        %v2756 = vpack.c.b16 %v2528, %v2524
        %v2757 = vpack.c.b16 %v2529, %v2525
        %v2758 = vpack.c.b16 %v2530, %v2526
        %v2759 = vpack.c.b16 %v2531, %v2527
        %v2760 = vpack.c.b16 %v2536, %v2532
        %v2761 = vpack.c.b16 %v2537, %v2533
        %v2762 = vpack.c.b16 %v2538, %v2534
        %v2763 = vpack.c.b16 %v2539, %v2535
        %v2764 = vpack.c.b16 %v2544, %v2540
        %v2765 = vpack.c.b16 %v2545, %v2541
        %v2766 = vpack.c.b16 %v2546, %v2542
        %v2767 = vpack.c.b16 %v2547, %v2543
        %v2768 = vpack.c.b16 %v2552, %v2548
        %v2769 = vpack.c.b16 %v2553, %v2549
        %v2770 = vpack.c.b16 %v2554, %v2550
        %v2771 = vpack.c.b16 %v2555, %v2551
        %v2772 = vpack.c.b16 %v2560, %v2556
        %v2773 = vpack.c.b16 %v2561, %v2557
        %v2774 = vpack.c.b16 %v2562, %v2558
        %v2775 = vpack.c.b16 %v2563, %v2559
        %v2776 = vpack.c.b16 %v2568, %v2564
        %v2777 = vpack.c.b16 %v2569, %v2565
        %v2778 = vpack.c.b16 %v2570, %v2566
        %v2779 = vpack.c.b16 %v2571, %v2567
        %v2780 = vpack.c.b16 %v2576, %v2572
        %v2781 = vpack.c.b16 %v2577, %v2573
        %v2782 = vpack.c.b16 %v2578, %v2574
        %v2783 = vpack.c.b16 %v2579, %v2575
        %v2784 = vpack.c.b16 %v2584, %v2580
        %v2785 = vpack.c.b16 %v2585, %v2581
        %v2786 = vpack.c.b16 %v2586, %v2582
        %v2787 = vpack.c.b16 %v2587, %v2583
        %v2788 = vpack.c.b16 %v2592, %v2588
        %v2789 = vpack.c.b16 %v2593, %v2589
        %v2790 = vpack.c.b16 %v2594, %v2590
        %v2791 = vpack.c.b16 %v2595, %v2591
        %v2792 = vpack.c.b16 %v2600, %v2596
        %v2793 = vpack.c.b16 %v2601, %v2597
        %v2794 = vpack.c.b16 %v2602, %v2598
        %v2795 = vpack.c.b16 %v2603, %v2599
        %v2796 = vpack.c.b16 %v2608, %v2604
        %v2797 = vpack.c.b16 %v2609, %v2605
        %v2798 = vpack.c.b16 %v2610, %v2606
        %v2799 = vpack.c.b16 %v2611, %v2607
        %v2800 = vpack.c.b16 %v2616, %v2612
        %v2801 = vpack.c.b16 %v2617, %v2613
        %v2802 = vpack.c.b16 %v2618, %v2614
        %v2803 = vpack.c.b16 %v2619, %v2615
        %v2804 = vpack.c.b16 %v2624, %v2620
        %v2805 = vpack.c.b16 %v2625, %v2621
        %v2806 = vpack.c.b16 %v2626, %v2622
        %v2807 = vpack.c.b16 %v2627, %v2623
        %v2808 = vpack.c.b16 %v2632, %v2628
        %v2809 = vpack.c.b16 %v2633, %v2629
        %v2810 = vpack.c.b16 %v2634, %v2630
        %v2811 = vpack.c.b16 %v2635, %v2631
        %v2812 = vpack.c.b16 %v2640, %v2636
        %v2813 = vpack.c.b16 %v2641, %v2637
        %v2814 = vpack.c.b16 %v2642, %v2638
        %v2815 = vpack.c.b16 %v2643, %v2639
        %v2816 = vpack.c.b16 %v2648, %v2644
        %v2817 = vpack.c.b16 %v2649, %v2645
        %v2818 = vpack.c.b16 %v2650, %v2646
        %v2819 = vpack.c.b16 %v2651, %v2647
        %v2820 = vpack.c.b16 %v2656, %v2652
        %v2821 = vpack.c.b16 %v2657, %v2653
        %v2822 = vpack.c.b16 %v2658, %v2654
        %v2823 = vpack.c.b16 %v2659, %v2655
        %v2824 = vpack.c.b16 %v2664, %v2660
        %v2825 = vpack.c.b16 %v2665, %v2661
        %v2826 = vpack.c.b16 %v2666, %v2662
        %v2827 = vpack.c.b16 %v2667, %v2663
        %v2828 = vpack.c.b16 %v2672, %v2668
        %v2829 = vpack.c.b16 %v2673, %v2669
        %v2830 = vpack.c.b16 %v2674, %v2670
        %v2831 = vpack.c.b16 %v2675, %v2671
        %v2832 = vpack.c.b16 %v2680, %v2676
        %v2833 = vpack.c.b16 %v2681, %v2677
        %v2834 = vpack.c.b16 %v2682, %v2678
        %v2835 = vpack.c.b16 %v2683, %v2679
        %v2836 = vpack.c.b16 %v2688, %v2684
        %v2837 = vpack.c.b16 %v2689, %v2685
        %v2838 = vpack.c.b16 %v2690, %v2686
        %v2839 = vpack.c.b16 %v2691, %v2687
        %v2840 = vpack.c.b16 %v2696, %v2692
        %v2841 = vpack.c.b16 %v2697, %v2693
        %v2842 = vpack.c.b16 %v2698, %v2694
        %v2843 = vpack.c.b16 %v2699, %v2695
        %v2844 = vpack.c.b16 %v2704, %v2700
        %v2845 = vpack.c.b16 %v2705, %v2701
        %v2846 = vpack.c.b16 %v2706, %v2702
        %v2847 = vpack.c.b16 %v2707, %v2703
        %v2848 = vpack.c.b16 %v2712, %v2708
        %v2849 = vpack.c.b16 %v2713, %v2709
        %v2850 = vpack.c.b16 %v2714, %v2710
        %v2851 = vpack.c.b16 %v2715, %v2711
        %v2852 = vpack.c.b16 %v2720, %v2716
        %v2853 = vpack.c.b16 %v2721, %v2717
        %v2854 = vpack.c.b16 %v2722, %v2718
        %v2855 = vpack.c.b16 %v2723, %v2719
        %v2856 = vpack.c.b16 %v2728, %v2724
        %v2857 = vpack.c.b16 %v2729, %v2725
        %v2858 = vpack.c.b16 %v2730, %v2726
        %v2859 = vpack.c.b16 %v2731, %v2727
        %2988 = vmatpush.bf16.msra.mxu0 %v2760
        %2989 = vmatpush.bf16.msra.mxu0 %v2756
        %2990 = vmatpush.bf16.msra.mxu0 %v2752
        %2991 = vmatpush.bf16.msra.mxu0 %v2748
        %2992 = vmatpush.bf16.msra.mxu0 %v2744
        %2993 = vmatpush.bf16.msra.mxu0 %v2740
        %2994 = vmatpush.bf16.msra.mxu0 %v2736
        %2995 = vmatpush.bf16.msra.mxu0 %v2732
        %2996 = vmatmul.bf16.gmra.mxu0 %v2292
        %v2997 = vpop.f32.mrf.mxu0
        %v2998 = vadd.f32 %v2103, %v2997
        %v2999 = vpop.f32.mrf.mxu0
        %v3000 = vadd.f32 %v2105, %v2999
        %3001 = vdwg.mxu0
        %3002 = vmatpush.bf16.msra.mxu0 %v2792
        %3003 = vmatpush.bf16.msra.mxu0 %v2788
        %3004 = vmatpush.bf16.msra.mxu0 %v2784
        %3005 = vmatpush.bf16.msra.mxu0 %v2780
        %3006 = vmatpush.bf16.msra.mxu0 %v2776
        %3007 = vmatpush.bf16.msra.mxu0 %v2772
        %3008 = vmatpush.bf16.msra.mxu0 %v2768
        %3009 = vmatpush.bf16.msra.mxu0 %v2764
        %3010 = vmatmul.bf16.gmra.mxu0 %v2309
        %v3011 = vpop.f32.mrf.mxu0
        %v3012 = vadd.f32 %v2998, %v3011
        %v3013 = vpop.f32.mrf.mxu0
        %v3014 = vadd.f32 %v3000, %v3013
        %3015 = vdwg.mxu0
        %3016 = vmatpush.bf16.msra.mxu0 %v2824
        %3017 = vmatpush.bf16.msra.mxu0 %v2820
        %3018 = vmatpush.bf16.msra.mxu0 %v2816
        %3019 = vmatpush.bf16.msra.mxu0 %v2812
        %3020 = vmatpush.bf16.msra.mxu0 %v2808
        %3021 = vmatpush.bf16.msra.mxu0 %v2804
        %3022 = vmatpush.bf16.msra.mxu0 %v2800
        %3023 = vmatpush.bf16.msra.mxu0 %v2796
        %3024 = vmatmul.bf16.gmra.mxu0 %v2326
        %v3025 = vpop.f32.mrf.mxu0
        %v3026 = vadd.f32 %v3012, %v3025
        %v3027 = vpop.f32.mrf.mxu0
        %v3028 = vadd.f32 %v3014, %v3027
        %3029 = vdwg.mxu0
        %3030 = vmatpush.bf16.msra.mxu0 %v2856
        %3031 = vmatpush.bf16.msra.mxu0 %v2852
        %3032 = vmatpush.bf16.msra.mxu0 %v2848
        %3033 = vmatpush.bf16.msra.mxu0 %v2844
        %3034 = vmatpush.bf16.msra.mxu0 %v2840
        %3035 = vmatpush.bf16.msra.mxu0 %v2836
        %3036 = vmatpush.bf16.msra.mxu0 %v2832
        %3037 = vmatpush.bf16.msra.mxu0 %v2828
        %3038 = vmatmul.bf16.gmra.mxu0 %v2343
        %v3039 = vpop.f32.mrf.mxu0
        %v3040 = vadd.f32 %v3026, %v3039
        %v3041 = vpop.f32.mrf.mxu0
        %v3042 = vadd.f32 %v3028, %v3041
        %3043 = vdwg.mxu0
        %3044 = vmatpush.bf16.msra.mxu0 %v2761
        %3045 = vmatpush.bf16.msra.mxu0 %v2757
        %3046 = vmatpush.bf16.msra.mxu0 %v2753
        %3047 = vmatpush.bf16.msra.mxu0 %v2749
        %3048 = vmatpush.bf16.msra.mxu0 %v2745
        %3049 = vmatpush.bf16.msra.mxu0 %v2741
        %3050 = vmatpush.bf16.msra.mxu0 %v2737
        %3051 = vmatpush.bf16.msra.mxu0 %v2733
        %3052 = vmatmul.bf16.gmra.mxu0 %v2292
        %v3053 = vpop.f32.mrf.mxu0
        %v3054 = vadd.f32 %v2159, %v3053
        %v3055 = vpop.f32.mrf.mxu0
        %v3056 = vadd.f32 %v2161, %v3055
        %3057 = vdwg.mxu0
        %3058 = vmatpush.bf16.msra.mxu0 %v2793
        %3059 = vmatpush.bf16.msra.mxu0 %v2789
        %3060 = vmatpush.bf16.msra.mxu0 %v2785
        %3061 = vmatpush.bf16.msra.mxu0 %v2781
        %3062 = vmatpush.bf16.msra.mxu0 %v2777
        %3063 = vmatpush.bf16.msra.mxu0 %v2773
        %3064 = vmatpush.bf16.msra.mxu0 %v2769
        %3065 = vmatpush.bf16.msra.mxu0 %v2765
        %3066 = vmatmul.bf16.gmra.mxu0 %v2309
        %v3067 = vpop.f32.mrf.mxu0
        %v3068 = vadd.f32 %v3054, %v3067
        %v3069 = vpop.f32.mrf.mxu0
        %v3070 = vadd.f32 %v3056, %v3069
        %3071 = vdwg.mxu0
        %3072 = vmatpush.bf16.msra.mxu0 %v2825
        %3073 = vmatpush.bf16.msra.mxu0 %v2821
        %3074 = vmatpush.bf16.msra.mxu0 %v2817
        %3075 = vmatpush.bf16.msra.mxu0 %v2813
        %3076 = vmatpush.bf16.msra.mxu0 %v2809
        %3077 = vmatpush.bf16.msra.mxu0 %v2805
        %3078 = vmatpush.bf16.msra.mxu0 %v2801
        %3079 = vmatpush.bf16.msra.mxu0 %v2797
        %3080 = vmatmul.bf16.gmra.mxu0 %v2326
        %v3081 = vpop.f32.mrf.mxu0
        %v3082 = vadd.f32 %v3068, %v3081
        %v3083 = vpop.f32.mrf.mxu0
        %v3084 = vadd.f32 %v3070, %v3083
        %3085 = vdwg.mxu0
        %3086 = vmatpush.bf16.msra.mxu0 %v2857
        %3087 = vmatpush.bf16.msra.mxu0 %v2853
        %3088 = vmatpush.bf16.msra.mxu0 %v2849
        %3089 = vmatpush.bf16.msra.mxu0 %v2845
        %3090 = vmatpush.bf16.msra.mxu0 %v2841
        %3091 = vmatpush.bf16.msra.mxu0 %v2837
        %3092 = vmatpush.bf16.msra.mxu0 %v2833
        %3093 = vmatpush.bf16.msra.mxu0 %v2829
        %3094 = vmatmul.bf16.gmra.mxu0 %v2343
        %v3095 = vpop.f32.mrf.mxu0
        %v3096 = vadd.f32 %v3082, %v3095
        %v3097 = vpop.f32.mrf.mxu0
        %v3098 = vadd.f32 %v3084, %v3097
        %3099 = vdwg.mxu0
        %3100 = vmatpush.bf16.msra.mxu0 %v2762
        %3101 = vmatpush.bf16.msra.mxu0 %v2758
        %3102 = vmatpush.bf16.msra.mxu0 %v2754
        %3103 = vmatpush.bf16.msra.mxu0 %v2750
        %3104 = vmatpush.bf16.msra.mxu0 %v2746
        %3105 = vmatpush.bf16.msra.mxu0 %v2742
        %3106 = vmatpush.bf16.msra.mxu0 %v2738
        %3107 = vmatpush.bf16.msra.mxu0 %v2734
        %3108 = vmatmul.bf16.gmra.mxu0 %v2292
        %v3109 = vpop.f32.mrf.mxu0
        %v3110 = vadd.f32 %v2215, %v3109
        %v3111 = vpop.f32.mrf.mxu0
        %v3112 = vadd.f32 %v2217, %v3111
        %3113 = vdwg.mxu0
        %3114 = vmatpush.bf16.msra.mxu0 %v2794
        %3115 = vmatpush.bf16.msra.mxu0 %v2790
        %3116 = vmatpush.bf16.msra.mxu0 %v2786
        %3117 = vmatpush.bf16.msra.mxu0 %v2782
        %3118 = vmatpush.bf16.msra.mxu0 %v2778
        %3119 = vmatpush.bf16.msra.mxu0 %v2774
        %3120 = vmatpush.bf16.msra.mxu0 %v2770
        %3121 = vmatpush.bf16.msra.mxu0 %v2766
        %3122 = vmatmul.bf16.gmra.mxu0 %v2309
        %v3123 = vpop.f32.mrf.mxu0
        %v3124 = vadd.f32 %v3110, %v3123
        %v3125 = vpop.f32.mrf.mxu0
        %v3126 = vadd.f32 %v3112, %v3125
        %3127 = vdwg.mxu0
        %3128 = vmatpush.bf16.msra.mxu0 %v2826
        %3129 = vmatpush.bf16.msra.mxu0 %v2822
        %3130 = vmatpush.bf16.msra.mxu0 %v2818
        %3131 = vmatpush.bf16.msra.mxu0 %v2814
        %3132 = vmatpush.bf16.msra.mxu0 %v2810
        %3133 = vmatpush.bf16.msra.mxu0 %v2806
        %3134 = vmatpush.bf16.msra.mxu0 %v2802
        %3135 = vmatpush.bf16.msra.mxu0 %v2798
        %3136 = vmatmul.bf16.gmra.mxu0 %v2326
        %v3137 = vpop.f32.mrf.mxu0
        %v3138 = vadd.f32 %v3124, %v3137
        %v3139 = vpop.f32.mrf.mxu0
        %v3140 = vadd.f32 %v3126, %v3139
        %3141 = vdwg.mxu0
        %3142 = vmatpush.bf16.msra.mxu0 %v2858
        %3143 = vmatpush.bf16.msra.mxu0 %v2854
        %3144 = vmatpush.bf16.msra.mxu0 %v2850
        %3145 = vmatpush.bf16.msra.mxu0 %v2846
        %3146 = vmatpush.bf16.msra.mxu0 %v2842
        %3147 = vmatpush.bf16.msra.mxu0 %v2838
        %3148 = vmatpush.bf16.msra.mxu0 %v2834
        %3149 = vmatpush.bf16.msra.mxu0 %v2830
        %3150 = vmatmul.bf16.gmra.mxu0 %v2343
        %v3151 = vpop.f32.mrf.mxu0
        %v3152 = vadd.f32 %v3138, %v3151
        %v3153 = vpop.f32.mrf.mxu0
        %v3154 = vadd.f32 %v3140, %v3153
        %3155 = vdwg.mxu0
        %3156 = vmatpush.bf16.msra.mxu0 %v2763
        %3157 = vmatpush.bf16.msra.mxu0 %v2759
        %3158 = vmatpush.bf16.msra.mxu0 %v2755
        %3159 = vmatpush.bf16.msra.mxu0 %v2751
        %3160 = vmatpush.bf16.msra.mxu0 %v2747
        %3161 = vmatpush.bf16.msra.mxu0 %v2743
        %3162 = vmatpush.bf16.msra.mxu0 %v2739
        %3163 = vmatpush.bf16.msra.mxu0 %v2735
        %3164 = vmatmul.bf16.gmra.mxu0 %v2292
        %v3165 = vpop.f32.mrf.mxu0
        %v3166 = vadd.f32 %v2271, %v3165
        %v3167 = vpop.f32.mrf.mxu0
        %v3168 = vadd.f32 %v2273, %v3167
        %3169 = vdwg.mxu0
        %3170 = vmatpush.bf16.msra.mxu0 %v2795
        %3171 = vmatpush.bf16.msra.mxu0 %v2791
        %3172 = vmatpush.bf16.msra.mxu0 %v2787
        %3173 = vmatpush.bf16.msra.mxu0 %v2783
        %3174 = vmatpush.bf16.msra.mxu0 %v2779
        %3175 = vmatpush.bf16.msra.mxu0 %v2775
        %3176 = vmatpush.bf16.msra.mxu0 %v2771
        %3177 = vmatpush.bf16.msra.mxu0 %v2767
        %3178 = vmatmul.bf16.gmra.mxu0 %v2309
        %v3179 = vpop.f32.mrf.mxu0
        %v3180 = vadd.f32 %v3166, %v3179
        %v3181 = vpop.f32.mrf.mxu0
        %v3182 = vadd.f32 %v3168, %v3181
        %3183 = vdwg.mxu0
        %3184 = vmatpush.bf16.msra.mxu0 %v2827
        %3185 = vmatpush.bf16.msra.mxu0 %v2823
        %3186 = vmatpush.bf16.msra.mxu0 %v2819
        %3187 = vmatpush.bf16.msra.mxu0 %v2815
        %3188 = vmatpush.bf16.msra.mxu0 %v2811
        %3189 = vmatpush.bf16.msra.mxu0 %v2807
        %3190 = vmatpush.bf16.msra.mxu0 %v2803
        %3191 = vmatpush.bf16.msra.mxu0 %v2799
        %3192 = vmatmul.bf16.gmra.mxu0 %v2326
        %v3193 = vpop.f32.mrf.mxu0
        %v3194 = vadd.f32 %v3180, %v3193
        %v3195 = vpop.f32.mrf.mxu0
        %v3196 = vadd.f32 %v3182, %v3195
        %3197 = vdwg.mxu0
        %3198 = vmatpush.bf16.msra.mxu0 %v2859
        %3199 = vmatpush.bf16.msra.mxu0 %v2855
        %3200 = vmatpush.bf16.msra.mxu0 %v2851
        %3201 = vmatpush.bf16.msra.mxu0 %v2847
        %3202 = vmatpush.bf16.msra.mxu0 %v2843
        %3203 = vmatpush.bf16.msra.mxu0 %v2839
        %3204 = vmatpush.bf16.msra.mxu0 %v2835
        %3205 = vmatpush.bf16.msra.mxu0 %v2831
        %3206 = vmatmul.bf16.gmra.mxu0 %v2343
        %v3207 = vpop.f32.mrf.mxu0
        %v3208 = vadd.f32 %v3194, %v3207
        %v3209 = vpop.f32.mrf.mxu0
        %v3210 = vadd.f32 %v3196, %v3209
        %3211 = vdwg.mxu0
        %v3212 = vld [vmem:[#allocation2 + $0x20] sm:$0xfe]
        %v3213 = vld [vmem:[#allocation2 + $0x28] sm:$0xfe]
        %v3214 = vld [vmem:[#allocation2 + $0x30] sm:$0xfe]
        %v3215 = vld [vmem:[#allocation2 + $0x38] sm:$0xfe]
        %v3216 = vld [vmem:[#allocation2 + $0x40] sm:$0xff]
        %v3217 = vld [vmem:[#allocation2 + $0x48] sm:$0xff]
        %v3218 = vld [vmem:[#allocation2 + $0x50] sm:$0xff]
        %v3219 = vld [vmem:[#allocation2 + $0x58] sm:$0xff]
        %v3220 = vld [vmem:[#allocation2 + $0x60] sm:$0x1]
        %v3221 = vld [vmem:[#allocation2 + $0x68] sm:$0x1]
        %v3222 = vld [vmem:[#allocation2 + $0x70] sm:$0x1]
        %v3223 = vld [vmem:[#allocation2 + $0x78] sm:$0x1]
        %v3224 = vpack.c.bf16 %v3216, %v3212
        %v3225 = vpack.c.bf16 %v3217, %v3213
        %v3226 = vpack.c.bf16 %v3218, %v3214
        %v3227 = vpack.c.bf16 %v3219, %v3215
        %v3228 = vpack.c.bf16 %v3220, %v3220
        %v3229 = vpack.c.bf16 %v3221, %v3221
        %v3230 = vpack.c.bf16 %v3222, %v3222
        %v3231 = vpack.c.bf16 %v3223, %v3223
        %s3232 = scalar_lea.vmem [#allocation8], 2048
        %v3233 = vld [vmem:[%s3232] sm:$0xff]
        %v3234 = vld [vmem:[%s3232 + $0x8] sm:$0xff]
        %v3235 = vld [vmem:[%s3232 + $0x10] sm:$0xff]
        %v3236 = vld [vmem:[%s3232 + $0x18] sm:$0xff]
        %v3237 = vld [vmem:[%s3232 + $0x20] sm:$0xff]
        %v3238 = vld [vmem:[%s3232 + $0x28] sm:$0xff]
        %v3239 = vld [vmem:[%s3232 + $0x30] sm:$0xff]
        %v3240 = vld [vmem:[%s3232 + $0x38] sm:$0xff]
        %v3241 = vld [vmem:[%s3232 + $0x40] sm:$0xff]
        %v3242 = vld [vmem:[%s3232 + $0x48] sm:$0xff]
        %v3243 = vld [vmem:[%s3232 + $0x50] sm:$0xff]
        %v3244 = vld [vmem:[%s3232 + $0x58] sm:$0xff]
        %v3245 = vld [vmem:[%s3232 + $0x60] sm:$0xff]
        %v3246 = vld [vmem:[%s3232 + $0x68] sm:$0xff]
        %v3247 = vld [vmem:[%s3232 + $0x70] sm:$0xff]
        %v3248 = vld [vmem:[%s3232 + $0x78] sm:$0xff]
        %v3249 = vld [vmem:[%s3232 + $0x80] sm:$0xff]
        %v3250 = vld [vmem:[%s3232 + $0x88] sm:$0xff]
        %v3251 = vld [vmem:[%s3232 + $0x90] sm:$0xff]
        %v3252 = vld [vmem:[%s3232 + $0x98] sm:$0xff]
        %v3253 = vld [vmem:[%s3232 + $0xa0] sm:$0xff]
        %v3254 = vld [vmem:[%s3232 + $0xa8] sm:$0xff]
        %v3255 = vld [vmem:[%s3232 + $0xb0] sm:$0xff]
        %v3256 = vld [vmem:[%s3232 + $0xb8] sm:$0xff]
        %v3257 = vld [vmem:[%s3232 + $0xc0] sm:$0xff]
        %v3258 = vld [vmem:[%s3232 + $0xc8] sm:$0xff]
        %v3259 = vld [vmem:[%s3232 + $0xd0] sm:$0xff]
        %v3260 = vld [vmem:[%s3232 + $0xd8] sm:$0xff]
        %v3261 = vld [vmem:[%s3232 + $0xe0] sm:$0xff]
        %v3262 = vld [vmem:[%s3232 + $0xe8] sm:$0xff]
        %v3263 = vld [vmem:[%s3232 + $0xf0] sm:$0xff]
        %v3264 = vld [vmem:[%s3232 + $0xf8] sm:$0xff]
        %v3265 = vld [vmem:[%s3232 + $0x100] sm:$0xff]
        %v3266 = vld [vmem:[%s3232 + $0x108] sm:$0xff]
        %v3267 = vld [vmem:[%s3232 + $0x110] sm:$0xff]
        %v3268 = vld [vmem:[%s3232 + $0x118] sm:$0xff]
        %v3269 = vld [vmem:[%s3232 + $0x120] sm:$0xff]
        %v3270 = vld [vmem:[%s3232 + $0x128] sm:$0xff]
        %v3271 = vld [vmem:[%s3232 + $0x130] sm:$0xff]
        %v3272 = vld [vmem:[%s3232 + $0x138] sm:$0xff]
        %v3273 = vld [vmem:[%s3232 + $0x140] sm:$0xff]
        %v3274 = vld [vmem:[%s3232 + $0x148] sm:$0xff]
        %v3275 = vld [vmem:[%s3232 + $0x150] sm:$0xff]
        %v3276 = vld [vmem:[%s3232 + $0x158] sm:$0xff]
        %v3277 = vld [vmem:[%s3232 + $0x160] sm:$0xff]
        %v3278 = vld [vmem:[%s3232 + $0x168] sm:$0xff]
        %v3279 = vld [vmem:[%s3232 + $0x170] sm:$0xff]
        %v3280 = vld [vmem:[%s3232 + $0x178] sm:$0xff]
        %v3281 = vld [vmem:[%s3232 + $0x180] sm:$0xff]
        %v3282 = vld [vmem:[%s3232 + $0x188] sm:$0xff]
        %v3283 = vld [vmem:[%s3232 + $0x190] sm:$0xff]
        %v3284 = vld [vmem:[%s3232 + $0x198] sm:$0xff]
        %v3285 = vld [vmem:[%s3232 + $0x1a0] sm:$0xff]
        %v3286 = vld [vmem:[%s3232 + $0x1a8] sm:$0xff]
        %v3287 = vld [vmem:[%s3232 + $0x1b0] sm:$0xff]
        %v3288 = vld [vmem:[%s3232 + $0x1b8] sm:$0xff]
        %v3289 = vld [vmem:[%s3232 + $0x1c0] sm:$0xff]
        %v3290 = vld [vmem:[%s3232 + $0x1c8] sm:$0xff]
        %v3291 = vld [vmem:[%s3232 + $0x1d0] sm:$0xff]
        %v3292 = vld [vmem:[%s3232 + $0x1d8] sm:$0xff]
        %v3293 = vld [vmem:[%s3232 + $0x1e0] sm:$0xff]
        %v3294 = vld [vmem:[%s3232 + $0x1e8] sm:$0xff]
        %v3295 = vld [vmem:[%s3232 + $0x1f0] sm:$0xff]
        %v3296 = vld [vmem:[%s3232 + $0x1f8] sm:$0xff]
        %v3297 = vld [vmem:[%s3232 + $0x200] sm:$0xff]
        %v3298 = vld [vmem:[%s3232 + $0x208] sm:$0xff]
        %v3299 = vld [vmem:[%s3232 + $0x210] sm:$0xff]
        %v3300 = vld [vmem:[%s3232 + $0x218] sm:$0xff]
        %v3301 = vld [vmem:[%s3232 + $0x220] sm:$0xff]
        %v3302 = vld [vmem:[%s3232 + $0x228] sm:$0xff]
        %v3303 = vld [vmem:[%s3232 + $0x230] sm:$0xff]
        %v3304 = vld [vmem:[%s3232 + $0x238] sm:$0xff]
        %v3305 = vld [vmem:[%s3232 + $0x240] sm:$0xff]
        %v3306 = vld [vmem:[%s3232 + $0x248] sm:$0xff]
        %v3307 = vld [vmem:[%s3232 + $0x250] sm:$0xff]
        %v3308 = vld [vmem:[%s3232 + $0x258] sm:$0xff]
        %v3309 = vld [vmem:[%s3232 + $0x260] sm:$0xff]
        %v3310 = vld [vmem:[%s3232 + $0x268] sm:$0xff]
        %v3311 = vld [vmem:[%s3232 + $0x270] sm:$0xff]
        %v3312 = vld [vmem:[%s3232 + $0x278] sm:$0xff]
        %v3313 = vld [vmem:[%s3232 + $0x280] sm:$0xff]
        %v3314 = vld [vmem:[%s3232 + $0x288] sm:$0xff]
        %v3315 = vld [vmem:[%s3232 + $0x290] sm:$0xff]
        %v3316 = vld [vmem:[%s3232 + $0x298] sm:$0xff]
        %v3317 = vld [vmem:[%s3232 + $0x2a0] sm:$0xff]
        %v3318 = vld [vmem:[%s3232 + $0x2a8] sm:$0xff]
        %v3319 = vld [vmem:[%s3232 + $0x2b0] sm:$0xff]
        %v3320 = vld [vmem:[%s3232 + $0x2b8] sm:$0xff]
        %v3321 = vld [vmem:[%s3232 + $0x2c0] sm:$0xff]
        %v3322 = vld [vmem:[%s3232 + $0x2c8] sm:$0xff]
        %v3323 = vld [vmem:[%s3232 + $0x2d0] sm:$0xff]
        %v3324 = vld [vmem:[%s3232 + $0x2d8] sm:$0xff]
        %v3325 = vld [vmem:[%s3232 + $0x2e0] sm:$0xff]
        %v3326 = vld [vmem:[%s3232 + $0x2e8] sm:$0xff]
        %v3327 = vld [vmem:[%s3232 + $0x2f0] sm:$0xff]
        %v3328 = vld [vmem:[%s3232 + $0x2f8] sm:$0xff]
        %v3329 = vld [vmem:[%s3232 + $0x300] sm:$0xff]
        %v3330 = vld [vmem:[%s3232 + $0x308] sm:$0xff]
        %v3331 = vld [vmem:[%s3232 + $0x310] sm:$0xff]
        %v3332 = vld [vmem:[%s3232 + $0x318] sm:$0xff]
        %v3333 = vld [vmem:[%s3232 + $0x320] sm:$0xff]
        %v3334 = vld [vmem:[%s3232 + $0x328] sm:$0xff]
        %v3335 = vld [vmem:[%s3232 + $0x330] sm:$0xff]
        %v3336 = vld [vmem:[%s3232 + $0x338] sm:$0xff]
        %v3337 = vld [vmem:[%s3232 + $0x340] sm:$0xff]
        %v3338 = vld [vmem:[%s3232 + $0x348] sm:$0xff]
        %v3339 = vld [vmem:[%s3232 + $0x350] sm:$0xff]
        %v3340 = vld [vmem:[%s3232 + $0x358] sm:$0xff]
        %v3341 = vld [vmem:[%s3232 + $0x360] sm:$0xff]
        %v3342 = vld [vmem:[%s3232 + $0x368] sm:$0xff]
        %v3343 = vld [vmem:[%s3232 + $0x370] sm:$0xff]
        %v3344 = vld [vmem:[%s3232 + $0x378] sm:$0xff]
        %v3345 = vld [vmem:[%s3232 + $0x380] sm:$0xff]
        %v3346 = vld [vmem:[%s3232 + $0x388] sm:$0xff]
        %v3347 = vld [vmem:[%s3232 + $0x390] sm:$0xff]
        %v3348 = vld [vmem:[%s3232 + $0x398] sm:$0xff]
        %v3349 = vld [vmem:[%s3232 + $0x3a0] sm:$0xff]
        %v3350 = vld [vmem:[%s3232 + $0x3a8] sm:$0xff]
        %v3351 = vld [vmem:[%s3232 + $0x3b0] sm:$0xff]
        %v3352 = vld [vmem:[%s3232 + $0x3b8] sm:$0xff]
        %v3353 = vld [vmem:[%s3232 + $0x3c0] sm:$0xff]
        %v3354 = vld [vmem:[%s3232 + $0x3c8] sm:$0xff]
        %v3355 = vld [vmem:[%s3232 + $0x3d0] sm:$0xff]
        %v3356 = vld [vmem:[%s3232 + $0x3d8] sm:$0xff]
        %v3357 = vld [vmem:[%s3232 + $0x3e0] sm:$0xff]
        %v3358 = vld [vmem:[%s3232 + $0x3e8] sm:$0xff]
        %v3359 = vld [vmem:[%s3232 + $0x3f0] sm:$0xff]
        %v3360 = vld [vmem:[%s3232 + $0x3f8] sm:$0xff]
        %vm3361 = vsmask.f32 7424
        %v3363 = vshrl.u32 %v3224, 16
        %v3365 = vshll.u32 %v3224, 16
        %v3367 = vrot.slane %v3365, 1
        %v3368 = vor.u32 %v3363, %v3367
        %v3370 = vshll.u32 %v3228, 16
        %v3372 = vrot.slane %v3370, 1
        %v3373 = vsel %vm3361, %v3368, %v3372
        %v3375 = vshrl.u32 %v3225, 16
        %v3377 = vshll.u32 %v3225, 16
        %v3379 = vrot.slane %v3377, 1
        %v3380 = vor.u32 %v3375, %v3379
        %v3382 = vshll.u32 %v3229, 16
        %v3384 = vrot.slane %v3382, 1
        %v3385 = vsel %vm3361, %v3380, %v3384
        %v3387 = vshrl.u32 %v3226, 16
        %v3389 = vshll.u32 %v3226, 16
        %v3391 = vrot.slane %v3389, 1
        %v3392 = vor.u32 %v3387, %v3391
        %v3394 = vshll.u32 %v3230, 16
        %v3396 = vrot.slane %v3394, 1
        %v3397 = vsel %vm3361, %v3392, %v3396
        %v3399 = vshrl.u32 %v3227, 16
        %v3401 = vshll.u32 %v3227, 16
        %v3403 = vrot.slane %v3401, 1
        %v3404 = vor.u32 %v3399, %v3403
        %v3406 = vshll.u32 %v3231, 16
        %v3408 = vrot.slane %v3406, 1
        %v3409 = vsel %vm3361, %v3404, %v3408
        %v3542 = vunpack.c.l.b16 %v3233
        %v3543 = vunpack.c.h.b16 %v3233
        %v3544 = vunpack.c.l.b16 %v3234
        %v3545 = vunpack.c.h.b16 %v3234
        %v3546 = vunpack.c.l.b16 %v3235
        %v3547 = vunpack.c.h.b16 %v3235
        %v3548 = vunpack.c.l.b16 %v3236
        %v3549 = vunpack.c.h.b16 %v3236
        %v3550 = vunpack.c.l.b16 %v3237
        %v3551 = vunpack.c.h.b16 %v3237
        %v3552 = vunpack.c.l.b16 %v3238
        %v3553 = vunpack.c.h.b16 %v3238
        %v3554 = vunpack.c.l.b16 %v3239
        %v3555 = vunpack.c.h.b16 %v3239
        %v3556 = vunpack.c.l.b16 %v3240
        %v3557 = vunpack.c.h.b16 %v3240
        %v3558 = vunpack.c.l.b16 %v3241
        %v3559 = vunpack.c.h.b16 %v3241
        %v3560 = vunpack.c.l.b16 %v3242
        %v3561 = vunpack.c.h.b16 %v3242
        %v3562 = vunpack.c.l.b16 %v3243
        %v3563 = vunpack.c.h.b16 %v3243
        %v3564 = vunpack.c.l.b16 %v3244
        %v3565 = vunpack.c.h.b16 %v3244
        %v3566 = vunpack.c.l.b16 %v3245
        %v3567 = vunpack.c.h.b16 %v3245
        %v3568 = vunpack.c.l.b16 %v3246
        %v3569 = vunpack.c.h.b16 %v3246
        %v3570 = vunpack.c.l.b16 %v3247
        %v3571 = vunpack.c.h.b16 %v3247
        %v3572 = vunpack.c.l.b16 %v3248
        %v3573 = vunpack.c.h.b16 %v3248
        %v3574 = vunpack.c.l.b16 %v3249
        %v3575 = vunpack.c.h.b16 %v3249
        %v3576 = vunpack.c.l.b16 %v3250
        %v3577 = vunpack.c.h.b16 %v3250
        %v3578 = vunpack.c.l.b16 %v3251
        %v3579 = vunpack.c.h.b16 %v3251
        %v3580 = vunpack.c.l.b16 %v3252
        %v3581 = vunpack.c.h.b16 %v3252
        %v3582 = vunpack.c.l.b16 %v3253
        %v3583 = vunpack.c.h.b16 %v3253
        %v3584 = vunpack.c.l.b16 %v3254
        %v3585 = vunpack.c.h.b16 %v3254
        %v3586 = vunpack.c.l.b16 %v3255
        %v3587 = vunpack.c.h.b16 %v3255
        %v3588 = vunpack.c.l.b16 %v3256
        %v3589 = vunpack.c.h.b16 %v3256
        %v3590 = vunpack.c.l.b16 %v3257
        %v3591 = vunpack.c.h.b16 %v3257
        %v3592 = vunpack.c.l.b16 %v3258
        %v3593 = vunpack.c.h.b16 %v3258
        %v3594 = vunpack.c.l.b16 %v3259
        %v3595 = vunpack.c.h.b16 %v3259
        %v3596 = vunpack.c.l.b16 %v3260
        %v3597 = vunpack.c.h.b16 %v3260
        %v3598 = vunpack.c.l.b16 %v3261
        %v3599 = vunpack.c.h.b16 %v3261
        %v3600 = vunpack.c.l.b16 %v3262
        %v3601 = vunpack.c.h.b16 %v3262
        %v3602 = vunpack.c.l.b16 %v3263
        %v3603 = vunpack.c.h.b16 %v3263
        %v3604 = vunpack.c.l.b16 %v3264
        %v3605 = vunpack.c.h.b16 %v3264
        %v3606 = vunpack.c.l.b16 %v3265
        %v3607 = vunpack.c.h.b16 %v3265
        %v3608 = vunpack.c.l.b16 %v3266
        %v3609 = vunpack.c.h.b16 %v3266
        %v3610 = vunpack.c.l.b16 %v3267
        %v3611 = vunpack.c.h.b16 %v3267
        %v3612 = vunpack.c.l.b16 %v3268
        %v3613 = vunpack.c.h.b16 %v3268
        %v3614 = vunpack.c.l.b16 %v3269
        %v3615 = vunpack.c.h.b16 %v3269
        %v3616 = vunpack.c.l.b16 %v3270
        %v3617 = vunpack.c.h.b16 %v3270
        %v3618 = vunpack.c.l.b16 %v3271
        %v3619 = vunpack.c.h.b16 %v3271
        %v3620 = vunpack.c.l.b16 %v3272
        %v3621 = vunpack.c.h.b16 %v3272
        %v3622 = vunpack.c.l.b16 %v3273
        %v3623 = vunpack.c.h.b16 %v3273
        %v3624 = vunpack.c.l.b16 %v3274
        %v3625 = vunpack.c.h.b16 %v3274
        %v3626 = vunpack.c.l.b16 %v3275
        %v3627 = vunpack.c.h.b16 %v3275
        %v3628 = vunpack.c.l.b16 %v3276
        %v3629 = vunpack.c.h.b16 %v3276
        %v3630 = vunpack.c.l.b16 %v3277
        %v3631 = vunpack.c.h.b16 %v3277
        %v3632 = vunpack.c.l.b16 %v3278
        %v3633 = vunpack.c.h.b16 %v3278
        %v3634 = vunpack.c.l.b16 %v3279
        %v3635 = vunpack.c.h.b16 %v3279
        %v3636 = vunpack.c.l.b16 %v3280
        %v3637 = vunpack.c.h.b16 %v3280
        %v3638 = vunpack.c.l.b16 %v3281
        %v3639 = vunpack.c.h.b16 %v3281
        %v3640 = vunpack.c.l.b16 %v3282
        %v3641 = vunpack.c.h.b16 %v3282
        %v3642 = vunpack.c.l.b16 %v3283
        %v3643 = vunpack.c.h.b16 %v3283
        %v3644 = vunpack.c.l.b16 %v3284
        %v3645 = vunpack.c.h.b16 %v3284
        %v3646 = vunpack.c.l.b16 %v3285
        %v3647 = vunpack.c.h.b16 %v3285
        %v3648 = vunpack.c.l.b16 %v3286
        %v3649 = vunpack.c.h.b16 %v3286
        %v3650 = vunpack.c.l.b16 %v3287
        %v3651 = vunpack.c.h.b16 %v3287
        %v3652 = vunpack.c.l.b16 %v3288
        %v3653 = vunpack.c.h.b16 %v3288
        %v3654 = vunpack.c.l.b16 %v3289
        %v3655 = vunpack.c.h.b16 %v3289
        %v3656 = vunpack.c.l.b16 %v3290
        %v3657 = vunpack.c.h.b16 %v3290
        %v3658 = vunpack.c.l.b16 %v3291
        %v3659 = vunpack.c.h.b16 %v3291
        %v3660 = vunpack.c.l.b16 %v3292
        %v3661 = vunpack.c.h.b16 %v3292
        %v3662 = vunpack.c.l.b16 %v3293
        %v3663 = vunpack.c.h.b16 %v3293
        %v3664 = vunpack.c.l.b16 %v3294
        %v3665 = vunpack.c.h.b16 %v3294
        %v3666 = vunpack.c.l.b16 %v3295
        %v3667 = vunpack.c.h.b16 %v3295
        %v3668 = vunpack.c.l.b16 %v3296
        %v3669 = vunpack.c.h.b16 %v3296
        %v3670 = vunpack.c.l.b16 %v3297
        %v3671 = vunpack.c.h.b16 %v3297
        %v3672 = vunpack.c.l.b16 %v3298
        %v3673 = vunpack.c.h.b16 %v3298
        %v3674 = vunpack.c.l.b16 %v3299
        %v3675 = vunpack.c.h.b16 %v3299
        %v3676 = vunpack.c.l.b16 %v3300
        %v3677 = vunpack.c.h.b16 %v3300
        %v3678 = vunpack.c.l.b16 %v3301
        %v3679 = vunpack.c.h.b16 %v3301
        %v3680 = vunpack.c.l.b16 %v3302
        %v3681 = vunpack.c.h.b16 %v3302
        %v3682 = vunpack.c.l.b16 %v3303
        %v3683 = vunpack.c.h.b16 %v3303
        %v3684 = vunpack.c.l.b16 %v3304
        %v3685 = vunpack.c.h.b16 %v3304
        %v3686 = vunpack.c.l.b16 %v3305
        %v3687 = vunpack.c.h.b16 %v3305
        %v3688 = vunpack.c.l.b16 %v3306
        %v3689 = vunpack.c.h.b16 %v3306
        %v3690 = vunpack.c.l.b16 %v3307
        %v3691 = vunpack.c.h.b16 %v3307
        %v3692 = vunpack.c.l.b16 %v3308
        %v3693 = vunpack.c.h.b16 %v3308
        %v3694 = vunpack.c.l.b16 %v3309
        %v3695 = vunpack.c.h.b16 %v3309
        %v3696 = vunpack.c.l.b16 %v3310
        %v3697 = vunpack.c.h.b16 %v3310
        %v3698 = vunpack.c.l.b16 %v3311
        %v3699 = vunpack.c.h.b16 %v3311
        %v3700 = vunpack.c.l.b16 %v3312
        %v3701 = vunpack.c.h.b16 %v3312
        %v3702 = vunpack.c.l.b16 %v3313
        %v3703 = vunpack.c.h.b16 %v3313
        %v3704 = vunpack.c.l.b16 %v3314
        %v3705 = vunpack.c.h.b16 %v3314
        %v3706 = vunpack.c.l.b16 %v3315
        %v3707 = vunpack.c.h.b16 %v3315
        %v3708 = vunpack.c.l.b16 %v3316
        %v3709 = vunpack.c.h.b16 %v3316
        %v3710 = vunpack.c.l.b16 %v3317
        %v3711 = vunpack.c.h.b16 %v3317
        %v3712 = vunpack.c.l.b16 %v3318
        %v3713 = vunpack.c.h.b16 %v3318
        %v3714 = vunpack.c.l.b16 %v3319
        %v3715 = vunpack.c.h.b16 %v3319
        %v3716 = vunpack.c.l.b16 %v3320
        %v3717 = vunpack.c.h.b16 %v3320
        %v3718 = vunpack.c.l.b16 %v3321
        %v3719 = vunpack.c.h.b16 %v3321
        %v3720 = vunpack.c.l.b16 %v3322
        %v3721 = vunpack.c.h.b16 %v3322
        %v3722 = vunpack.c.l.b16 %v3323
        %v3723 = vunpack.c.h.b16 %v3323
        %v3724 = vunpack.c.l.b16 %v3324
        %v3725 = vunpack.c.h.b16 %v3324
        %v3726 = vunpack.c.l.b16 %v3325
        %v3727 = vunpack.c.h.b16 %v3325
        %v3728 = vunpack.c.l.b16 %v3326
        %v3729 = vunpack.c.h.b16 %v3326
        %v3730 = vunpack.c.l.b16 %v3327
        %v3731 = vunpack.c.h.b16 %v3327
        %v3732 = vunpack.c.l.b16 %v3328
        %v3733 = vunpack.c.h.b16 %v3328
        %v3734 = vunpack.c.l.b16 %v3329
        %v3735 = vunpack.c.h.b16 %v3329
        %v3736 = vunpack.c.l.b16 %v3330
        %v3737 = vunpack.c.h.b16 %v3330
        %v3738 = vunpack.c.l.b16 %v3331
        %v3739 = vunpack.c.h.b16 %v3331
        %v3740 = vunpack.c.l.b16 %v3332
        %v3741 = vunpack.c.h.b16 %v3332
        %v3742 = vunpack.c.l.b16 %v3333
        %v3743 = vunpack.c.h.b16 %v3333
        %v3744 = vunpack.c.l.b16 %v3334
        %v3745 = vunpack.c.h.b16 %v3334
        %v3746 = vunpack.c.l.b16 %v3335
        %v3747 = vunpack.c.h.b16 %v3335
        %v3748 = vunpack.c.l.b16 %v3336
        %v3749 = vunpack.c.h.b16 %v3336
        %v3750 = vunpack.c.l.b16 %v3337
        %v3751 = vunpack.c.h.b16 %v3337
        %v3752 = vunpack.c.l.b16 %v3338
        %v3753 = vunpack.c.h.b16 %v3338
        %v3754 = vunpack.c.l.b16 %v3339
        %v3755 = vunpack.c.h.b16 %v3339
        %v3756 = vunpack.c.l.b16 %v3340
        %v3757 = vunpack.c.h.b16 %v3340
        %v3758 = vunpack.c.l.b16 %v3341
        %v3759 = vunpack.c.h.b16 %v3341
        %v3760 = vunpack.c.l.b16 %v3342
        %v3761 = vunpack.c.h.b16 %v3342
        %v3762 = vunpack.c.l.b16 %v3343
        %v3763 = vunpack.c.h.b16 %v3343
        %v3764 = vunpack.c.l.b16 %v3344
        %v3765 = vunpack.c.h.b16 %v3344
        %v3766 = vunpack.c.l.b16 %v3345
        %v3767 = vunpack.c.h.b16 %v3345
        %v3768 = vunpack.c.l.b16 %v3346
        %v3769 = vunpack.c.h.b16 %v3346
        %v3770 = vunpack.c.l.b16 %v3347
        %v3771 = vunpack.c.h.b16 %v3347
        %v3772 = vunpack.c.l.b16 %v3348
        %v3773 = vunpack.c.h.b16 %v3348
        %v3774 = vunpack.c.l.b16 %v3349
        %v3775 = vunpack.c.h.b16 %v3349
        %v3776 = vunpack.c.l.b16 %v3350
        %v3777 = vunpack.c.h.b16 %v3350
        %v3778 = vunpack.c.l.b16 %v3351
        %v3779 = vunpack.c.h.b16 %v3351
        %v3780 = vunpack.c.l.b16 %v3352
        %v3781 = vunpack.c.h.b16 %v3352
        %v3782 = vunpack.c.l.b16 %v3353
        %v3783 = vunpack.c.h.b16 %v3353
        %v3784 = vunpack.c.l.b16 %v3354
        %v3785 = vunpack.c.h.b16 %v3354
        %v3786 = vunpack.c.l.b16 %v3355
        %v3787 = vunpack.c.h.b16 %v3355
        %v3788 = vunpack.c.l.b16 %v3356
        %v3789 = vunpack.c.h.b16 %v3356
        %v3790 = vunpack.c.l.b16 %v3357
        %v3791 = vunpack.c.h.b16 %v3357
        %v3792 = vunpack.c.l.b16 %v3358
        %v3793 = vunpack.c.h.b16 %v3358
        %v3794 = vunpack.c.l.b16 %v3359
        %v3795 = vunpack.c.h.b16 %v3359
        %v3796 = vunpack.c.l.b16 %v3360
        %v3797 = vunpack.c.h.b16 %v3360
        %v3798 = vpack.c.b16 %v3546, %v3542
        %v3799 = vpack.c.b16 %v3547, %v3543
        %v3800 = vpack.c.b16 %v3548, %v3544
        %v3801 = vpack.c.b16 %v3549, %v3545
        %v3802 = vpack.c.b16 %v3554, %v3550
        %v3803 = vpack.c.b16 %v3555, %v3551
        %v3804 = vpack.c.b16 %v3556, %v3552
        %v3805 = vpack.c.b16 %v3557, %v3553
        %v3806 = vpack.c.b16 %v3562, %v3558
        %v3807 = vpack.c.b16 %v3563, %v3559
        %v3808 = vpack.c.b16 %v3564, %v3560
        %v3809 = vpack.c.b16 %v3565, %v3561
        %v3810 = vpack.c.b16 %v3570, %v3566
        %v3811 = vpack.c.b16 %v3571, %v3567
        %v3812 = vpack.c.b16 %v3572, %v3568
        %v3813 = vpack.c.b16 %v3573, %v3569
        %v3814 = vpack.c.b16 %v3578, %v3574
        %v3815 = vpack.c.b16 %v3579, %v3575
        %v3816 = vpack.c.b16 %v3580, %v3576
        %v3817 = vpack.c.b16 %v3581, %v3577
        %v3818 = vpack.c.b16 %v3586, %v3582
        %v3819 = vpack.c.b16 %v3587, %v3583
        %v3820 = vpack.c.b16 %v3588, %v3584
        %v3821 = vpack.c.b16 %v3589, %v3585
        %v3822 = vpack.c.b16 %v3594, %v3590
        %v3823 = vpack.c.b16 %v3595, %v3591
        %v3824 = vpack.c.b16 %v3596, %v3592
        %v3825 = vpack.c.b16 %v3597, %v3593
        %v3826 = vpack.c.b16 %v3602, %v3598
        %v3827 = vpack.c.b16 %v3603, %v3599
        %v3828 = vpack.c.b16 %v3604, %v3600
        %v3829 = vpack.c.b16 %v3605, %v3601
        %v3830 = vpack.c.b16 %v3610, %v3606
        %v3831 = vpack.c.b16 %v3611, %v3607
        %v3832 = vpack.c.b16 %v3612, %v3608
        %v3833 = vpack.c.b16 %v3613, %v3609
        %v3834 = vpack.c.b16 %v3618, %v3614
        %v3835 = vpack.c.b16 %v3619, %v3615
        %v3836 = vpack.c.b16 %v3620, %v3616
        %v3837 = vpack.c.b16 %v3621, %v3617
        %v3838 = vpack.c.b16 %v3626, %v3622
        %v3839 = vpack.c.b16 %v3627, %v3623
        %v3840 = vpack.c.b16 %v3628, %v3624
        %v3841 = vpack.c.b16 %v3629, %v3625
        %v3842 = vpack.c.b16 %v3634, %v3630
        %v3843 = vpack.c.b16 %v3635, %v3631
        %v3844 = vpack.c.b16 %v3636, %v3632
        %v3845 = vpack.c.b16 %v3637, %v3633
        %v3846 = vpack.c.b16 %v3642, %v3638
        %v3847 = vpack.c.b16 %v3643, %v3639
        %v3848 = vpack.c.b16 %v3644, %v3640
        %v3849 = vpack.c.b16 %v3645, %v3641
        %v3850 = vpack.c.b16 %v3650, %v3646
        %v3851 = vpack.c.b16 %v3651, %v3647
        %v3852 = vpack.c.b16 %v3652, %v3648
        %v3853 = vpack.c.b16 %v3653, %v3649
        %v3854 = vpack.c.b16 %v3658, %v3654
        %v3855 = vpack.c.b16 %v3659, %v3655
        %v3856 = vpack.c.b16 %v3660, %v3656
        %v3857 = vpack.c.b16 %v3661, %v3657
        %v3858 = vpack.c.b16 %v3666, %v3662
        %v3859 = vpack.c.b16 %v3667, %v3663
        %v3860 = vpack.c.b16 %v3668, %v3664
        %v3861 = vpack.c.b16 %v3669, %v3665
        %v3862 = vpack.c.b16 %v3674, %v3670
        %v3863 = vpack.c.b16 %v3675, %v3671
        %v3864 = vpack.c.b16 %v3676, %v3672
        %v3865 = vpack.c.b16 %v3677, %v3673
        %v3866 = vpack.c.b16 %v3682, %v3678
        %v3867 = vpack.c.b16 %v3683, %v3679
        %v3868 = vpack.c.b16 %v3684, %v3680
        %v3869 = vpack.c.b16 %v3685, %v3681
        %v3870 = vpack.c.b16 %v3690, %v3686
        %v3871 = vpack.c.b16 %v3691, %v3687
        %v3872 = vpack.c.b16 %v3692, %v3688
        %v3873 = vpack.c.b16 %v3693, %v3689
        %v3874 = vpack.c.b16 %v3698, %v3694
        %v3875 = vpack.c.b16 %v3699, %v3695
        %v3876 = vpack.c.b16 %v3700, %v3696
        %v3877 = vpack.c.b16 %v3701, %v3697
        %v3878 = vpack.c.b16 %v3706, %v3702
        %v3879 = vpack.c.b16 %v3707, %v3703
        %v3880 = vpack.c.b16 %v3708, %v3704
        %v3881 = vpack.c.b16 %v3709, %v3705
        %v3882 = vpack.c.b16 %v3714, %v3710
        %v3883 = vpack.c.b16 %v3715, %v3711
        %v3884 = vpack.c.b16 %v3716, %v3712
        %v3885 = vpack.c.b16 %v3717, %v3713
        %v3886 = vpack.c.b16 %v3722, %v3718
        %v3887 = vpack.c.b16 %v3723, %v3719
        %v3888 = vpack.c.b16 %v3724, %v3720
        %v3889 = vpack.c.b16 %v3725, %v3721
        %v3890 = vpack.c.b16 %v3730, %v3726
        %v3891 = vpack.c.b16 %v3731, %v3727
        %v3892 = vpack.c.b16 %v3732, %v3728
        %v3893 = vpack.c.b16 %v3733, %v3729
        %v3894 = vpack.c.b16 %v3738, %v3734
        %v3895 = vpack.c.b16 %v3739, %v3735
        %v3896 = vpack.c.b16 %v3740, %v3736
        %v3897 = vpack.c.b16 %v3741, %v3737
        %v3898 = vpack.c.b16 %v3746, %v3742
        %v3899 = vpack.c.b16 %v3747, %v3743
        %v3900 = vpack.c.b16 %v3748, %v3744
        %v3901 = vpack.c.b16 %v3749, %v3745
        %v3902 = vpack.c.b16 %v3754, %v3750
        %v3903 = vpack.c.b16 %v3755, %v3751
        %v3904 = vpack.c.b16 %v3756, %v3752
        %v3905 = vpack.c.b16 %v3757, %v3753
        %v3906 = vpack.c.b16 %v3762, %v3758
        %v3907 = vpack.c.b16 %v3763, %v3759
        %v3908 = vpack.c.b16 %v3764, %v3760
        %v3909 = vpack.c.b16 %v3765, %v3761
        %v3910 = vpack.c.b16 %v3770, %v3766
        %v3911 = vpack.c.b16 %v3771, %v3767
        %v3912 = vpack.c.b16 %v3772, %v3768
        %v3913 = vpack.c.b16 %v3773, %v3769
        %v3914 = vpack.c.b16 %v3778, %v3774
        %v3915 = vpack.c.b16 %v3779, %v3775
        %v3916 = vpack.c.b16 %v3780, %v3776
        %v3917 = vpack.c.b16 %v3781, %v3777
        %v3918 = vpack.c.b16 %v3786, %v3782
        %v3919 = vpack.c.b16 %v3787, %v3783
        %v3920 = vpack.c.b16 %v3788, %v3784
        %v3921 = vpack.c.b16 %v3789, %v3785
        %v3922 = vpack.c.b16 %v3794, %v3790
        %v3923 = vpack.c.b16 %v3795, %v3791
        %v3924 = vpack.c.b16 %v3796, %v3792
        %v3925 = vpack.c.b16 %v3797, %v3793
        %4054 = vmatpush.bf16.msra.mxu0 %v3826
        %4055 = vmatpush.bf16.msra.mxu0 %v3822
        %4056 = vmatpush.bf16.msra.mxu0 %v3818
        %4057 = vmatpush.bf16.msra.mxu0 %v3814
        %4058 = vmatpush.bf16.msra.mxu0 %v3810
        %4059 = vmatpush.bf16.msra.mxu0 %v3806
        %4060 = vmatpush.bf16.msra.mxu0 %v3802
        %4061 = vmatpush.bf16.msra.mxu0 %v3798
        %4062 = vmatmul.bf16.gmra.mxu0 %v3373
        %v4063 = vpop.f32.mrf.mxu0
        %v4064 = vadd.f32 0.0, %v4063
        %v4065 = vpop.f32.mrf.mxu0
        %v4066 = vadd.f32 0.0, %v4065
        %4067 = vdwg.mxu0
        %4068 = vmatpush.bf16.msra.mxu0 %v3858
        %4069 = vmatpush.bf16.msra.mxu0 %v3854
        %4070 = vmatpush.bf16.msra.mxu0 %v3850
        %4071 = vmatpush.bf16.msra.mxu0 %v3846
        %4072 = vmatpush.bf16.msra.mxu0 %v3842
        %4073 = vmatpush.bf16.msra.mxu0 %v3838
        %4074 = vmatpush.bf16.msra.mxu0 %v3834
        %4075 = vmatpush.bf16.msra.mxu0 %v3830
        %4076 = vmatmul.bf16.gmra.mxu0 %v3385
        %v4077 = vpop.f32.mrf.mxu0
        %v4078 = vadd.f32 %v4064, %v4077
        %v4079 = vpop.f32.mrf.mxu0
        %v4080 = vadd.f32 %v4066, %v4079
        %4081 = vdwg.mxu0
        %4082 = vmatpush.bf16.msra.mxu0 %v3890
        %4083 = vmatpush.bf16.msra.mxu0 %v3886
        %4084 = vmatpush.bf16.msra.mxu0 %v3882
        %4085 = vmatpush.bf16.msra.mxu0 %v3878
        %4086 = vmatpush.bf16.msra.mxu0 %v3874
        %4087 = vmatpush.bf16.msra.mxu0 %v3870
        %4088 = vmatpush.bf16.msra.mxu0 %v3866
        %4089 = vmatpush.bf16.msra.mxu0 %v3862
        %4090 = vmatmul.bf16.gmra.mxu0 %v3397
        %v4091 = vpop.f32.mrf.mxu0
        %v4092 = vadd.f32 %v4078, %v4091
        %v4093 = vpop.f32.mrf.mxu0
        %v4094 = vadd.f32 %v4080, %v4093
        %4095 = vdwg.mxu0
        %4096 = vmatpush.bf16.msra.mxu0 %v3922
        %4097 = vmatpush.bf16.msra.mxu0 %v3918
        %4098 = vmatpush.bf16.msra.mxu0 %v3914
        %4099 = vmatpush.bf16.msra.mxu0 %v3910
        %4100 = vmatpush.bf16.msra.mxu0 %v3906
        %4101 = vmatpush.bf16.msra.mxu0 %v3902
        %4102 = vmatpush.bf16.msra.mxu0 %v3898
        %4103 = vmatpush.bf16.msra.mxu0 %v3894
        %4104 = vmatmul.bf16.gmra.mxu0 %v3409
        %v4105 = vpop.f32.mrf.mxu0
        %v4106 = vadd.f32 %v4092, %v4105
        %v4107 = vpop.f32.mrf.mxu0
        %v4108 = vadd.f32 %v4094, %v4107
        %4109 = vdwg.mxu0
        %4110 = vmatpush.bf16.msra.mxu0 %v3827
        %4111 = vmatpush.bf16.msra.mxu0 %v3823
        %4112 = vmatpush.bf16.msra.mxu0 %v3819
        %4113 = vmatpush.bf16.msra.mxu0 %v3815
        %4114 = vmatpush.bf16.msra.mxu0 %v3811
        %4115 = vmatpush.bf16.msra.mxu0 %v3807
        %4116 = vmatpush.bf16.msra.mxu0 %v3803
        %4117 = vmatpush.bf16.msra.mxu0 %v3799
        %4118 = vmatmul.bf16.gmra.mxu0 %v3373
        %v4119 = vpop.f32.mrf.mxu0
        %v4120 = vadd.f32 0.0, %v4119
        %v4121 = vpop.f32.mrf.mxu0
        %v4122 = vadd.f32 0.0, %v4121
        %4123 = vdwg.mxu0
        %4124 = vmatpush.bf16.msra.mxu0 %v3859
        %4125 = vmatpush.bf16.msra.mxu0 %v3855
        %4126 = vmatpush.bf16.msra.mxu0 %v3851
        %4127 = vmatpush.bf16.msra.mxu0 %v3847
        %4128 = vmatpush.bf16.msra.mxu0 %v3843
        %4129 = vmatpush.bf16.msra.mxu0 %v3839
        %4130 = vmatpush.bf16.msra.mxu0 %v3835
        %4131 = vmatpush.bf16.msra.mxu0 %v3831
        %4132 = vmatmul.bf16.gmra.mxu0 %v3385
        %v4133 = vpop.f32.mrf.mxu0
        %v4134 = vadd.f32 %v4120, %v4133
        %v4135 = vpop.f32.mrf.mxu0
        %v4136 = vadd.f32 %v4122, %v4135
        %4137 = vdwg.mxu0
        %4138 = vmatpush.bf16.msra.mxu0 %v3891
        %4139 = vmatpush.bf16.msra.mxu0 %v3887
        %4140 = vmatpush.bf16.msra.mxu0 %v3883
        %4141 = vmatpush.bf16.msra.mxu0 %v3879
        %4142 = vmatpush.bf16.msra.mxu0 %v3875
        %4143 = vmatpush.bf16.msra.mxu0 %v3871
        %4144 = vmatpush.bf16.msra.mxu0 %v3867
        %4145 = vmatpush.bf16.msra.mxu0 %v3863
        %4146 = vmatmul.bf16.gmra.mxu0 %v3397
        %v4147 = vpop.f32.mrf.mxu0
        %v4148 = vadd.f32 %v4134, %v4147
        %v4149 = vpop.f32.mrf.mxu0
        %v4150 = vadd.f32 %v4136, %v4149
        %4151 = vdwg.mxu0
        %4152 = vmatpush.bf16.msra.mxu0 %v3923
        %4153 = vmatpush.bf16.msra.mxu0 %v3919
        %4154 = vmatpush.bf16.msra.mxu0 %v3915
        %4155 = vmatpush.bf16.msra.mxu0 %v3911
        %4156 = vmatpush.bf16.msra.mxu0 %v3907
        %4157 = vmatpush.bf16.msra.mxu0 %v3903
        %4158 = vmatpush.bf16.msra.mxu0 %v3899
        %4159 = vmatpush.bf16.msra.mxu0 %v3895
        %4160 = vmatmul.bf16.gmra.mxu0 %v3409
        %v4161 = vpop.f32.mrf.mxu0
        %v4162 = vadd.f32 %v4148, %v4161
        %v4163 = vpop.f32.mrf.mxu0
        %v4164 = vadd.f32 %v4150, %v4163
        %4165 = vdwg.mxu0
        %4166 = vmatpush.bf16.msra.mxu0 %v3828
        %4167 = vmatpush.bf16.msra.mxu0 %v3824
        %4168 = vmatpush.bf16.msra.mxu0 %v3820
        %4169 = vmatpush.bf16.msra.mxu0 %v3816
        %4170 = vmatpush.bf16.msra.mxu0 %v3812
        %4171 = vmatpush.bf16.msra.mxu0 %v3808
        %4172 = vmatpush.bf16.msra.mxu0 %v3804
        %4173 = vmatpush.bf16.msra.mxu0 %v3800
        %4174 = vmatmul.bf16.gmra.mxu0 %v3373
        %v4175 = vpop.f32.mrf.mxu0
        %v4176 = vadd.f32 0.0, %v4175
        %v4177 = vpop.f32.mrf.mxu0
        %v4178 = vadd.f32 0.0, %v4177
        %4179 = vdwg.mxu0
        %4180 = vmatpush.bf16.msra.mxu0 %v3860
        %4181 = vmatpush.bf16.msra.mxu0 %v3856
        %4182 = vmatpush.bf16.msra.mxu0 %v3852
        %4183 = vmatpush.bf16.msra.mxu0 %v3848
        %4184 = vmatpush.bf16.msra.mxu0 %v3844
        %4185 = vmatpush.bf16.msra.mxu0 %v3840
        %4186 = vmatpush.bf16.msra.mxu0 %v3836
        %4187 = vmatpush.bf16.msra.mxu0 %v3832
        %4188 = vmatmul.bf16.gmra.mxu0 %v3385
        %v4189 = vpop.f32.mrf.mxu0
        %v4190 = vadd.f32 %v4176, %v4189
        %v4191 = vpop.f32.mrf.mxu0
        %v4192 = vadd.f32 %v4178, %v4191
        %4193 = vdwg.mxu0
        %4194 = vmatpush.bf16.msra.mxu0 %v3892
        %4195 = vmatpush.bf16.msra.mxu0 %v3888
        %4196 = vmatpush.bf16.msra.mxu0 %v3884
        %4197 = vmatpush.bf16.msra.mxu0 %v3880
        %4198 = vmatpush.bf16.msra.mxu0 %v3876
        %4199 = vmatpush.bf16.msra.mxu0 %v3872
        %4200 = vmatpush.bf16.msra.mxu0 %v3868
        %4201 = vmatpush.bf16.msra.mxu0 %v3864
        %4202 = vmatmul.bf16.gmra.mxu0 %v3397
        %v4203 = vpop.f32.mrf.mxu0
        %v4204 = vadd.f32 %v4190, %v4203
        %v4205 = vpop.f32.mrf.mxu0
        %v4206 = vadd.f32 %v4192, %v4205
        %4207 = vdwg.mxu0
        %4208 = vmatpush.bf16.msra.mxu0 %v3924
        %4209 = vmatpush.bf16.msra.mxu0 %v3920
        %4210 = vmatpush.bf16.msra.mxu0 %v3916
        %4211 = vmatpush.bf16.msra.mxu0 %v3912
        %4212 = vmatpush.bf16.msra.mxu0 %v3908
        %4213 = vmatpush.bf16.msra.mxu0 %v3904
        %4214 = vmatpush.bf16.msra.mxu0 %v3900
        %4215 = vmatpush.bf16.msra.mxu0 %v3896
        %4216 = vmatmul.bf16.gmra.mxu0 %v3409
        %v4217 = vpop.f32.mrf.mxu0
        %v4218 = vadd.f32 %v4204, %v4217
        %v4219 = vpop.f32.mrf.mxu0
        %v4220 = vadd.f32 %v4206, %v4219
        %4221 = vdwg.mxu0
        %4222 = vmatpush.bf16.msra.mxu0 %v3829
        %4223 = vmatpush.bf16.msra.mxu0 %v3825
        %4224 = vmatpush.bf16.msra.mxu0 %v3821
        %4225 = vmatpush.bf16.msra.mxu0 %v3817
        %4226 = vmatpush.bf16.msra.mxu0 %v3813
        %4227 = vmatpush.bf16.msra.mxu0 %v3809
        %4228 = vmatpush.bf16.msra.mxu0 %v3805
        %4229 = vmatpush.bf16.msra.mxu0 %v3801
        %4230 = vmatmul.bf16.gmra.mxu0 %v3373
        %v4231 = vpop.f32.mrf.mxu0
        %v4232 = vadd.f32 0.0, %v4231
        %v4233 = vpop.f32.mrf.mxu0
        %v4234 = vadd.f32 0.0, %v4233
        %4235 = vdwg.mxu0
        %4236 = vmatpush.bf16.msra.mxu0 %v3861
        %4237 = vmatpush.bf16.msra.mxu0 %v3857
        %4238 = vmatpush.bf16.msra.mxu0 %v3853
        %4239 = vmatpush.bf16.msra.mxu0 %v3849
        %4240 = vmatpush.bf16.msra.mxu0 %v3845
        %4241 = vmatpush.bf16.msra.mxu0 %v3841
        %4242 = vmatpush.bf16.msra.mxu0 %v3837
        %4243 = vmatpush.bf16.msra.mxu0 %v3833
        %4244 = vmatmul.bf16.gmra.mxu0 %v3385
        %v4245 = vpop.f32.mrf.mxu0
        %v4246 = vadd.f32 %v4232, %v4245
        %v4247 = vpop.f32.mrf.mxu0
        %v4248 = vadd.f32 %v4234, %v4247
        %4249 = vdwg.mxu0
        %4250 = vmatpush.bf16.msra.mxu0 %v3893
        %4251 = vmatpush.bf16.msra.mxu0 %v3889
        %4252 = vmatpush.bf16.msra.mxu0 %v3885
        %4253 = vmatpush.bf16.msra.mxu0 %v3881
        %4254 = vmatpush.bf16.msra.mxu0 %v3877
        %4255 = vmatpush.bf16.msra.mxu0 %v3873
        %4256 = vmatpush.bf16.msra.mxu0 %v3869
        %4257 = vmatpush.bf16.msra.mxu0 %v3865
        %4258 = vmatmul.bf16.gmra.mxu0 %v3397
        %v4259 = vpop.f32.mrf.mxu0
        %v4260 = vadd.f32 %v4246, %v4259
        %v4261 = vpop.f32.mrf.mxu0
        %v4262 = vadd.f32 %v4248, %v4261
        %4263 = vdwg.mxu0
        %4264 = vmatpush.bf16.msra.mxu0 %v3925
        %4265 = vmatpush.bf16.msra.mxu0 %v3921
        %4266 = vmatpush.bf16.msra.mxu0 %v3917
        %4267 = vmatpush.bf16.msra.mxu0 %v3913
        %4268 = vmatpush.bf16.msra.mxu0 %v3909
        %4269 = vmatpush.bf16.msra.mxu0 %v3905
        %4270 = vmatpush.bf16.msra.mxu0 %v3901
        %4271 = vmatpush.bf16.msra.mxu0 %v3897
        %4272 = vmatmul.bf16.gmra.mxu0 %v3409
        %v4273 = vpop.f32.mrf.mxu0
        %v4274 = vadd.f32 %v4260, %v4273
        %v4275 = vpop.f32.mrf.mxu0
        %v4276 = vadd.f32 %v4262, %v4275
        %4277 = vdwg.mxu0
        %v4278 = vadd.f32 %v3040, %v4106
        %v4279 = vadd.f32 %v3096, %v4162
        %v4280 = vadd.f32 %v3152, %v4218
        %v4281 = vadd.f32 %v3208, %v4274
        %v4282 = vadd.f32 %v3042, %v4108
        %v4283 = vadd.f32 %v3098, %v4164
        %v4284 = vadd.f32 %v3154, %v4220
        %v4285 = vadd.f32 %v3210, %v4276
        %v4286 = vld [vmem:[#allocation9] sm:$0xf]
        %v4288 = vperm.slane %v4286, 0
        %v4289 = vperm.slane %v4286, 1
        %v4290 = vperm.slane %v4286, 2
        %v4291 = vperm.slane %v4286, 3
        %v4296 = vadd.f32 %v4278, %v4288
        %v4297 = vadd.f32 %v4279, %v4289
        %v4298 = vadd.f32 %v4280, %v4290
        %v4299 = vadd.f32 %v4281, %v4291
        %v4300 = vadd.f32 %v4282, %v4288
        %v4301 = vadd.f32 %v4283, %v4289
        %v4302 = vadd.f32 %v4284, %v4290
        %v4303 = vadd.f32 %v4285, %v4291
        %v4304 = vmax.f32 %v4296, 0.0
        %v4305 = vmax.f32 %v4297, 0.0
        %v4306 = vmax.f32 %v4298, 0.0
        %v4307 = vmax.f32 %v4299, 0.0
        %v4308 = vmax.f32 %v4300, 0.0
        %v4309 = vmax.f32 %v4301, 0.0
        %v4310 = vmax.f32 %v4302, 0.0
        %v4311 = vmax.f32 %v4303, 0.0
        %v4312 = vadd.f32 %v4304, %v4308
        %v4313 = vrot.slane %v4312, 4
        %v4314 = vadd.f32 %v4312, %v4313
        %v4315 = vrot.slane %v4314, 2
        %v4316 = vadd.f32 %v4314, %v4315
        %v4317 = vrot.slane %v4316, 1
        %v4318 = vadd.f32 %v4316, %v4317
        %v4319 = vadd.f32 %v4305, %v4309
        %v4320 = vrot.slane %v4319, 4
        %v4321 = vadd.f32 %v4319, %v4320
        %v4322 = vrot.slane %v4321, 2
        %v4323 = vadd.f32 %v4321, %v4322
        %v4324 = vrot.slane %v4323, 1
        %v4325 = vadd.f32 %v4323, %v4324
        %v4326 = vadd.f32 %v4306, %v4310
        %v4327 = vrot.slane %v4326, 4
        %v4328 = vadd.f32 %v4326, %v4327
        %v4329 = vrot.slane %v4328, 2
        %v4330 = vadd.f32 %v4328, %v4329
        %v4331 = vrot.slane %v4330, 1
        %v4332 = vadd.f32 %v4330, %v4331
        %v4333 = vadd.f32 %v4307, %v4311
        %v4334 = vrot.slane %v4333, 4
        %v4335 = vadd.f32 %v4333, %v4334
        %v4336 = vrot.slane %v4335, 2
        %v4337 = vadd.f32 %v4335, %v4336
        %v4338 = vrot.slane %v4337, 1
        %v4339 = vadd.f32 %v4337, %v4338
        %v4340 = vld [vmem:[%s6] sm:$0xff]
        %v4341 = vld [vmem:[%s6 + $0x8] sm:$0xff]
        %v4342 = vld [vmem:[%s6 + $0x10] sm:$0xff]
        %v4343 = vld [vmem:[%s6 + $0x18] sm:$0xff]
        %v4344 = vld [vmem:[%s6 + $0x20] sm:$0xff]
        %v4345 = vld [vmem:[%s6 + $0x28] sm:$0xff]
        %v4346 = vld [vmem:[%s6 + $0x30] sm:$0xff]
        %v4347 = vld [vmem:[%s6 + $0x38] sm:$0xff]
        %v4348 = vld [vmem:[%s6 + $0x40] sm:$0xff]
        %v4349 = vld [vmem:[%s6 + $0x48] sm:$0xff]
        %v4350 = vld [vmem:[%s6 + $0x50] sm:$0xff]
        %v4351 = vld [vmem:[%s6 + $0x58] sm:$0xff]
        %v4352 = vld [vmem:[%s6 + $0x60] sm:$0xff]
        %v4353 = vld [vmem:[%s6 + $0x68] sm:$0xff]
        %v4354 = vld [vmem:[%s6 + $0x70] sm:$0xff]
        %v4355 = vld [vmem:[%s6 + $0x78] sm:$0xff]
        %v4356 = vld [vmem:[%s6 + $0x80] sm:$0xff]
        %v4357 = vld [vmem:[%s6 + $0x88] sm:$0xff]
        %v4358 = vld [vmem:[%s6 + $0x90] sm:$0xff]
        %v4359 = vld [vmem:[%s6 + $0x98] sm:$0xff]
        %v4360 = vld [vmem:[%s6 + $0xa0] sm:$0xff]
        %v4361 = vld [vmem:[%s6 + $0xa8] sm:$0xff]
        %v4362 = vld [vmem:[%s6 + $0xb0] sm:$0xff]
        %v4363 = vld [vmem:[%s6 + $0xb8] sm:$0xff]
        %v4364 = vld [vmem:[%s6 + $0xc0] sm:$0xff]
        %v4365 = vld [vmem:[%s6 + $0xc8] sm:$0xff]
        %v4366 = vld [vmem:[%s6 + $0xd0] sm:$0xff]
        %v4367 = vld [vmem:[%s6 + $0xd8] sm:$0xff]
        %v4368 = vld [vmem:[%s6 + $0xe0] sm:$0xff]
        %v4369 = vld [vmem:[%s6 + $0xe8] sm:$0xff]
        %v4370 = vld [vmem:[%s6 + $0xf0] sm:$0xff]
        %v4371 = vld [vmem:[%s6 + $0xf8] sm:$0xff]
        %v4372 = vld [vmem:[%s6 + $0x100] sm:$0xff]
        %v4373 = vld [vmem:[%s6 + $0x108] sm:$0xff]
        %v4374 = vld [vmem:[%s6 + $0x110] sm:$0xff]
        %v4375 = vld [vmem:[%s6 + $0x118] sm:$0xff]
        %v4376 = vld [vmem:[%s6 + $0x120] sm:$0xff]
        %v4377 = vld [vmem:[%s6 + $0x128] sm:$0xff]
        %v4378 = vld [vmem:[%s6 + $0x130] sm:$0xff]
        %v4379 = vld [vmem:[%s6 + $0x138] sm:$0xff]
        %v4380 = vld [vmem:[%s6 + $0x140] sm:$0xff]
        %v4381 = vld [vmem:[%s6 + $0x148] sm:$0xff]
        %v4382 = vld [vmem:[%s6 + $0x150] sm:$0xff]
        %v4383 = vld [vmem:[%s6 + $0x158] sm:$0xff]
        %v4384 = vld [vmem:[%s6 + $0x160] sm:$0xff]
        %v4385 = vld [vmem:[%s6 + $0x168] sm:$0xff]
        %v4386 = vld [vmem:[%s6 + $0x170] sm:$0xff]
        %v4387 = vld [vmem:[%s6 + $0x178] sm:$0xff]
        %v4388 = vld [vmem:[%s6 + $0x180] sm:$0xff]
        %v4389 = vld [vmem:[%s6 + $0x188] sm:$0xff]
        %v4390 = vld [vmem:[%s6 + $0x190] sm:$0xff]
        %v4391 = vld [vmem:[%s6 + $0x198] sm:$0xff]
        %v4392 = vld [vmem:[%s6 + $0x1a0] sm:$0xff]
        %v4393 = vld [vmem:[%s6 + $0x1a8] sm:$0xff]
        %v4394 = vld [vmem:[%s6 + $0x1b0] sm:$0xff]
        %v4395 = vld [vmem:[%s6 + $0x1b8] sm:$0xff]
        %v4396 = vld [vmem:[%s6 + $0x1c0] sm:$0xff]
        %v4397 = vld [vmem:[%s6 + $0x1c8] sm:$0xff]
        %v4398 = vld [vmem:[%s6 + $0x1d0] sm:$0xff]
        %v4399 = vld [vmem:[%s6 + $0x1d8] sm:$0xff]
        %v4400 = vld [vmem:[%s6 + $0x1e0] sm:$0xff]
        %v4401 = vld [vmem:[%s6 + $0x1e8] sm:$0xff]
        %v4402 = vld [vmem:[%s6 + $0x1f0] sm:$0xff]
        %v4403 = vld [vmem:[%s6 + $0x1f8] sm:$0xff]
        %4404 = vmatpush.msra.mxu0 %v4355
        %4405 = vmatpush.msra.mxu0 %v4354
        %4406 = vmatpush.msra.mxu0 %v4353
        %4407 = vmatpush.msra.mxu0 %v4352
        %4408 = vmatpush.msra.mxu0 %v4351
        %4409 = vmatpush.msra.mxu0 %v4350
        %4410 = vmatpush.msra.mxu0 %v4349
        %4411 = vmatpush.msra.mxu0 %v4348
        %4412 = vmatpush.msra.mxu0 %v4347
        %4413 = vmatpush.msra.mxu0 %v4346
        %4414 = vmatpush.msra.mxu0 %v4345
        %4415 = vmatpush.msra.mxu0 %v4344
        %4416 = vmatpush.msra.mxu0 %v4343
        %4417 = vmatpush.msra.mxu0 %v4342
        %4418 = vmatpush.msra.mxu0 %v4341
        %4419 = vmatpush.msra.mxu0 %v4340
        %4420 = vmatmul.f32.gmra.mxu0 %v4318
        %v4421 = vpop.f32.mrf.mxu0
        %v4422 = vadd.f32 0.0, %v4421
        %4423 = vdwg.mxu0
        %4424 = vmatpush.msra.mxu0 %v4371
        %4425 = vmatpush.msra.mxu0 %v4370
        %4426 = vmatpush.msra.mxu0 %v4369
        %4427 = vmatpush.msra.mxu0 %v4368
        %4428 = vmatpush.msra.mxu0 %v4367
        %4429 = vmatpush.msra.mxu0 %v4366
        %4430 = vmatpush.msra.mxu0 %v4365
        %4431 = vmatpush.msra.mxu0 %v4364
        %4432 = vmatpush.msra.mxu0 %v4363
        %4433 = vmatpush.msra.mxu0 %v4362
        %4434 = vmatpush.msra.mxu0 %v4361
        %4435 = vmatpush.msra.mxu0 %v4360
        %4436 = vmatpush.msra.mxu0 %v4359
        %4437 = vmatpush.msra.mxu0 %v4358
        %4438 = vmatpush.msra.mxu0 %v4357
        %4439 = vmatpush.msra.mxu0 %v4356
        %4440 = vmatmul.f32.gmra.mxu0 %v4325
        %v4441 = vpop.f32.mrf.mxu0
        %v4442 = vadd.f32 %v4422, %v4441
        %4443 = vdwg.mxu0
        %4444 = vmatpush.msra.mxu0 %v4387
        %4445 = vmatpush.msra.mxu0 %v4386
        %4446 = vmatpush.msra.mxu0 %v4385
        %4447 = vmatpush.msra.mxu0 %v4384
        %4448 = vmatpush.msra.mxu0 %v4383
        %4449 = vmatpush.msra.mxu0 %v4382
        %4450 = vmatpush.msra.mxu0 %v4381
        %4451 = vmatpush.msra.mxu0 %v4380
        %4452 = vmatpush.msra.mxu0 %v4379
        %4453 = vmatpush.msra.mxu0 %v4378
        %4454 = vmatpush.msra.mxu0 %v4377
        %4455 = vmatpush.msra.mxu0 %v4376
        %4456 = vmatpush.msra.mxu0 %v4375
        %4457 = vmatpush.msra.mxu0 %v4374
        %4458 = vmatpush.msra.mxu0 %v4373
        %4459 = vmatpush.msra.mxu0 %v4372
        %4460 = vmatmul.f32.gmra.mxu0 %v4332
        %v4461 = vpop.f32.mrf.mxu0
        %v4462 = vadd.f32 %v4442, %v4461
        %4463 = vdwg.mxu0
        %4464 = vmatpush.msra.mxu0 %v4403
        %4465 = vmatpush.msra.mxu0 %v4402
        %4466 = vmatpush.msra.mxu0 %v4401
        %4467 = vmatpush.msra.mxu0 %v4400
        %4468 = vmatpush.msra.mxu0 %v4399
        %4469 = vmatpush.msra.mxu0 %v4398
        %4470 = vmatpush.msra.mxu0 %v4397
        %4471 = vmatpush.msra.mxu0 %v4396
        %4472 = vmatpush.msra.mxu0 %v4395
        %4473 = vmatpush.msra.mxu0 %v4394
        %4474 = vmatpush.msra.mxu0 %v4393
        %4475 = vmatpush.msra.mxu0 %v4392
        %4476 = vmatpush.msra.mxu0 %v4391
        %4477 = vmatpush.msra.mxu0 %v4390
        %4478 = vmatpush.msra.mxu0 %v4389
        %4479 = vmatpush.msra.mxu0 %v4388
        %4480 = vmatmul.f32.gmra.mxu0 %v4339
        %v4481 = vpop.f32.mrf.mxu0
        %v4482 = vadd.f32 %v4462, %v4481
        %4483 = vdwg.mxu0
        %v4484 = vmul.f32 %v4482, 0.00390625
        %v4485 = vand.u32 2147483647, %v4484
        %vm4486 = vcmask 253952
        %v4487 = vsel %vm4486, %v4485, 0.0
        %4488 = vadd.xlane.f32.xlu0 %v4487
        %v4489 = vpop.xlane.xlu0 %4488
        %v4490 = vrcp.pop 32.0
        %v4491 = vmul.f32 32.0, %v4490
        %v4492 = vsub.f32 1.0, %v4491
        %v4493 = vmul.f32 %v4490, %v4492
        %v4494 = vadd.f32 %v4490, %v4493
        %vm4495 = vweird.f32 %v4490
        %v4496 = vsel %vm4495, %v4490, %v4494
        %v4497 = vmul.f32 %v4489, %v4496
        %v4498 = vrcp.pop %v4497
        %v4499 = vmul.f32 %v4497, %v4498
        %v4500 = vsub.f32 1.0, %v4499
        %v4501 = vmul.f32 %v4498, %v4500
        %v4502 = vadd.f32 %v4498, %v4501
        %vm4503 = vweird.f32 %v4497
        %vm4504 = vweird.f32 %v4498
        %vm4505 = vmor %vm4503, %vm4504
        %v4506 = vsel %vm4505, %v4498, %v4502
        %v4507 = vand.u32 2147483647, %v4497
        %vm4508 = vcmp.eq.f32.partialorder %v4507, 8.507059e+37
        %v4509 = vand.u32 %v4497, 2147483648
        %v4510 = vor.u32 1.1754944e-38, %v4509
        %v4511 = vsel %vm4508, %v4510, %v4506
        %v4512 = vmul.f32 %v4484, %v4511
        %v4513 = vand.u32 2147483647, %v1105
        %vm4514 = vcmask 122880
        %v4515 = vsel %vm4514, %v4513, 0.0
        %4516 = vadd.xlane.f32.xlu0 %v4515
        %v4517 = vpop.xlane.xlu0 %4516
        %v4518 = vrcp.pop 16.0
        %v4519 = vmul.f32 16.0, %v4518
        %v4520 = vsub.f32 1.0, %v4519
        %v4521 = vmul.f32 %v4518, %v4520
        %v4522 = vadd.f32 %v4518, %v4521
        %vm4523 = vweird.f32 %v4518
        %v4524 = vsel %vm4523, %v4518, %v4522
        %v4525 = vmul.f32 %v4517, %v4524
        %v4526 = vrcp.pop %v4525
        %v4527 = vmul.f32 %v4525, %v4526
        %v4528 = vsub.f32 1.0, %v4527
        %v4529 = vmul.f32 %v4526, %v4528
        %v4530 = vadd.f32 %v4526, %v4529
        %vm4531 = vweird.f32 %v4525
        %vm4532 = vweird.f32 %v4526
        %vm4533 = vmor %vm4531, %vm4532
        %v4534 = vsel %vm4533, %v4526, %v4530
        %v4535 = vand.u32 2147483647, %v4525
        %vm4536 = vcmp.eq.f32.partialorder %v4535, 8.507059e+37
        %v4537 = vand.u32 %v4525, 2147483648
        %v4538 = vor.u32 1.1754944e-38, %v4537
        %v4539 = vsel %vm4536, %v4538, %v4534
        %v4540 = vmul.f32 %v1105, %v4539
        %v4541 = vld [vmem:[%s7] sm:$0xff]
        %v4542 = vld [vmem:[%s7 + $0x8] sm:$0xff]
        %v4543 = vld [vmem:[%s7 + $0x10] sm:$0xff]
        %v4544 = vld [vmem:[%s7 + $0x18] sm:$0xff]
        %v4545 = vld [vmem:[%s8] sm:$0xff]
        %v4546 = vld [vmem:[%s8 + $0x8] sm:$0xff]
        %vm4547 = vcmask 130048
        %v4549 = vsel %vm4547, %v4540, 0
        %4551 = vmatpush.msra.mxu0 0.0
        %4552 = vmatpush.msra.mxu0 0.0
        %4553 = vmatpush.msra.mxu0 0.0
        %4554 = vmatpush.msra.mxu0 0.0
        %4555 = vmatpush.msra.mxu0 0.0
        %4556 = vmatpush.msra.mxu0 0.0
        %4557 = vmatpush.msra.mxu0 0.0
        %4558 = vmatpush.msra.mxu0 0.0
        %4559 = vmatpush.msra.mxu0 0.0
        %4560 = vmatpush.msra.mxu0 0.0
        %4561 = vmatpush.msra.mxu0 0.0
        %4562 = vmatpush.msra.mxu0 0.0
        %4563 = vmatpush.msra.mxu0 0.0
        %4564 = vmatpush.msra.mxu0 0.0
        %4565 = vmatpush.msra.mxu0 %v4546
        %4566 = vmatpush.msra.mxu0 %v4545
        %4567 = vmatmul.f32.gmra.mxu0 %v4549
        %v4568 = vpop.f32.mrf.mxu0
        %v4569 = vadd.f32 0.0, %v4568
        %4570 = vdwg.mxu0
        %vm4571 = vcmask 261120
        %v4573 = vsel %vm4571, %v4512, 0
        %4575 = vmatpush.msra.mxu0 0.0
        %4576 = vmatpush.msra.mxu0 0.0
        %4577 = vmatpush.msra.mxu0 0.0
        %4578 = vmatpush.msra.mxu0 0.0
        %4579 = vmatpush.msra.mxu0 0.0
        %4580 = vmatpush.msra.mxu0 0.0
        %4581 = vmatpush.msra.mxu0 0.0
        %4582 = vmatpush.msra.mxu0 0.0
        %4583 = vmatpush.msra.mxu0 0.0
        %4584 = vmatpush.msra.mxu0 0.0
        %4585 = vmatpush.msra.mxu0 0.0
        %4586 = vmatpush.msra.mxu0 0.0
        %4587 = vmatpush.msra.mxu0 %v4544
        %4588 = vmatpush.msra.mxu0 %v4543
        %4589 = vmatpush.msra.mxu0 %v4542
        %4590 = vmatpush.msra.mxu0 %v4541
        %4591 = vmatmul.f32.gmra.mxu0 %v4573
        %v4592 = vpop.f32.mrf.mxu0
        %v4593 = vadd.f32 %v4569, %v4592
        %4594 = vdwg.mxu0
        %v4595 = vld [vmem:[#allocation11] sm:$0x1]
        %v4596 = vadd.f32 %v4593, %v4595
        %vm4597 = vcmask 16384
        %4598 = vst.msk [vmem:[%s428] sm:$0x1] %vm4597, %v4596
        %s4599 = sand.u32 %s250, 1
        %s4600 = scalar_lea.sflag [#allocation5], %s4599
        %s4601 = sand.u32 %s250, 1
        %s4602 = scalar_lea.vmem [#allocation12], %s4601
        // Predicated region
        $region81: #{deep_shallow_forward.1} parent=59 // pred_check
          %p4603 = pneg %p260
        $region82: #{deep_shallow_forward.1} parent=59 // pred_check_branch
          %4605 = sbr.rel (%p4603) target = $region84
        $region83: #{deep_shallow_forward.1} parent=59 // pred_region
          %4607 = vsyncadd %s4600, 0
          %s4608 = scalar_lea.hbm %s10, %s27
          %s4610 = sshll.u32 %s4602, 4
          %s4611 = int_to_ptr.vmem [resolvable:$true] %s4610
          %s4612 = sshll.u32 %s4608, 4
          %s4613 = int_to_ptr.hbm [resolvable:$true] %s4612
          %4615 = dma.vmem_to_hbm [thread:$0]  %s4611, 16, %s4613, %s4600
        $region84: #{deep_shallow_forward.1} parent=59 // pred_fallthru
          _
      $region60: #{deep_shallow_forward.1} parent=5 // pred_fallthru
        _
      %p4616 = scmp.le.s32.totalorder 2, %s22
      // Predicated region
      $region85: #{deep_shallow_forward.1} parent=5 // pred_check
        %p4617 = pneg %p4616
      $region86: #{deep_shallow_forward.1} parent=5 // pred_check_branch
        %4619 = sbr.rel (%p4617) target = $region88
      $region87: #{deep_shallow_forward.1} parent=5 // pred_region
        %s4620 = ssub.s32 %s22, 2
        // Predicated region
        $region89: #{deep_shallow_forward.1} parent=87 // pred_check
          %p4621 = pneg %p266
        $region90: #{deep_shallow_forward.1} parent=87 // pred_check_branch
          %4623 = sbr.rel (%p4621) target = $region92
        $region91: #{deep_shallow_forward.1} parent=87 // pred_region
          %s4624 = sand.u32 %s251, 1
          %s4625 = scalar_lea.sflag [#allocation5], %s4624
          %s4626 = sand.u32 %s251, 1
          %s4627 = scalar_lea.vmem [#allocation12], %s4626
          %4629 = dma.done %s4625, 16
        $region92: #{deep_shallow_forward.1} parent=87 // pred_fallthru
          _
      $region88: #{deep_shallow_forward.1} parent=5 // pred_fallthru
        _
    $region6: #{deep_shallow_forward.1} parent=1 // loop_footer
      %s26 = sadd.s32 1, %s22
    $region7: #{deep_shallow_forward.1} parent=1 // loop_footer_branch
      %21 = sbr.rel target = $region3
    $region8: #{deep_shallow_forward.1} parent=1 // loop_exit
      _
    %4630 = vsyncpa [#allocation4], 1
    %s4631 = scalar_lea.sflag [#allocation4], 1
    %4632 = vsyncpa %s4631, 1
    %4633 = vsyncpa [#allocation7], 1
    %4634 = vsyncpa [#allocation10], 1
    %4635 = vsyncpa [#allocation5], 1
    %s4636 = scalar_lea.sflag [#allocation5], 1
    %4637 = vsyncpa %s4636, 1

</llo_original>
